<compile_context>
chip_gen: v7x
topology: tpu7x:2x2x1
jax: 0.10.0
libtpu: 0.0.40
codegen_flags: <defaults>
</compile_context>

<pallas_src>
import jax
import jax.numpy as jnp
from jax.experimental import pallas as pl
from jax.experimental.pallas import tpu as pltpu

LANE = 128
BN_EPS = 1e-3  # torch.nn.BatchNorm1d(eps=0.001)


def _round_up(x, m):
    return (x + m - 1) // m * m


def _cdiv(a, b):
    return -(-a // b)


def _pad_time_to(a, left, total):
    """Zero-pad a (tile_b, L, C) activation along time to `total` rows:
    [left zeros | a | trailing zeros].  Trailing zeros beyond the conv window are never read."""
    tb, l, c = a.shape
    rest = total - left - l
    parts = []
    if left:
        parts.append(jnp.zeros((tb, left, c), a.dtype))
    parts.append(a)
    if rest:
        parts.append(jnp.zeros((tb, rest, c), a.dtype))
    if len(parts) == 1:
        return a
    return jnp.concatenate(parts, axis=1)


# ----------------------------------------------------------------------------------------
# Kernel
# ----------------------------------------------------------------------------------------
def _make_kernel(cfg, tile_b):
    filters = cfg["filters"]
    kernel_sizes = cfg["kernel_sizes"]
    units = cfg["units"]
    L = cfg["input_length"]
    n_conv = len(filters)
    n_lstm = len(units)
    c_pads = [1] + [_round_up(f, LANE) for f in filters]       # padded C_in chain per conv layer
    h_pads = [_round_up(u, LANE) for u in units]
    lp0 = _round_up(L + kernel_sizes[0] - 1, 8)                # time length of pre-padded conv input

    def kernel(*refs):
        it = iter(refs)
        xc_ref = next(it)                                      # (tile_b, lp0, 1) f32, time-padded
        xl_ref = next(it)                                      # (tile_b, L) f32
        conv_p = [(next(it), next(it)) for _ in range(n_conv)]
        lstm_p = [(next(it), next(it)) for _ in range(n_lstm)]
        w_fcn_ref, w_lstm_ref, b_lin_ref = next(it), next(it), next(it)
        out_ref = next(it)                                     # (tile_b, NC_pad)

        # ---------------- FCN branch (channels-last, BN folded into w/b) ----------------
        a = None
        fcn_out = None
        for i in range(n_conv):
            w_ref, b_ref = conv_p[i]
            K = kernel_sizes[i]
            c_in, c_out = c_pads[i], c_pads[i + 1]
            if c_in == 1:
                # Layer 0: a depth-1 contraction is VPU work, not MXU work.  The 1-lane input
                # is splatted across lanes exactly ONCE (hoisted out of the K-tap loop); the
                # 'same' time padding was done in the wrapper, so no zero-concat per step.
                apad_b = jnp.broadcast_to(xc_ref[...], (tile_b, lp0, c_out))
                w0 = w_ref[...]                                 # (K, 1, c_out) f32, BN-folded
                y3 = apad_b[:, 0:L, :] * w0[0]
                for k in range(1, K):
                    y3 = y3 + apad_b[:, k:k + L, :] * w0[k]
                y = y3.reshape(tile_b * L, c_out)
            else:
                # Fused im2col on the MXU.  Cast the activation to bf16 ONCE, before the K
                # shifted slices and the lane concat, halving the largest intermediate (cols).
                left = (K - 1) // 2
                lp = _round_up(L + K - 1, 8)
                apad = _pad_time_to(a, left, lp).astype(jnp.bfloat16)
                cols = jnp.concatenate([apad[:, k:k + L, :] for k in range(K)], axis=-1)
                y = jnp.dot(cols.reshape(tile_b * L, K * c_in), w_ref[...],
                            preferred_element_type=jnp.float32)
            # Conv bias + BatchNorm already folded into w/b -> epilogue is bias + ReLU only;
            # padded lanes stay exactly 0 (effective w/b padded with 0, ReLU(0) == 0).
            y = jnp.maximum(y + b_ref[...], 0.0)
            if i + 1 < n_conv:
                a = y.reshape(tile_b, L, c_out)
            else:
                fcn_out = jnp.mean(y.reshape(tile_b, L, c_out), axis=1)   # (tile_b, C_last_pad) f32

        # -------- LSTM branch (seq_len == 1, h0 = c0 = 0, dead forget gate dropped) --------
        h = None
        for i in range(n_lstm):
            w_ih_ref, b_ref = lstm_p[i]
            hp = h_pads[i]
            inp = xl_ref[...].astype(jnp.bfloat16) if i == 0 else h.astype(jnp.bfloat16)
            gates = jnp.dot(inp, w_ih_ref[...],
                            preferred_element_type=jnp.float32) + b_ref[...]
            i_g = jax.nn.sigmoid(gates[:, 0:hp])               # lane-aligned gate blocks [i | g | o]
            g_g = jnp.tanh(gates[:, hp:2 * hp])
            o_g = jax.nn.sigmoid(gates[:, 2 * hp:3 * hp])
            h = o_g * jnp.tanh(i_g * g_g)                      # padded lanes stay exactly 0

        # ---------------- head: split linear (no lane concat) ----------------
        logits = (jnp.dot(fcn_out.astype(jnp.bfloat16), w_fcn_ref[...],
                          preferred_element_type=jnp.float32)
                  + jnp.dot(h.astype(jnp.bfloat16), w_lstm_ref[...],
                            preferred_element_type=jnp.float32)
                  + b_lin_ref[...])
        out_ref[...] = logits.astype(out_ref.dtype)

    return kernel


# ----------------------------------------------------------------------------------------
# Parameters (torch-shaped) and packing (kernel layouts)
# ----------------------------------------------------------------------------------------
def init_params(key, cfg):
    """Deterministic synthetic parameters with the same shapes as the PyTorch module."""
    L = cfg["input_length"]
    filters, kernel_sizes = cfg["filters"], cfg["kernel_sizes"]
    units, num_classes = cfg["units"], cfg["num_classes"]
    keys = iter(jax.random.split(key, 64))
    params = {"conv": [], "lstm": []}

    c_in = 1
    for f, k in zip(filters, kernel_sizes):
        params["conv"].append({
            "w": 0.1 * jax.random.normal(next(keys), (f, c_in, k), jnp.float32),
            "b": 0.1 * jax.random.normal(next(keys), (f,), jnp.float32),
            "gamma": 1.0 + 0.1 * jax.random.normal(next(keys), (f,), jnp.float32),
            "beta": 0.1 * jax.random.normal(next(keys), (f,), jnp.float32),
            "mean": 0.1 * jax.random.normal(next(keys), (f,), jnp.float32),
            "var": 0.5 + jax.random.uniform(next(keys), (f,), jnp.float32),
        })
        c_in = f

    in_feat = L
    for h in units:
        params["lstm"].append({
            # torch gate order (i, f, g, o)
            "w_ih": 0.1 * jax.random.normal(next(keys), (4 * h, in_feat), jnp.float32),
            "b_ih": 0.1 * jax.random.normal(next(keys), (4 * h,), jnp.float32),
            "b_hh": 0.1 * jax.random.normal(next(keys), (4 * h,), jnp.float32),
            # TODO(synk): W_hh omitted — with seq_len == 1 and h0 == c0 == 0 the recurrent
            # term W_hh @ h0 is identically zero and cannot affect the forward pass.
        })
        in_feat = h

    lin_in = filters[-1] + units[-1]
    params["lin_w"] = 0.1 * jax.random.normal(next(keys), (num_classes, lin_in), jnp.float32)
    params["lin_b"] = 0.1 * jax.random.normal(next(keys), (num_classes,), jnp.float32)
    return params


def pack_params(params, cfg):
    """Repack torch-shaped params into lane-padded, kernel-ready layouts.
    BatchNorm (inference) + conv bias are folded into effective conv weights/biases here."""
    filters, units = cfg["filters"], cfg["units"]
    L, num_classes = cfg["input_length"], cfg["num_classes"]
    packed = {"conv": [], "lstm": []}

    c_in_p = 1
    for p in params["conv"]:
        c_out, c_in, K = p["w"].shape
        c_out_p = _round_up(c_out, LANE)
        # Fold BN:  scale = gamma*rsqrt(var+eps);  w' = w*scale;  b' = (b-mean)*scale + beta
        scale = p["gamma"] * jax.lax.rsqrt(p["var"] + BN_EPS)
        w_eff = p["w"] * scale[:, None, None]                  # (C_out, C_in, K)
        b_eff = (p["b"] - p["mean"]) * scale + p["beta"]
        w = jnp.transpose(w_eff, (2, 1, 0))                    # (K, C_in, C_out)
        if c_in == 1:
            # (K, 1, C_out_p) f32 — consumed by the VPU broadcast-MAC path.
            w_packed = jnp.pad(w, ((0, 0), (0, 0), (0, c_out_p - c_out)))
        else:
            # (K*C_in_p, C_out_p) bf16 — consumed by the fused im2col MXU matmul.
            w_packed = jnp.pad(w, ((0, 0), (0, c_in_p - c_in), (0, c_out_p - c_out)))
            w_packed = w_packed.reshape(K * c_in_p, c_out_p).astype(jnp.bfloat16)
        packed["conv"].append({
            "w": w_packed,
            "b": jnp.pad(b_eff, (0, c_out_p - c_out))[None, :],   # padded lanes stay 0
        })
        c_in_p = c_out_p

    in_feat, in_feat_p = L, L
    for i, p in enumerate(params["lstm"]):
        h = units[i]
        h_p = _round_up(h, LANE)
        b_fused = p["b_ih"] + p["b_hh"]
        w_blk = jnp.zeros((in_feat_p, 3 * h_p), jnp.float32)
        b_blk = jnp.zeros((3 * h_p,), jnp.float32)
        # Drop the dead forget gate (c0 == 0); pack gates as lane-aligned blocks [i | g | o].
        for j, g in enumerate((0, 2, 3)):
            w_g = jnp.transpose(p["w_ih"][g * h:(g + 1) * h, :], (1, 0))   # (in, H)
            w_blk = w_blk.at[:in_feat, j * h_p:j * h_p + h].set(w_g)
            b_blk = b_blk.at[j * h_p:j * h_p + h].set(b_fused[g * h:(g + 1) * h])
        packed["lstm"].append({"w_ih": w_blk.astype(jnp.bfloat16), "b": b_blk[None, :]})
        in_feat, in_feat_p = h, h_p

    c_last, h_last = filters[-1], units[-1]
    c_last_p, h_last_p = _round_up(c_last, LANE), _round_up(h_last, LANE)
    nc_p = _round_up(num_classes, LANE)
    w_lin = params["lin_w"]                                     # (NC, C_last + H_last)
    w_fcn = jnp.zeros((c_last_p, nc_p), jnp.float32)
    w_fcn = w_fcn.at[:c_last, :num_classes].set(jnp.transpose(w_lin[:, :c_last], (1, 0)))
    w_lstm = jnp.zeros((h_last_p, nc_p), jnp.float32)
    w_lstm = w_lstm.at[:h_last, :num_classes].set(jnp.transpose(w_lin[:, c_last:], (1, 0)))
    packed["w_fcn"] = w_fcn.astype(jnp.bfloat16)
    packed["w_lstm"] = w_lstm.astype(jnp.bfloat16)
    packed["b_lin"] = jnp.pad(params["lin_b"], (0, nc_p - num_classes))[None, :]
    return packed


# ----------------------------------------------------------------------------------------
# Tile / VMEM budgeting
# ----------------------------------------------------------------------------------------
def _conv_peak_row_bytes(cfg):
    """Peak per-batch-row bytes of the dominant in-kernel conv intermediates."""
    L = cfg["input_length"]
    c_pads = [1] + [_round_up(f, LANE) for f in cfg["filters"]]
    peak = 1
    for i, K in enumerate(cfg["kernel_sizes"]):
        c_in, c_out = c_pads[i], c_pads[i + 1]
        lp = _round_up(L + K - 1, 8)
        if c_in == 1:
            b = lp * c_out * 4 + L * c_out * 4                      # lane-splat input + f32 accum
        else:
            b = lp * c_in * 2 + L * K * c_in * 2 + L * c_out * 4    # bf16 apad + bf16 cols + f32 y
        peak = max(peak, b)
    return peak


def _choose_tile_b(B, cfg, vmem_budget=40 * 1024 * 1024):
    """Largest batch tile (multiple of 8, <= 256 rows) whose peak conv intermediates fit a
    v7x-safe (64 MiB physical) VMEM budget, without over-padding small batches; when the grid
    has more than one step, keep it even so both v7x TensorCores stay busy."""
    cap = max(8, (vmem_budget // _conv_peak_row_bytes(cfg)) // 8 * 8)
    tile_b = max(8, min(256, cap, _round_up(B, 8)))
    n = _cdiv(_round_up(B, 8), tile_b)
    if n > 1 and n % 2 == 1:
        tile_b = max(8, _round_up(_cdiv(B, n + 1), 8))
    return tile_b


# ----------------------------------------------------------------------------------------
# Wrapper
# ----------------------------------------------------------------------------------------
def lstm_fcn_forward(x, packed, cfg, *, tile_b=None, vmem_limit_bytes=None):
    """x: (samples, length) float32 -> logits (samples, num_classes)."""
    B, L = x.shape
    assert L == cfg["input_length"]
    assert L % 8 == 0, "input_length must be a multiple of 8 (sublane-aligned time axis)"
    if tile_b is None:
        tile_b = _choose_tile_b(B, cfg)
    assert tile_b % 8 == 0, "tile_b must be a multiple of 8 (sublane alignment)"

    nc_p = _round_up(cfg["num_classes"], LANE)
    K0 = cfg["kernel_sizes"][0]
    left0 = (K0 - 1) // 2
    lp0 = _round_up(L + K0 - 1, 8)

    b_pad = _round_up(max(B, tile_b), tile_b)
    # Conv copy of x: batch-padded and time-padded ('same') ONCE here, so the kernel never
    # re-concatenates zeros for layer 0 at every grid step.
    xc = jnp.pad(x, ((0, b_pad - B), (left0, lp0 - left0 - L)))[:, :, None]
    # LSTM copy of x: 2-D, feeds the first-layer gate matmul on the MXU.
    xl = jnp.pad(x, ((0, b_pad - B), (0, 0)))

    inputs = [xc, xl]
    for p in packed["conv"]:
        inputs += [p["w"], p["b"]]
    for p in packed["lstm"]:
        inputs += [p["w_ih"], p["b"]]
    inputs += [packed["w_fcn"], packed["w_lstm"], packed["b_lin"]]

    def const_spec(arr):
        # Grid-invariant operand: the whole (small, lane-padded) parameter stays VMEM-resident.
        return pl.BlockSpec(arr.shape, lambda b, _nd=arr.ndim: (0,) * _nd)

    in_specs = [pl.BlockSpec((tile_b, lp0, 1), lambda b: (b, 0, 0)),
                pl.BlockSpec((tile_b, L), lambda b: (b, 0))]
    in_specs += [const_spec(a) for a in inputs[2:]]
    out_specs = pl.BlockSpec((tile_b, nc_p), lambda b: (b, 0))

    if vmem_limit_bytes is None:
        # v5e/v6e (128 MiB physical): lift the 16/32 MiB scoped default to ~96 MiB.
        # v7x (64 MiB physical): cap at ~48 MiB; tile_b selection already budgets for this.
        try:
            cap = int(pltpu.get_tpu_info().vmem_capacity_bytes)
        except Exception:
            cap = 64 * 1024 * 1024
        vmem_limit_bytes = max(32 * 1024 * 1024, min(100 * 1024 * 1024, cap * 3 // 4))

    out = pl.pallas_call(
        _make_kernel(cfg, tile_b),
        out_shape=jax.ShapeDtypeStruct((b_pad, nc_p), jnp.float32),
        grid=(b_pad // tile_b,),
        in_specs=in_specs,
        out_specs=out_specs,
        compiler_params=pltpu.CompilerParams(
            dimension_semantics=("parallel",),
            vmem_limit_bytes=vmem_limit_bytes,
        ),
    )(*inputs)
    return out[:B, :cfg["num_classes"]]


# ----------------------------------------------------------------------------------------
# Pure-JAX reference (fp32, torch-shaped params) for correctness checking
# ----------------------------------------------------------------------------------------
def reference_forward(x, params, cfg):
    B, L = x.shape
    a = x[:, :, None]                                           # channels-last (B, L, 1)
    for p in params["conv"]:
        w = jnp.transpose(p["w"], (2, 1, 0))                    # (K, C_in, C_out)
        K = w.shape[0]
        left = (K - 1) // 2
        right = (K - 1) - left
        apad = jnp.pad(a, ((0, 0), (left, right), (0, 0)))
        y = sum(jnp.einsum("blc,co->blo", apad[:, k:k + L, :], w[k]) for k in range(K))
        y = y + p["b"][None, None, :]
        y = (y - p["mean"]) * jax.lax.rsqrt(p["var"] + BN_EPS) * p["gamma"] + p["beta"]
        a = jnp.maximum(y, 0.0)
    fcn_out = jnp.mean(a, axis=1)

    h = x
    for i, p in enumerate(params["lstm"]):
        H = cfg["units"][i]
        gates = h @ p["w_ih"].T + p["b_ih"] + p["b_hh"]
        i_g = jax.nn.sigmoid(gates[:, 0:H])
        g_g = jnp.tanh(gates[:, 2 * H:3 * H])
        o_g = jax.nn.sigmoid(gates[:, 3 * H:4 * H])
        h = o_g * jnp.tanh(i_g * g_g)

    feat = jnp.concatenate([fcn_out, h], axis=-1)
    return feat @ params["lin_w"].T + params["lin_b"]


if __name__ == "__main__":
    cfg = dict(
        input_length=16,        # length of the time series (multiple of 8)
        units=[32, 24],         # two recurrent blocks -> exercises the h -> gates MXU path
        dropout=0.0,            # eval mode -> identity anyway
        filters=[8, 8],         # conv channels per block
        kernel_sizes=[7, 3],    # conv kernel sizes per block
        num_classes=5,
    )
    key = jax.random.PRNGKey(0)
    kx, kp = jax.random.split(key)
    B = 20                      # not a multiple of the tile -> exercises batch padding
    x = jax.random.normal(kx, (B, cfg["input_length"]), jnp.float32)

    params = init_params(kp, cfg)
    packed = pack_params(params, cfg)
    ref = reference_forward(x, params, cfg)

    # 1) default auto tile (single big batch tile for this small demo batch)
    out_auto = jax.block_until_ready(lstm_fcn_forward(x, packed, cfg))
    # 2) explicit small tile that forces a multi-step grid (checks the batch pipeline path)
    out_tiled = jax.block_until_ready(lstm_fcn_forward(x, packed, cfg, tile_b=8))

    for out in (out_auto, out_tiled):
        assert out.shape == (B, cfg["num_classes"]), out.shape
        # bf16 MXU operands (f32 accumulation) -> slightly looser tolerance than pure fp32.
        assert jnp.allclose(out, ref, atol=3e-2, rtol=3e-2), (out, ref)
    print("KERNEL_OK")
</pallas_src>

<mosaic_0001>
module attributes {stable_mosaic.version = 11 : i64} {
  func.func @kernel(%arg0: i32, %arg1: memref<24x24x1xf32, #tpu.memory_space<vmem>>, %arg2: memref<24x16xf32, #tpu.memory_space<vmem>>, %arg3: memref<7x1x128xf32, #tpu.memory_space<vmem>>, %arg4: memref<1x128xf32, #tpu.memory_space<vmem>>, %arg5: memref<384x128xbf16, #tpu.memory_space<vmem>>, %arg6: memref<1x128xf32, #tpu.memory_space<vmem>>, %arg7: memref<16x384xbf16, #tpu.memory_space<vmem>>, %arg8: memref<1x384xf32, #tpu.memory_space<vmem>>, %arg9: memref<128x384xbf16, #tpu.memory_space<vmem>>, %arg10: memref<1x384xf32, #tpu.memory_space<vmem>>, %arg11: memref<128x128xbf16, #tpu.memory_space<vmem>>, %arg12: memref<128x128xbf16, #tpu.memory_space<vmem>>, %arg13: memref<1x128xf32, #tpu.memory_space<vmem>>, %arg14: memref<24x128xf32, #tpu.memory_space<vmem>>) attributes {dimension_semantics = [#tpu.dimension_semantics<parallel>], iteration_bounds = array<i64: 1>, scalar_prefetch = 0 : i64, scratch_operands = 0 : i64, tpu.core_type = #tpu.core_type<tc>, window_params = [{transform_indices = @transform_0, window_bounds = array<i64: 24, 24, 1>}, {transform_indices = @transform_1, window_bounds = array<i64: 24, 16>}, {pipeline_mode = #tpu.pipeline_mode<synchronous>, transform_indices = @transform_2, window_bounds = array<i64: 7, 1, 128>}, {pipeline_mode = #tpu.pipeline_mode<synchronous>, transform_indices = @transform_3, window_bounds = array<i64: 1, 128>}, {pipeline_mode = #tpu.pipeline_mode<synchronous>, transform_indices = @transform_4, window_bounds = array<i64: 384, 128>}, {pipeline_mode = #tpu.pipeline_mode<synchronous>, transform_indices = @transform_5, window_bounds = array<i64: 1, 128>}, {pipeline_mode = #tpu.pipeline_mode<synchronous>, transform_indices = @transform_6, window_bounds = array<i64: 16, 384>}, {pipeline_mode = #tpu.pipeline_mode<synchronous>, transform_indices = @transform_7, window_bounds = array<i64: 1, 384>}, {pipeline_mode = #tpu.pipeline_mode<synchronous>, transform_indices = @transform_8, window_bounds = array<i64: 128, 384>}, {pipeline_mode = #tpu.pipeline_mode<synchronous>, transform_indices = @transform_9, window_bounds = array<i64: 1, 384>}, {pipeline_mode = #tpu.pipeline_mode<synchronous>, transform_indices = @transform_10, window_bounds = array<i64: 128, 128>}, {pipeline_mode = #tpu.pipeline_mode<synchronous>, transform_indices = @transform_11, window_bounds = array<i64: 128, 128>}, {pipeline_mode = #tpu.pipeline_mode<synchronous>, transform_indices = @transform_12, window_bounds = array<i64: 1, 128>}, {transform_indices = @transform_13, window_bounds = array<i64: 24, 128>}]} {
    %c0 = arith.constant 0 : index
    %c0_0 = arith.constant 0 : index
    %c0_1 = arith.constant 0 : index
    %0 = vector.load %arg1[%c0, %c0_0, %c0_1] : memref<24x24x1xf32, #tpu.memory_space<vmem>>, vector<24x24x1xf32>
    %1 = vector.shape_cast %0 : vector<24x24x1xf32> to vector<24x24x1xf32>
    %2 = vector.broadcast %1 : vector<24x24x1xf32> to vector<24x24x128xf32>
    %c0_2 = arith.constant 0 : index
    %c0_3 = arith.constant 0 : index
    %c0_4 = arith.constant 0 : index
    %3 = vector.load %arg3[%c0_2, %c0_3, %c0_4] : memref<7x1x128xf32, #tpu.memory_space<vmem>>, vector<7x1x128xf32>
    %4 = vector.extract_strided_slice %2 {offsets = [0, 0, 0], sizes = [24, 16, 128], strides = [1, 1, 1]} : vector<24x24x128xf32> to vector<24x16x128xf32>
    %5 = vector.extract_strided_slice %3 {offsets = [0, 0, 0], sizes = [1, 1, 128], strides = [1, 1, 1]} : vector<7x1x128xf32> to vector<1x1x128xf32>
    %6 = vector.shape_cast %5 : vector<1x1x128xf32> to vector<1x128xf32>
    %7 = vector.shape_cast %6 : vector<1x128xf32> to vector<1x1x128xf32>
    %8 = vector.broadcast %7 : vector<1x1x128xf32> to vector<24x16x128xf32>
    %9 = arith.mulf %4, %8 : vector<24x16x128xf32>
    %10 = vector.extract_strided_slice %2 {offsets = [0, 1, 0], sizes = [24, 16, 128], strides = [1, 1, 1]} : vector<24x24x128xf32> to vector<24x16x128xf32>
    %11 = vector.extract_strided_slice %3 {offsets = [1, 0, 0], sizes = [1, 1, 128], strides = [1, 1, 1]} : vector<7x1x128xf32> to vector<1x1x128xf32>
    %12 = vector.shape_cast %11 : vector<1x1x128xf32> to vector<1x128xf32>
    %13 = vector.shape_cast %12 : vector<1x128xf32> to vector<1x1x128xf32>
    %14 = vector.broadcast %13 : vector<1x1x128xf32> to vector<24x16x128xf32>
    %15 = arith.mulf %10, %14 : vector<24x16x128xf32>
    %16 = arith.addf %9, %15 : vector<24x16x128xf32>
    %17 = vector.extract_strided_slice %2 {offsets = [0, 2, 0], sizes = [24, 16, 128], strides = [1, 1, 1]} : vector<24x24x128xf32> to vector<24x16x128xf32>
    %18 = vector.extract_strided_slice %3 {offsets = [2, 0, 0], sizes = [1, 1, 128], strides = [1, 1, 1]} : vector<7x1x128xf32> to vector<1x1x128xf32>
    %19 = vector.shape_cast %18 : vector<1x1x128xf32> to vector<1x128xf32>
    %20 = vector.shape_cast %19 : vector<1x128xf32> to vector<1x1x128xf32>
    %21 = vector.broadcast %20 : vector<1x1x128xf32> to vector<24x16x128xf32>
    %22 = arith.mulf %17, %21 : vector<24x16x128xf32>
    %23 = arith.addf %16, %22 : vector<24x16x128xf32>
    %24 = vector.extract_strided_slice %2 {offsets = [0, 3, 0], sizes = [24, 16, 128], strides = [1, 1, 1]} : vector<24x24x128xf32> to vector<24x16x128xf32>
    %25 = vector.extract_strided_slice %3 {offsets = [3, 0, 0], sizes = [1, 1, 128], strides = [1, 1, 1]} : vector<7x1x128xf32> to vector<1x1x128xf32>
    %26 = vector.shape_cast %25 : vector<1x1x128xf32> to vector<1x128xf32>
    %27 = vector.shape_cast %26 : vector<1x128xf32> to vector<1x1x128xf32>
    %28 = vector.broadcast %27 : vector<1x1x128xf32> to vector<24x16x128xf32>
    %29 = arith.mulf %24, %28 : vector<24x16x128xf32>
    %30 = arith.addf %23, %29 : vector<24x16x128xf32>
    %31 = vector.extract_strided_slice %2 {offsets = [0, 4, 0], sizes = [24, 16, 128], strides = [1, 1, 1]} : vector<24x24x128xf32> to vector<24x16x128xf32>
    %32 = vector.extract_strided_slice %3 {offsets = [4, 0, 0], sizes = [1, 1, 128], strides = [1, 1, 1]} : vector<7x1x128xf32> to vector<1x1x128xf32>
    %33 = vector.shape_cast %32 : vector<1x1x128xf32> to vector<1x128xf32>
    %34 = vector.shape_cast %33 : vector<1x128xf32> to vector<1x1x128xf32>
    %35 = vector.broadcast %34 : vector<1x1x128xf32> to vector<24x16x128xf32>
    %36 = arith.mulf %31, %35 : vector<24x16x128xf32>
    %37 = arith.addf %30, %36 : vector<24x16x128xf32>
    %38 = vector.extract_strided_slice %2 {offsets = [0, 5, 0], sizes = [24, 16, 128], strides = [1, 1, 1]} : vector<24x24x128xf32> to vector<24x16x128xf32>
    %39 = vector.extract_strided_slice %3 {offsets = [5, 0, 0], sizes = [1, 1, 128], strides = [1, 1, 1]} : vector<7x1x128xf32> to vector<1x1x128xf32>
    %40 = vector.shape_cast %39 : vector<1x1x128xf32> to vector<1x128xf32>
    %41 = vector.shape_cast %40 : vector<1x128xf32> to vector<1x1x128xf32>
    %42 = vector.broadcast %41 : vector<1x1x128xf32> to vector<24x16x128xf32>
    %43 = arith.mulf %38, %42 : vector<24x16x128xf32>
    %44 = arith.addf %37, %43 : vector<24x16x128xf32>
    %45 = vector.extract_strided_slice %2 {offsets = [0, 6, 0], sizes = [24, 16, 128], strides = [1, 1, 1]} : vector<24x24x128xf32> to vector<24x16x128xf32>
    %46 = vector.extract_strided_slice %3 {offsets = [6, 0, 0], sizes = [1, 1, 128], strides = [1, 1, 1]} : vector<7x1x128xf32> to vector<1x1x128xf32>
    %47 = vector.shape_cast %46 : vector<1x1x128xf32> to vector<1x128xf32>
    %48 = vector.shape_cast %47 : vector<1x128xf32> to vector<1x1x128xf32>
    %49 = vector.broadcast %48 : vector<1x1x128xf32> to vector<24x16x128xf32>
    %50 = arith.mulf %45, %49 : vector<24x16x128xf32>
    %51 = arith.addf %44, %50 : vector<24x16x128xf32>
    %52 = vector.shape_cast %51 : vector<24x16x128xf32> to vector<384x128xf32>
    %c0_5 = arith.constant 0 : index
    %c0_6 = arith.constant 0 : index
    %53 = vector.load %arg4[%c0_5, %c0_6] : memref<1x128xf32, #tpu.memory_space<vmem>>, vector<1x128xf32>
    %54 = vector.broadcast %53 : vector<1x128xf32> to vector<384x128xf32>
    %55 = arith.addf %52, %54 : vector<384x128xf32>
    %cst = arith.constant 0.000000e+00 : f32
    %56 = vector.broadcast %cst : f32 to vector<384x128xf32>
    %57 = arith.maximumf %55, %56 : vector<384x128xf32>
    %58 = vector.shape_cast %57 : vector<384x128xf32> to vector<24x16x128xf32>
    %cst_7 = arith.constant 0.000000e+00 : f32
    %59 = vector.broadcast %cst_7 : f32 to vector<24x1x128xf32>
    %cst_8 = arith.constant 0.000000e+00 : f32
    %60 = vector.broadcast %cst_8 : f32 to vector<24x7x128xf32>
    %61 = tpu.concatenate %59, %58, %60 in 1 : vector<24x1x128xf32>, vector<24x16x128xf32>, vector<24x7x128xf32> -> vector<24x24x128xf32>
    %62 = arith.truncf %61 : vector<24x24x128xf32> to vector<24x24x128xbf16>
    %63 = vector.extract_strided_slice %62 {offsets = [0, 0, 0], sizes = [24, 16, 128], strides = [1, 1, 1]} : vector<24x24x128xbf16> to vector<24x16x128xbf16>
    %64 = vector.extract_strided_slice %62 {offsets = [0, 1, 0], sizes = [24, 16, 128], strides = [1, 1, 1]} : vector<24x24x128xbf16> to vector<24x16x128xbf16>
    %65 = vector.extract_strided_slice %62 {offsets = [0, 2, 0], sizes = [24, 16, 128], strides = [1, 1, 1]} : vector<24x24x128xbf16> to vector<24x16x128xbf16>
    %66 = tpu.concatenate %63, %64, %65 in 2 : vector<24x16x128xbf16>, vector<24x16x128xbf16>, vector<24x16x128xbf16> -> vector<24x16x384xbf16>
    %67 = vector.shape_cast %66 : vector<24x16x384xbf16> to vector<384x384xbf16>
    %c0_9 = arith.constant 0 : index
    %c0_10 = arith.constant 0 : index
    %68 = vector.load %arg5[%c0_9, %c0_10] : memref<384x128xbf16, #tpu.memory_space<vmem>>, vector<384x128xbf16>
    %cst_11 = arith.constant dense<0.000000e+00> : vector<384x128xf32>
    %69 = tpu.matmul %67, %68, %cst_11 {dimension_numbers = #tpu.dot_dimension_numbers<[1], [0], [0], [1], [0, 0, 1, 1], [], []>} : vector<384x384xbf16>, vector<384x128xbf16>, vector<384x128xf32> -> vector<384x128xf32>
    %c0_12 = arith.constant 0 : index
    %c0_13 = arith.constant 0 : index
    %70 = vector.load %arg6[%c0_12, %c0_13] : memref<1x128xf32, #tpu.memory_space<vmem>>, vector<1x128xf32>
    %71 = vector.broadcast %70 : vector<1x128xf32> to vector<384x128xf32>
    %72 = arith.addf %69, %71 : vector<384x128xf32>
    %cst_14 = arith.constant 0.000000e+00 : f32
    %73 = vector.broadcast %cst_14 : f32 to vector<384x128xf32>
    %74 = arith.maximumf %72, %73 : vector<384x128xf32>
    %75 = vector.shape_cast %74 : vector<384x128xf32> to vector<24x16x128xf32>
    %cst_15 = arith.constant dense<0.000000e+00> : vector<24x128xf32>
    %76 = vector.multi_reduction <add>, %75, %cst_15 [1] : vector<24x16x128xf32> to vector<24x128xf32>
    %cst_16 = arith.constant 1.600000e+01 : f32
    %77 = vector.broadcast %cst_16 : f32 to vector<24x128xf32>
    %78 = arith.divf %76, %77 : vector<24x128xf32>
    %c0_17 = arith.constant 0 : index
    %c0_18 = arith.constant 0 : index
    %79 = vector.load %arg2[%c0_17, %c0_18] : memref<24x16xf32, #tpu.memory_space<vmem>>, vector<24x16xf32>
    %80 = arith.truncf %79 : vector<24x16xf32> to vector<24x16xbf16>
    %c0_19 = arith.constant 0 : index
    %c0_20 = arith.constant 0 : index
    %81 = vector.load %arg7[%c0_19, %c0_20] : memref<16x384xbf16, #tpu.memory_space<vmem>>, vector<16x384xbf16>
    %cst_21 = arith.constant dense<0.000000e+00> : vector<24x384xf32>
    %82 = tpu.matmul %80, %81, %cst_21 {dimension_numbers = #tpu.dot_dimension_numbers<[1], [0], [0], [1], [0, 0, 1, 1], [], []>} : vector<24x16xbf16>, vector<16x384xbf16>, vector<24x384xf32> -> vector<24x384xf32>
    %c0_22 = arith.constant 0 : index
    %c0_23 = arith.constant 0 : index
    %83 = vector.load %arg8[%c0_22, %c0_23] : memref<1x384xf32, #tpu.memory_space<vmem>>, vector<1x384xf32>
    %84 = vector.broadcast %83 : vector<1x384xf32> to vector<24x384xf32>
    %85 = arith.addf %82, %84 : vector<24x384xf32>
    %86 = vector.extract_strided_slice %85 {offsets = [0, 0], sizes = [24, 128], strides = [1, 1]} : vector<24x384xf32> to vector<24x128xf32>
    %87 = arith.negf %86 : vector<24x128xf32>
    %88 = math.exp %87 : vector<24x128xf32>
    %cst_24 = arith.constant 1.000000e+00 : f32
    %89 = vector.broadcast %cst_24 : f32 to vector<24x128xf32>
    %90 = arith.addf %89, %88 : vector<24x128xf32>
    %91 = arith.divf %89, %90 : vector<24x128xf32>
    %92 = vector.extract_strided_slice %85 {offsets = [0, 128], sizes = [24, 128], strides = [1, 1]} : vector<24x384xf32> to vector<24x128xf32>
    %93 = math.tanh %92 : vector<24x128xf32>
    %94 = vector.extract_strided_slice %85 {offsets = [0, 256], sizes = [24, 128], strides = [1, 1]} : vector<24x384xf32> to vector<24x128xf32>
    %95 = arith.negf %94 : vector<24x128xf32>
    %96 = math.exp %95 : vector<24x128xf32>
    %cst_25 = arith.constant 1.000000e+00 : f32
    %97 = vector.broadcast %cst_25 : f32 to vector<24x128xf32>
    %98 = arith.addf %97, %96 : vector<24x128xf32>
    %99 = arith.divf %97, %98 : vector<24x128xf32>
    %100 = arith.mulf %91, %93 : vector<24x128xf32>
    %101 = math.tanh %100 : vector<24x128xf32>
    %102 = arith.mulf %99, %101 : vector<24x128xf32>
    %103 = arith.truncf %102 : vector<24x128xf32> to vector<24x128xbf16>
    %c0_26 = arith.constant 0 : index
    %c0_27 = arith.constant 0 : index
    %104 = vector.load %arg9[%c0_26, %c0_27] : memref<128x384xbf16, #tpu.memory_space<vmem>>, vector<128x384xbf16>
    %cst_28 = arith.constant dense<0.000000e+00> : vector<24x384xf32>
    %105 = tpu.matmul %103, %104, %cst_28 {dimension_numbers = #tpu.dot_dimension_numbers<[1], [0], [0], [1], [0, 0, 1, 1], [], []>} : vector<24x128xbf16>, vector<128x384xbf16>, vector<24x384xf32> -> vector<24x384xf32>
    %c0_29 = arith.constant 0 : index
    %c0_30 = arith.constant 0 : index
    %106 = vector.load %arg10[%c0_29, %c0_30] : memref<1x384xf32, #tpu.memory_space<vmem>>, vector<1x384xf32>
    %107 = vector.broadcast %106 : vector<1x384xf32> to vector<24x384xf32>
    %108 = arith.addf %105, %107 : vector<24x384xf32>
    %109 = vector.extract_strided_slice %108 {offsets = [0, 0], sizes = [24, 128], strides = [1, 1]} : vector<24x384xf32> to vector<24x128xf32>
    %110 = arith.negf %109 : vector<24x128xf32>
    %111 = math.exp %110 : vector<24x128xf32>
    %cst_31 = arith.constant 1.000000e+00 : f32
    %112 = vector.broadcast %cst_31 : f32 to vector<24x128xf32>
    %113 = arith.addf %112, %111 : vector<24x128xf32>
    %114 = arith.divf %112, %113 : vector<24x128xf32>
    %115 = vector.extract_strided_slice %108 {offsets = [0, 128], sizes = [24, 128], strides = [1, 1]} : vector<24x384xf32> to vector<24x128xf32>
    %116 = math.tanh %115 : vector<24x128xf32>
    %117 = vector.extract_strided_slice %108 {offsets = [0, 256], sizes = [24, 128], strides = [1, 1]} : vector<24x384xf32> to vector<24x128xf32>
    %118 = arith.negf %117 : vector<24x128xf32>
    %119 = math.exp %118 : vector<24x128xf32>
    %cst_32 = arith.constant 1.000000e+00 : f32
    %120 = vector.broadcast %cst_32 : f32 to vector<24x128xf32>
    %121 = arith.addf %120, %119 : vector<24x128xf32>
    %122 = arith.divf %120, %121 : vector<24x128xf32>
    %123 = arith.mulf %114, %116 : vector<24x128xf32>
    %124 = math.tanh %123 : vector<24x128xf32>
    %125 = arith.mulf %122, %124 : vector<24x128xf32>
    %126 = arith.truncf %78 : vector<24x128xf32> to vector<24x128xbf16>
    %c0_33 = arith.constant 0 : index
    %c0_34 = arith.constant 0 : index
    %127 = vector.load %arg11[%c0_33, %c0_34] : memref<128x128xbf16, #tpu.memory_space<vmem>>, vector<128x128xbf16>
    %cst_35 = arith.constant dense<0.000000e+00> : vector<24x128xf32>
    %128 = tpu.matmul %126, %127, %cst_35 {dimension_numbers = #tpu.dot_dimension_numbers<[1], [0], [0], [1], [0, 0, 1, 1], [], []>} : vector<24x128xbf16>, vector<128x128xbf16>, vector<24x128xf32> -> vector<24x128xf32>
    %129 = arith.truncf %125 : vector<24x128xf32> to vector<24x128xbf16>
    %c0_36 = arith.constant 0 : index
    %c0_37 = arith.constant 0 : index
    %130 = vector.load %arg12[%c0_36, %c0_37] : memref<128x128xbf16, #tpu.memory_space<vmem>>, vector<128x128xbf16>
    %cst_38 = arith.constant dense<0.000000e+00> : vector<24x128xf32>
    %131 = tpu.matmul %129, %130, %cst_38 {dimension_numbers = #tpu.dot_dimension_numbers<[1], [0], [0], [1], [0, 0, 1, 1], [], []>} : vector<24x128xbf16>, vector<128x128xbf16>, vector<24x128xf32> -> vector<24x128xf32>
    %132 = arith.addf %128, %131 : vector<24x128xf32>
    %c0_39 = arith.constant 0 : index
    %c0_40 = arith.constant 0 : index
    %133 = vector.load %arg13[%c0_39, %c0_40] : memref<1x128xf32, #tpu.memory_space<vmem>>, vector<1x128xf32>
    %134 = vector.broadcast %133 : vector<1x128xf32> to vector<24x128xf32>
    %135 = arith.addf %132, %134 : vector<24x128xf32>
    %c0_41 = arith.constant 0 : index
    %c0_42 = arith.constant 0 : index
    %136 = vector.load %arg14[%c0_41, %c0_42] : memref<24x128xf32, #tpu.memory_space<vmem>>, vector<24x128xf32>
    tpu.vector_store %arg14[%c0_41, %c0_42], %135 {strides = array<i32>} : memref<24x128xf32, #tpu.memory_space<vmem>>, vector<24x128xf32>,
    return
  }
  func.func @transform_0(%arg0: i32) -> (i32, i32, i32) {
    %c0_i32 = arith.constant 0 : i32
    %c0_i32_0 = arith.constant 0 : i32
    %c0_i32_1 = arith.constant 0 : i32
    return %arg0, %c0_i32, %c0_i32_0 : i32, i32, i32
  }
  func.func @transform_1(%arg0: i32) -> (i32, i32) {
    %c0_i32 = arith.constant 0 : i32
    %c0_i32_0 = arith.constant 0 : i32
    return %arg0, %c0_i32 : i32, i32
  }
  func.func @transform_2(%arg0: i32) -> (i32, i32, i32) {
    %c0_i32 = arith.constant 0 : i32
    %c0_i32_0 = arith.constant 0 : i32
    %c0_i32_1 = arith.constant 0 : i32
    %c0_i32_2 = arith.constant 0 : i32
    return %c0_i32, %c0_i32_0, %c0_i32_1 : i32, i32, i32
  }
  func.func @transform_3(%arg0: i32) -> (i32, i32) {
    %c0_i32 = arith.constant 0 : i32
    %c0_i32_0 = arith.constant 0 : i32
    %c0_i32_1 = arith.constant 0 : i32
    return %c0_i32, %c0_i32_0 : i32, i32
  }
  func.func @transform_4(%arg0: i32) -> (i32, i32) {
    %c0_i32 = arith.constant 0 : i32
    %c0_i32_0 = arith.constant 0 : i32
    %c0_i32_1 = arith.constant 0 : i32
    return %c0_i32, %c0_i32_0 : i32, i32
  }
  func.func @transform_5(%arg0: i32) -> (i32, i32) {
    %c0_i32 = arith.constant 0 : i32
    %c0_i32_0 = arith.constant 0 : i32
    %c0_i32_1 = arith.constant 0 : i32
    return %c0_i32, %c0_i32_0 : i32, i32
  }
  func.func @transform_6(%arg0: i32) -> (i32, i32) {
    %c0_i32 = arith.constant 0 : i32
    %c0_i32_0 = arith.constant 0 : i32
    %c0_i32_1 = arith.constant 0 : i32
    return %c0_i32, %c0_i32_0 : i32, i32
  }
  func.func @transform_7(%arg0: i32) -> (i32, i32) {
    %c0_i32 = arith.constant 0 : i32
    %c0_i32_0 = arith.constant 0 : i32
    %c0_i32_1 = arith.constant 0 : i32
    return %c0_i32, %c0_i32_0 : i32, i32
  }
  func.func @transform_8(%arg0: i32) -> (i32, i32) {
    %c0_i32 = arith.constant 0 : i32
    %c0_i32_0 = arith.constant 0 : i32
    %c0_i32_1 = arith.constant 0 : i32
    return %c0_i32, %c0_i32_0 : i32, i32
  }
  func.func @transform_9(%arg0: i32) -> (i32, i32) {
    %c0_i32 = arith.constant 0 : i32
    %c0_i32_0 = arith.constant 0 : i32
    %c0_i32_1 = arith.constant 0 : i32
    return %c0_i32, %c0_i32_0 : i32, i32
  }
  func.func @transform_10(%arg0: i32) -> (i32, i32) {
    %c0_i32 = arith.constant 0 : i32
    %c0_i32_0 = arith.constant 0 : i32
    %c0_i32_1 = arith.constant 0 : i32
    return %c0_i32, %c0_i32_0 : i32, i32
  }
  func.func @transform_11(%arg0: i32) -> (i32, i32) {
    %c0_i32 = arith.constant 0 : i32
    %c0_i32_0 = arith.constant 0 : i32
    %c0_i32_1 = arith.constant 0 : i32
    return %c0_i32, %c0_i32_0 : i32, i32
  }
  func.func @transform_12(%arg0: i32) -> (i32, i32) {
    %c0_i32 = arith.constant 0 : i32
    %c0_i32_0 = arith.constant 0 : i32
    %c0_i32_1 = arith.constant 0 : i32
    return %c0_i32, %c0_i32_0 : i32, i32
  }
  func.func @transform_13(%arg0: i32) -> (i32, i32) {
    %c0_i32 = arith.constant 0 : i32
    %c0_i32_0 = arith.constant 0 : i32
    return %arg0, %c0_i32 : i32, i32
  }
}

</mosaic_0001>

<llo_original>
// kernel: tpu_custom_call.1
$region0: #{tpu_custom_call.1}
  #allocation0 [shape = 'u32[]', space=smem, size = 0x4, offset = 0x4, fixed_abs, tag = 'smem constant byte address 0x4 - core index']
  #allocation1 [shape = 'u32[144,128]{1,0:T(1,128)}', space=vmem, size = 0x12000, scoped, tag = 'internal scratch']
  %s0 = inlined_call_operand.vmem [shape: f32[24,24,1], index: 0, kind: input, shape index: {}]
  %s1 = inlined_call_operand.vmem [shape: f32[24,16], index: 1, kind: input, shape index: {}]
  %s2 = inlined_call_operand.vmem [shape: f32[7,1,128], index: 2, kind: input, shape index: {}]
  %s3 = inlined_call_operand.vmem [shape: f32[1,128], index: 3, kind: input, shape index: {}]
  %s4 = inlined_call_operand.vmem [shape: bf16[384,128], index: 4, kind: input, shape index: {}]
  %s5 = inlined_call_operand.vmem [shape: f32[1,128], index: 5, kind: input, shape index: {}]
  %s6 = inlined_call_operand.vmem [shape: bf16[16,384], index: 6, kind: input, shape index: {}]
  %s7 = inlined_call_operand.vmem [shape: f32[1,384], index: 7, kind: input, shape index: {}]
  %s8 = inlined_call_operand.vmem [shape: bf16[128,384], index: 8, kind: input, shape index: {}]
  %s9 = inlined_call_operand.vmem [shape: f32[1,384], index: 9, kind: input, shape index: {}]
  %s10 = inlined_call_operand.vmem [shape: bf16[128,128], index: 10, kind: input, shape index: {}]
  %s11 = inlined_call_operand.vmem [shape: bf16[128,128], index: 11, kind: input, shape index: {}]
  %s12 = inlined_call_operand.vmem [shape: f32[1,128], index: 12, kind: input, shape index: {}]
  %s13 = inlined_call_operand.hbm [shape: f32[24,128], index: 13, kind: output, shape index: {}]
  %s14 = sld [smem:[#allocation0]]
  $region62: #{tpu_custom_call.1} parent=0
    _
  %s16 = ssub.s32 1, %s14
  %s17 = scalar_select 0, %s16, %s14
  $region1: #{tpu_custom_call.1} parent=0
    #allocation2 [shape = 'u8[12288]{0}', space=vmem, size = 0x3000, scoped, tag = 'output window, operand 0, single buffered']
    #allocation3 [shape = 's32[1]{0}', space=sflag, size = 0x4, scoped, tag = 'scoped memory for tpu_custom_call.1']
    %18 = vsyncpa [#allocation3], 0
    // Predicated region
    $region2: #{tpu_custom_call.1} parent=1 // pred_check
      _
    $region3: #{tpu_custom_call.1} parent=1 // pred_check_branch
      %20 = sbr.rel (0) target = $region5
    $region4: #{tpu_custom_call.1} parent=1 // pred_region
      _
    $region5: #{tpu_custom_call.1} parent=1 // pred_fallthru
      _
    // Predicated region
    $region6: #{tpu_custom_call.1} parent=1 // pred_check
      _
    $region7: #{tpu_custom_call.1} parent=1 // pred_check_branch
      %22 = sbr.rel (0) target = $region9
    $region8: #{tpu_custom_call.1} parent=1 // pred_region
      _
    $region9: #{tpu_custom_call.1} parent=1 // pred_fallthru
      _
    // Predicated region
    $region10: #{tpu_custom_call.1} parent=1 // pred_check
      _
    $region11: #{tpu_custom_call.1} parent=1 // pred_check_branch
      %24 = sbr.rel (0) target = $region13
    $region12: #{tpu_custom_call.1} parent=1 // pred_region
      _
    $region13: #{tpu_custom_call.1} parent=1 // pred_fallthru
      _
    // Predicated region
    $region14: #{tpu_custom_call.1} parent=1 // pred_check
      _
    $region15: #{tpu_custom_call.1} parent=1 // pred_check_branch
      %26 = sbr.rel (0) target = $region17
    $region16: #{tpu_custom_call.1} parent=1 // pred_region
      _
    $region17: #{tpu_custom_call.1} parent=1 // pred_fallthru
      _
    // Predicated region
    $region18: #{tpu_custom_call.1} parent=1 // pred_check
      _
    $region19: #{tpu_custom_call.1} parent=1 // pred_check_branch
      %28 = sbr.rel (0) target = $region21
    $region20: #{tpu_custom_call.1} parent=1 // pred_region
      _
    $region21: #{tpu_custom_call.1} parent=1 // pred_fallthru
      _
    // Predicated region
    $region22: #{tpu_custom_call.1} parent=1 // pred_check
      _
    $region23: #{tpu_custom_call.1} parent=1 // pred_check_branch
      %30 = sbr.rel (0) target = $region25
    $region24: #{tpu_custom_call.1} parent=1 // pred_region
      _
    $region25: #{tpu_custom_call.1} parent=1 // pred_fallthru
      _
    // Predicated region
    $region26: #{tpu_custom_call.1} parent=1 // pred_check
      _
    $region27: #{tpu_custom_call.1} parent=1 // pred_check_branch
      %32 = sbr.rel (0) target = $region29
    $region28: #{tpu_custom_call.1} parent=1 // pred_region
      _
    $region29: #{tpu_custom_call.1} parent=1 // pred_fallthru
      _
    // Predicated region
    $region30: #{tpu_custom_call.1} parent=1 // pred_check
      _
    $region31: #{tpu_custom_call.1} parent=1 // pred_check_branch
      %34 = sbr.rel (0) target = $region33
    $region32: #{tpu_custom_call.1} parent=1 // pred_region
      _
    $region33: #{tpu_custom_call.1} parent=1 // pred_fallthru
      _
    // Predicated region
    $region34: #{tpu_custom_call.1} parent=1 // pred_check
      _
    $region35: #{tpu_custom_call.1} parent=1 // pred_check_branch
      %36 = sbr.rel (0) target = $region37
    $region36: #{tpu_custom_call.1} parent=1 // pred_region
      _
    $region37: #{tpu_custom_call.1} parent=1 // pred_fallthru
      _
    // Predicated region
    $region38: #{tpu_custom_call.1} parent=1 // pred_check
      _
    $region39: #{tpu_custom_call.1} parent=1 // pred_check_branch
      %38 = sbr.rel (0) target = $region41
    $region40: #{tpu_custom_call.1} parent=1 // pred_region
      _
    $region41: #{tpu_custom_call.1} parent=1 // pred_fallthru
      _
    // Predicated region
    $region42: #{tpu_custom_call.1} parent=1 // pred_check
      _
    $region43: #{tpu_custom_call.1} parent=1 // pred_check_branch
      %40 = sbr.rel (0) target = $region45
    $region44: #{tpu_custom_call.1} parent=1 // pred_region
      _
    $region45: #{tpu_custom_call.1} parent=1 // pred_fallthru
      _
    // Predicated region
    $region46: #{tpu_custom_call.1} parent=1 // pred_check
      _
    $region47: #{tpu_custom_call.1} parent=1 // pred_check_branch
      %42 = sbr.rel (0) target = $region49
    $region48: #{tpu_custom_call.1} parent=1 // pred_region
      _
    $region49: #{tpu_custom_call.1} parent=1 // pred_fallthru
      _
    // Predicated region
    $region50: #{tpu_custom_call.1} parent=1 // pred_check
      _
    $region51: #{tpu_custom_call.1} parent=1 // pred_check_branch
      %44 = sbr.rel (0) target = $region53
    $region52: #{tpu_custom_call.1} parent=1 // pred_region
      _
    $region53: #{tpu_custom_call.1} parent=1 // pred_fallthru
      _
    %v46 = vld [vmem:[%s0] sm:$0xff]
    %v47 = vld [vmem:[%s0 + $0x8] sm:$0xff]
    %v48 = vld [vmem:[%s0 + $0x10] sm:$0xff]
    %v49 = vld [vmem:[%s0 + $0x18] sm:$0xff]
    %v50 = vld [vmem:[%s0 + $0x20] sm:$0xff]
    %v51 = vld [vmem:[%s0 + $0x28] sm:$0xff]
    %v52 = vld [vmem:[%s0 + $0x30] sm:$0xff]
    %v53 = vld [vmem:[%s0 + $0x38] sm:$0xff]
    %v54 = vld [vmem:[%s0 + $0x40] sm:$0xff]
    %v55 = vld [vmem:[%s0 + $0x48] sm:$0xff]
    %v56 = vld [vmem:[%s0 + $0x50] sm:$0xff]
    %v57 = vld [vmem:[%s0 + $0x58] sm:$0xff]
    %v58 = vld [vmem:[%s0 + $0x60] sm:$0xff]
    %v59 = vld [vmem:[%s0 + $0x68] sm:$0xff]
    %v60 = vld [vmem:[%s0 + $0x70] sm:$0xff]
    %v61 = vld [vmem:[%s0 + $0x78] sm:$0xff]
    %v62 = vld [vmem:[%s0 + $0x80] sm:$0xff]
    %v63 = vld [vmem:[%s0 + $0x88] sm:$0xff]
    %v64 = vld [vmem:[%s0 + $0x90] sm:$0xff]
    %v65 = vld [vmem:[%s0 + $0x98] sm:$0xff]
    %v66 = vld [vmem:[%s0 + $0xa0] sm:$0xff]
    %v67 = vld [vmem:[%s0 + $0xa8] sm:$0xff]
    %v68 = vld [vmem:[%s0 + $0xb0] sm:$0xff]
    %v69 = vld [vmem:[%s0 + $0xb8] sm:$0xff]
    %v70 = vld [vmem:[%s0 + $0xc0] sm:$0xff]
    %v71 = vld [vmem:[%s0 + $0xc8] sm:$0xff]
    %v72 = vld [vmem:[%s0 + $0xd0] sm:$0xff]
    %v73 = vld [vmem:[%s0 + $0xd8] sm:$0xff]
    %v74 = vld [vmem:[%s0 + $0xe0] sm:$0xff]
    %v75 = vld [vmem:[%s0 + $0xe8] sm:$0xff]
    %v76 = vld [vmem:[%s0 + $0xf0] sm:$0xff]
    %v77 = vld [vmem:[%s0 + $0xf8] sm:$0xff]
    %v78 = vld [vmem:[%s0 + $0x100] sm:$0xff]
    %v79 = vld [vmem:[%s0 + $0x108] sm:$0xff]
    %v80 = vld [vmem:[%s0 + $0x110] sm:$0xff]
    %v81 = vld [vmem:[%s0 + $0x118] sm:$0xff]
    %v82 = vld [vmem:[%s0 + $0x120] sm:$0xff]
    %v83 = vld [vmem:[%s0 + $0x128] sm:$0xff]
    %v84 = vld [vmem:[%s0 + $0x130] sm:$0xff]
    %v85 = vld [vmem:[%s0 + $0x138] sm:$0xff]
    %v86 = vld [vmem:[%s0 + $0x140] sm:$0xff]
    %v87 = vld [vmem:[%s0 + $0x148] sm:$0xff]
    %v88 = vld [vmem:[%s0 + $0x150] sm:$0xff]
    %v89 = vld [vmem:[%s0 + $0x158] sm:$0xff]
    %v90 = vld [vmem:[%s0 + $0x160] sm:$0xff]
    %v91 = vld [vmem:[%s0 + $0x168] sm:$0xff]
    %v92 = vld [vmem:[%s0 + $0x170] sm:$0xff]
    %v93 = vld [vmem:[%s0 + $0x178] sm:$0xff]
    %v94 = vld [vmem:[%s0 + $0x180] sm:$0xff]
    %v95 = vld [vmem:[%s0 + $0x188] sm:$0xff]
    %v96 = vld [vmem:[%s0 + $0x190] sm:$0xff]
    %v97 = vld [vmem:[%s0 + $0x198] sm:$0xff]
    %v98 = vld [vmem:[%s0 + $0x1a0] sm:$0xff]
    %v99 = vld [vmem:[%s0 + $0x1a8] sm:$0xff]
    %v100 = vld [vmem:[%s0 + $0x1b0] sm:$0xff]
    %v101 = vld [vmem:[%s0 + $0x1b8] sm:$0xff]
    %v102 = vld [vmem:[%s0 + $0x1c0] sm:$0xff]
    %v103 = vld [vmem:[%s0 + $0x1c8] sm:$0xff]
    %v104 = vld [vmem:[%s0 + $0x1d0] sm:$0xff]
    %v105 = vld [vmem:[%s0 + $0x1d8] sm:$0xff]
    %v106 = vld [vmem:[%s0 + $0x1e0] sm:$0xff]
    %v107 = vld [vmem:[%s0 + $0x1e8] sm:$0xff]
    %v108 = vld [vmem:[%s0 + $0x1f0] sm:$0xff]
    %v109 = vld [vmem:[%s0 + $0x1f8] sm:$0xff]
    %v110 = vld [vmem:[%s0 + $0x200] sm:$0xff]
    %v111 = vld [vmem:[%s0 + $0x208] sm:$0xff]
    %v112 = vld [vmem:[%s0 + $0x210] sm:$0xff]
    %v113 = vld [vmem:[%s0 + $0x218] sm:$0xff]
    %v114 = vld [vmem:[%s0 + $0x220] sm:$0xff]
    %v115 = vld [vmem:[%s0 + $0x228] sm:$0xff]
    %v116 = vld [vmem:[%s0 + $0x230] sm:$0xff]
    %v117 = vld [vmem:[%s0 + $0x238] sm:$0xff]
    %v118 = vld [vmem:[%s2] sm:$0x1]
    %v119 = vld [vmem:[%s2 + $0x1] sm:$0x1]
    %v120 = vld [vmem:[%s2 + $0x2] sm:$0x1]
    %v121 = vld [vmem:[%s2 + $0x3] sm:$0x1]
    %v122 = vld [vmem:[%s2 + $0x4] sm:$0x1]
    %v123 = vld [vmem:[%s2 + $0x5] sm:$0x1]
    %v124 = vld [vmem:[%s2 + $0x6] sm:$0x1]
    %126 = vset.pattern.permute.xlu0 0
    %127 = vperm.xlu0 %126, %v46
    %v128 = vpop.permute.xlu0 %127
    %131 = vset.pattern.permute.xlu0 0
    %132 = vperm.xlu0 %131, %v47
    %v133 = vpop.permute.xlu0 %132
    %136 = vset.pattern.permute.xlu0 0
    %137 = vperm.xlu0 %136, %v49
    %v138 = vpop.permute.xlu0 %137
    %141 = vset.pattern.permute.xlu0 0
    %142 = vperm.xlu0 %141, %v50
    %v143 = vpop.permute.xlu0 %142
    %146 = vset.pattern.permute.xlu0 0
    %147 = vperm.xlu0 %146, %v52
    %v148 = vpop.permute.xlu0 %147
    %151 = vset.pattern.permute.xlu0 0
    %152 = vperm.xlu0 %151, %v53
    %v153 = vpop.permute.xlu0 %152
    %156 = vset.pattern.permute.xlu0 0
    %157 = vperm.xlu0 %156, %v55
    %v158 = vpop.permute.xlu0 %157
    %161 = vset.pattern.permute.xlu0 0
    %162 = vperm.xlu0 %161, %v56
    %v163 = vpop.permute.xlu0 %162
    %166 = vset.pattern.permute.xlu0 0
    %167 = vperm.xlu0 %166, %v58
    %v168 = vpop.permute.xlu0 %167
    %171 = vset.pattern.permute.xlu0 0
    %172 = vperm.xlu0 %171, %v59
    %v173 = vpop.permute.xlu0 %172
    %176 = vset.pattern.permute.xlu0 0
    %177 = vperm.xlu0 %176, %v61
    %v178 = vpop.permute.xlu0 %177
    %181 = vset.pattern.permute.xlu0 0
    %182 = vperm.xlu0 %181, %v62
    %v183 = vpop.permute.xlu0 %182
    %186 = vset.pattern.permute.xlu0 0
    %187 = vperm.xlu0 %186, %v64
    %v188 = vpop.permute.xlu0 %187
    %191 = vset.pattern.permute.xlu0 0
    %192 = vperm.xlu0 %191, %v65
    %v193 = vpop.permute.xlu0 %192
    %196 = vset.pattern.permute.xlu0 0
    %197 = vperm.xlu0 %196, %v67
    %v198 = vpop.permute.xlu0 %197
    %201 = vset.pattern.permute.xlu0 0
    %202 = vperm.xlu0 %201, %v68
    %v203 = vpop.permute.xlu0 %202
    %206 = vset.pattern.permute.xlu0 0
    %207 = vperm.xlu0 %206, %v70
    %v208 = vpop.permute.xlu0 %207
    %211 = vset.pattern.permute.xlu0 0
    %212 = vperm.xlu0 %211, %v71
    %v213 = vpop.permute.xlu0 %212
    %216 = vset.pattern.permute.xlu0 0
    %217 = vperm.xlu0 %216, %v73
    %v218 = vpop.permute.xlu0 %217
    %221 = vset.pattern.permute.xlu0 0
    %222 = vperm.xlu0 %221, %v74
    %v223 = vpop.permute.xlu0 %222
    %226 = vset.pattern.permute.xlu0 0
    %227 = vperm.xlu0 %226, %v76
    %v228 = vpop.permute.xlu0 %227
    %231 = vset.pattern.permute.xlu0 0
    %232 = vperm.xlu0 %231, %v77
    %v233 = vpop.permute.xlu0 %232
    %236 = vset.pattern.permute.xlu0 0
    %237 = vperm.xlu0 %236, %v79
    %v238 = vpop.permute.xlu0 %237
    %241 = vset.pattern.permute.xlu0 0
    %242 = vperm.xlu0 %241, %v80
    %v243 = vpop.permute.xlu0 %242
    %246 = vset.pattern.permute.xlu0 0
    %247 = vperm.xlu0 %246, %v82
    %v248 = vpop.permute.xlu0 %247
    %251 = vset.pattern.permute.xlu0 0
    %252 = vperm.xlu0 %251, %v83
    %v253 = vpop.permute.xlu0 %252
    %256 = vset.pattern.permute.xlu0 0
    %257 = vperm.xlu0 %256, %v85
    %v258 = vpop.permute.xlu0 %257
    %261 = vset.pattern.permute.xlu0 0
    %262 = vperm.xlu0 %261, %v86
    %v263 = vpop.permute.xlu0 %262
    %266 = vset.pattern.permute.xlu0 0
    %267 = vperm.xlu0 %266, %v88
    %v268 = vpop.permute.xlu0 %267
    %271 = vset.pattern.permute.xlu0 0
    %272 = vperm.xlu0 %271, %v89
    %v273 = vpop.permute.xlu0 %272
    %276 = vset.pattern.permute.xlu0 0
    %277 = vperm.xlu0 %276, %v91
    %v278 = vpop.permute.xlu0 %277
    %281 = vset.pattern.permute.xlu0 0
    %282 = vperm.xlu0 %281, %v92
    %v283 = vpop.permute.xlu0 %282
    %286 = vset.pattern.permute.xlu0 0
    %287 = vperm.xlu0 %286, %v94
    %v288 = vpop.permute.xlu0 %287
    %291 = vset.pattern.permute.xlu0 0
    %292 = vperm.xlu0 %291, %v95
    %v293 = vpop.permute.xlu0 %292
    %296 = vset.pattern.permute.xlu0 0
    %297 = vperm.xlu0 %296, %v97
    %v298 = vpop.permute.xlu0 %297
    %301 = vset.pattern.permute.xlu0 0
    %302 = vperm.xlu0 %301, %v98
    %v303 = vpop.permute.xlu0 %302
    %306 = vset.pattern.permute.xlu0 0
    %307 = vperm.xlu0 %306, %v100
    %v308 = vpop.permute.xlu0 %307
    %311 = vset.pattern.permute.xlu0 0
    %312 = vperm.xlu0 %311, %v101
    %v313 = vpop.permute.xlu0 %312
    %316 = vset.pattern.permute.xlu0 0
    %317 = vperm.xlu0 %316, %v103
    %v318 = vpop.permute.xlu0 %317
    %321 = vset.pattern.permute.xlu0 0
    %322 = vperm.xlu0 %321, %v104
    %v323 = vpop.permute.xlu0 %322
    %326 = vset.pattern.permute.xlu0 0
    %327 = vperm.xlu0 %326, %v106
    %v328 = vpop.permute.xlu0 %327
    %331 = vset.pattern.permute.xlu0 0
    %332 = vperm.xlu0 %331, %v107
    %v333 = vpop.permute.xlu0 %332
    %336 = vset.pattern.permute.xlu0 0
    %337 = vperm.xlu0 %336, %v109
    %v338 = vpop.permute.xlu0 %337
    %341 = vset.pattern.permute.xlu0 0
    %342 = vperm.xlu0 %341, %v110
    %v343 = vpop.permute.xlu0 %342
    %346 = vset.pattern.permute.xlu0 0
    %347 = vperm.xlu0 %346, %v112
    %v348 = vpop.permute.xlu0 %347
    %351 = vset.pattern.permute.xlu0 0
    %352 = vperm.xlu0 %351, %v113
    %v353 = vpop.permute.xlu0 %352
    %356 = vset.pattern.permute.xlu0 0
    %357 = vperm.xlu0 %356, %v115
    %v358 = vpop.permute.xlu0 %357
    %361 = vset.pattern.permute.xlu0 0
    %362 = vperm.xlu0 %361, %v116
    %v363 = vpop.permute.xlu0 %362
    %v366 = vlaneseq
    %v367 = vshrl.u32 %v366, 7
    %v368 = vsub.s32 0, %v367
    %v369 = vrot.slane %v118, %v368
    %v371 = vmul.f32 %v128, %v369
    %v372 = vmul.f32 %v133, %v369
    %v373 = vmul.f32 %v138, %v369
    %v374 = vmul.f32 %v143, %v369
    %v375 = vmul.f32 %v148, %v369
    %v376 = vmul.f32 %v153, %v369
    %v377 = vmul.f32 %v158, %v369
    %v378 = vmul.f32 %v163, %v369
    %v379 = vmul.f32 %v168, %v369
    %v380 = vmul.f32 %v173, %v369
    %v381 = vmul.f32 %v178, %v369
    %v382 = vmul.f32 %v183, %v369
    %v383 = vmul.f32 %v188, %v369
    %v384 = vmul.f32 %v193, %v369
    %v385 = vmul.f32 %v198, %v369
    %v386 = vmul.f32 %v203, %v369
    %v387 = vmul.f32 %v208, %v369
    %v388 = vmul.f32 %v213, %v369
    %v389 = vmul.f32 %v218, %v369
    %v390 = vmul.f32 %v223, %v369
    %v391 = vmul.f32 %v228, %v369
    %v392 = vmul.f32 %v233, %v369
    %v393 = vmul.f32 %v238, %v369
    %v394 = vmul.f32 %v243, %v369
    %v395 = vmul.f32 %v248, %v369
    %v396 = vmul.f32 %v253, %v369
    %v397 = vmul.f32 %v258, %v369
    %v398 = vmul.f32 %v263, %v369
    %v399 = vmul.f32 %v268, %v369
    %v400 = vmul.f32 %v273, %v369
    %v401 = vmul.f32 %v278, %v369
    %v402 = vmul.f32 %v283, %v369
    %v403 = vmul.f32 %v288, %v369
    %v404 = vmul.f32 %v293, %v369
    %v405 = vmul.f32 %v298, %v369
    %v406 = vmul.f32 %v303, %v369
    %v407 = vmul.f32 %v308, %v369
    %v408 = vmul.f32 %v313, %v369
    %v409 = vmul.f32 %v318, %v369
    %v410 = vmul.f32 %v323, %v369
    %v411 = vmul.f32 %v328, %v369
    %v412 = vmul.f32 %v333, %v369
    %v413 = vmul.f32 %v338, %v369
    %v414 = vmul.f32 %v343, %v369
    %v415 = vmul.f32 %v348, %v369
    %v416 = vmul.f32 %v353, %v369
    %v417 = vmul.f32 %v358, %v369
    %v418 = vmul.f32 %v363, %v369
    %420 = vset.pattern.permute.xlu0 0
    %421 = vperm.xlu0 %420, %v48
    %v422 = vpop.permute.xlu0 %421
    %425 = vset.pattern.permute.xlu0 0
    %426 = vperm.xlu0 %425, %v51
    %v427 = vpop.permute.xlu0 %426
    %430 = vset.pattern.permute.xlu0 0
    %431 = vperm.xlu0 %430, %v54
    %v432 = vpop.permute.xlu0 %431
    %435 = vset.pattern.permute.xlu0 0
    %436 = vperm.xlu0 %435, %v57
    %v437 = vpop.permute.xlu0 %436
    %440 = vset.pattern.permute.xlu0 0
    %441 = vperm.xlu0 %440, %v60
    %v442 = vpop.permute.xlu0 %441
    %445 = vset.pattern.permute.xlu0 0
    %446 = vperm.xlu0 %445, %v63
    %v447 = vpop.permute.xlu0 %446
    %450 = vset.pattern.permute.xlu0 0
    %451 = vperm.xlu0 %450, %v66
    %v452 = vpop.permute.xlu0 %451
    %455 = vset.pattern.permute.xlu0 0
    %456 = vperm.xlu0 %455, %v69
    %v457 = vpop.permute.xlu0 %456
    %460 = vset.pattern.permute.xlu0 0
    %461 = vperm.xlu0 %460, %v72
    %v462 = vpop.permute.xlu0 %461
    %465 = vset.pattern.permute.xlu0 0
    %466 = vperm.xlu0 %465, %v75
    %v467 = vpop.permute.xlu0 %466
    %470 = vset.pattern.permute.xlu0 0
    %471 = vperm.xlu0 %470, %v78
    %v472 = vpop.permute.xlu0 %471
    %475 = vset.pattern.permute.xlu0 0
    %476 = vperm.xlu0 %475, %v81
    %v477 = vpop.permute.xlu0 %476
    %480 = vset.pattern.permute.xlu0 0
    %481 = vperm.xlu0 %480, %v84
    %v482 = vpop.permute.xlu0 %481
    %485 = vset.pattern.permute.xlu0 0
    %486 = vperm.xlu0 %485, %v87
    %v487 = vpop.permute.xlu0 %486
    %490 = vset.pattern.permute.xlu0 0
    %491 = vperm.xlu0 %490, %v90
    %v492 = vpop.permute.xlu0 %491
    %495 = vset.pattern.permute.xlu0 0
    %496 = vperm.xlu0 %495, %v93
    %v497 = vpop.permute.xlu0 %496
    %500 = vset.pattern.permute.xlu0 0
    %501 = vperm.xlu0 %500, %v96
    %v502 = vpop.permute.xlu0 %501
    %505 = vset.pattern.permute.xlu0 0
    %506 = vperm.xlu0 %505, %v99
    %v507 = vpop.permute.xlu0 %506
    %510 = vset.pattern.permute.xlu0 0
    %511 = vperm.xlu0 %510, %v102
    %v512 = vpop.permute.xlu0 %511
    %515 = vset.pattern.permute.xlu0 0
    %516 = vperm.xlu0 %515, %v105
    %v517 = vpop.permute.xlu0 %516
    %520 = vset.pattern.permute.xlu0 0
    %521 = vperm.xlu0 %520, %v108
    %v522 = vpop.permute.xlu0 %521
    %525 = vset.pattern.permute.xlu0 0
    %526 = vperm.xlu0 %525, %v111
    %v527 = vpop.permute.xlu0 %526
    %530 = vset.pattern.permute.xlu0 0
    %531 = vperm.xlu0 %530, %v114
    %v532 = vpop.permute.xlu0 %531
    %535 = vset.pattern.permute.xlu0 0
    %536 = vperm.xlu0 %535, %v117
    %v537 = vpop.permute.xlu0 %536
    %v540 = vlaneseq
    %v541 = vshrl.u32 %v540, 7
    %v542 = vsub.s32 0, %v541
    %v543 = vrot.slane %v119, %v542
    %v545 = vmul.f32 %v128, %v543
    %v546 = vmul.f32 %v133, %v543
    %v547 = vmul.f32 %v422, %v543
    %v548 = vmul.f32 %v138, %v543
    %v549 = vmul.f32 %v143, %v543
    %v550 = vmul.f32 %v427, %v543
    %v551 = vmul.f32 %v148, %v543
    %v552 = vmul.f32 %v153, %v543
    %v553 = vmul.f32 %v432, %v543
    %v554 = vmul.f32 %v158, %v543
    %v555 = vmul.f32 %v163, %v543
    %v556 = vmul.f32 %v437, %v543
    %v557 = vmul.f32 %v168, %v543
    %v558 = vmul.f32 %v173, %v543
    %v559 = vmul.f32 %v442, %v543
    %v560 = vmul.f32 %v178, %v543
    %v561 = vmul.f32 %v183, %v543
    %v562 = vmul.f32 %v447, %v543
    %v563 = vmul.f32 %v188, %v543
    %v564 = vmul.f32 %v193, %v543
    %v565 = vmul.f32 %v452, %v543
    %v566 = vmul.f32 %v198, %v543
    %v567 = vmul.f32 %v203, %v543
    %v568 = vmul.f32 %v457, %v543
    %v569 = vmul.f32 %v208, %v543
    %v570 = vmul.f32 %v213, %v543
    %v571 = vmul.f32 %v462, %v543
    %v572 = vmul.f32 %v218, %v543
    %v573 = vmul.f32 %v223, %v543
    %v574 = vmul.f32 %v467, %v543
    %v575 = vmul.f32 %v228, %v543
    %v576 = vmul.f32 %v233, %v543
    %v577 = vmul.f32 %v472, %v543
    %v578 = vmul.f32 %v238, %v543
    %v579 = vmul.f32 %v243, %v543
    %v580 = vmul.f32 %v477, %v543
    %v581 = vmul.f32 %v248, %v543
    %v582 = vmul.f32 %v253, %v543
    %v583 = vmul.f32 %v482, %v543
    %v584 = vmul.f32 %v258, %v543
    %v585 = vmul.f32 %v263, %v543
    %v586 = vmul.f32 %v487, %v543
    %v587 = vmul.f32 %v268, %v543
    %v588 = vmul.f32 %v273, %v543
    %v589 = vmul.f32 %v492, %v543
    %v590 = vmul.f32 %v278, %v543
    %v591 = vmul.f32 %v283, %v543
    %v592 = vmul.f32 %v497, %v543
    %v593 = vmul.f32 %v288, %v543
    %v594 = vmul.f32 %v293, %v543
    %v595 = vmul.f32 %v502, %v543
    %v596 = vmul.f32 %v298, %v543
    %v597 = vmul.f32 %v303, %v543
    %v598 = vmul.f32 %v507, %v543
    %v599 = vmul.f32 %v308, %v543
    %v600 = vmul.f32 %v313, %v543
    %v601 = vmul.f32 %v512, %v543
    %v602 = vmul.f32 %v318, %v543
    %v603 = vmul.f32 %v323, %v543
    %v604 = vmul.f32 %v517, %v543
    %v605 = vmul.f32 %v328, %v543
    %v606 = vmul.f32 %v333, %v543
    %v607 = vmul.f32 %v522, %v543
    %v608 = vmul.f32 %v338, %v543
    %v609 = vmul.f32 %v343, %v543
    %v610 = vmul.f32 %v527, %v543
    %v611 = vmul.f32 %v348, %v543
    %v612 = vmul.f32 %v353, %v543
    %v613 = vmul.f32 %v532, %v543
    %v614 = vmul.f32 %v358, %v543
    %v615 = vmul.f32 %v363, %v543
    %v616 = vmul.f32 %v537, %v543
    %vm689 = vcmask 1046528
    %v690 = vrot.slane %v545, 1
    %v691 = vrot.slane %v546, 1
    %v692 = vsel %vm689, %v690, %v691
    %v693 = vrot.slane %v547, 1
    %v694 = vsel %vm689, %v691, %v693
    %v695 = vrot.slane %v548, 1
    %v696 = vrot.slane %v549, 1
    %v697 = vsel %vm689, %v695, %v696
    %v698 = vrot.slane %v550, 1
    %v699 = vsel %vm689, %v696, %v698
    %v700 = vrot.slane %v551, 1
    %v701 = vrot.slane %v552, 1
    %v702 = vsel %vm689, %v700, %v701
    %v703 = vrot.slane %v553, 1
    %v704 = vsel %vm689, %v701, %v703
    %v705 = vrot.slane %v554, 1
    %v706 = vrot.slane %v555, 1
    %v707 = vsel %vm689, %v705, %v706
    %v708 = vrot.slane %v556, 1
    %v709 = vsel %vm689, %v706, %v708
    %v710 = vrot.slane %v557, 1
    %v711 = vrot.slane %v558, 1
    %v712 = vsel %vm689, %v710, %v711
    %v713 = vrot.slane %v559, 1
    %v714 = vsel %vm689, %v711, %v713
    %v715 = vrot.slane %v560, 1
    %v716 = vrot.slane %v561, 1
    %v717 = vsel %vm689, %v715, %v716
    %v718 = vrot.slane %v562, 1
    %v719 = vsel %vm689, %v716, %v718
    %v720 = vrot.slane %v563, 1
    %v721 = vrot.slane %v564, 1
    %v722 = vsel %vm689, %v720, %v721
    %v723 = vrot.slane %v565, 1
    %v724 = vsel %vm689, %v721, %v723
    %v725 = vrot.slane %v566, 1
    %v726 = vrot.slane %v567, 1
    %v727 = vsel %vm689, %v725, %v726
    %v728 = vrot.slane %v568, 1
    %v729 = vsel %vm689, %v726, %v728
    %v730 = vrot.slane %v569, 1
    %v731 = vrot.slane %v570, 1
    %v732 = vsel %vm689, %v730, %v731
    %v733 = vrot.slane %v571, 1
    %v734 = vsel %vm689, %v731, %v733
    %v735 = vrot.slane %v572, 1
    %v736 = vrot.slane %v573, 1
    %v737 = vsel %vm689, %v735, %v736
    %v738 = vrot.slane %v574, 1
    %v739 = vsel %vm689, %v736, %v738
    %v740 = vrot.slane %v575, 1
    %v741 = vrot.slane %v576, 1
    %v742 = vsel %vm689, %v740, %v741
    %v743 = vrot.slane %v577, 1
    %v744 = vsel %vm689, %v741, %v743
    %v745 = vrot.slane %v578, 1
    %v746 = vrot.slane %v579, 1
    %v747 = vsel %vm689, %v745, %v746
    %v748 = vrot.slane %v580, 1
    %v749 = vsel %vm689, %v746, %v748
    %v750 = vrot.slane %v581, 1
    %v751 = vrot.slane %v582, 1
    %v752 = vsel %vm689, %v750, %v751
    %v753 = vrot.slane %v583, 1
    %v754 = vsel %vm689, %v751, %v753
    %v755 = vrot.slane %v584, 1
    %v756 = vrot.slane %v585, 1
    %v757 = vsel %vm689, %v755, %v756
    %v758 = vrot.slane %v586, 1
    %v759 = vsel %vm689, %v756, %v758
    %v760 = vrot.slane %v587, 1
    %v761 = vrot.slane %v588, 1
    %v762 = vsel %vm689, %v760, %v761
    %v763 = vrot.slane %v589, 1
    %v764 = vsel %vm689, %v761, %v763
    %v765 = vrot.slane %v590, 1
    %v766 = vrot.slane %v591, 1
    %v767 = vsel %vm689, %v765, %v766
    %v768 = vrot.slane %v592, 1
    %v769 = vsel %vm689, %v766, %v768
    %v770 = vrot.slane %v593, 1
    %v771 = vrot.slane %v594, 1
    %v772 = vsel %vm689, %v770, %v771
    %v773 = vrot.slane %v595, 1
    %v774 = vsel %vm689, %v771, %v773
    %v775 = vrot.slane %v596, 1
    %v776 = vrot.slane %v597, 1
    %v777 = vsel %vm689, %v775, %v776
    %v778 = vrot.slane %v598, 1
    %v779 = vsel %vm689, %v776, %v778
    %v780 = vrot.slane %v599, 1
    %v781 = vrot.slane %v600, 1
    %v782 = vsel %vm689, %v780, %v781
    %v783 = vrot.slane %v601, 1
    %v784 = vsel %vm689, %v781, %v783
    %v785 = vrot.slane %v602, 1
    %v786 = vrot.slane %v603, 1
    %v787 = vsel %vm689, %v785, %v786
    %v788 = vrot.slane %v604, 1
    %v789 = vsel %vm689, %v786, %v788
    %v790 = vrot.slane %v605, 1
    %v791 = vrot.slane %v606, 1
    %v792 = vsel %vm689, %v790, %v791
    %v793 = vrot.slane %v607, 1
    %v794 = vsel %vm689, %v791, %v793
    %v795 = vrot.slane %v608, 1
    %v796 = vrot.slane %v609, 1
    %v797 = vsel %vm689, %v795, %v796
    %v798 = vrot.slane %v610, 1
    %v799 = vsel %vm689, %v796, %v798
    %v800 = vrot.slane %v611, 1
    %v801 = vrot.slane %v612, 1
    %v802 = vsel %vm689, %v800, %v801
    %v803 = vrot.slane %v613, 1
    %v804 = vsel %vm689, %v801, %v803
    %v805 = vrot.slane %v614, 1
    %v806 = vrot.slane %v615, 1
    %v807 = vsel %vm689, %v805, %v806
    %v808 = vrot.slane %v616, 1
    %v809 = vsel %vm689, %v806, %v808
    %v858 = vadd.f32 %v371, %v692
    %v859 = vadd.f32 %v372, %v694
    %v860 = vadd.f32 %v373, %v697
    %v861 = vadd.f32 %v374, %v699
    %v862 = vadd.f32 %v375, %v702
    %v863 = vadd.f32 %v376, %v704
    %v864 = vadd.f32 %v377, %v707
    %v865 = vadd.f32 %v378, %v709
    %v866 = vadd.f32 %v379, %v712
    %v867 = vadd.f32 %v380, %v714
    %v868 = vadd.f32 %v381, %v717
    %v869 = vadd.f32 %v382, %v719
    %v870 = vadd.f32 %v383, %v722
    %v871 = vadd.f32 %v384, %v724
    %v872 = vadd.f32 %v385, %v727
    %v873 = vadd.f32 %v386, %v729
    %v874 = vadd.f32 %v387, %v732
    %v875 = vadd.f32 %v388, %v734
    %v876 = vadd.f32 %v389, %v737
    %v877 = vadd.f32 %v390, %v739
    %v878 = vadd.f32 %v391, %v742
    %v879 = vadd.f32 %v392, %v744
    %v880 = vadd.f32 %v393, %v747
    %v881 = vadd.f32 %v394, %v749
    %v882 = vadd.f32 %v395, %v752
    %v883 = vadd.f32 %v396, %v754
    %v884 = vadd.f32 %v397, %v757
    %v885 = vadd.f32 %v398, %v759
    %v886 = vadd.f32 %v399, %v762
    %v887 = vadd.f32 %v400, %v764
    %v888 = vadd.f32 %v401, %v767
    %v889 = vadd.f32 %v402, %v769
    %v890 = vadd.f32 %v403, %v772
    %v891 = vadd.f32 %v404, %v774
    %v892 = vadd.f32 %v405, %v777
    %v893 = vadd.f32 %v406, %v779
    %v894 = vadd.f32 %v407, %v782
    %v895 = vadd.f32 %v408, %v784
    %v896 = vadd.f32 %v409, %v787
    %v897 = vadd.f32 %v410, %v789
    %v898 = vadd.f32 %v411, %v792
    %v899 = vadd.f32 %v412, %v794
    %v900 = vadd.f32 %v413, %v797
    %v901 = vadd.f32 %v414, %v799
    %v902 = vadd.f32 %v415, %v802
    %v903 = vadd.f32 %v416, %v804
    %v904 = vadd.f32 %v417, %v807
    %v905 = vadd.f32 %v418, %v809
    %v907 = vlaneseq
    %v908 = vshrl.u32 %v907, 7
    %v909 = vsub.s32 0, %v908
    %v910 = vrot.slane %v120, %v909
    %v912 = vmul.f32 %v128, %v910
    %v913 = vmul.f32 %v133, %v910
    %v914 = vmul.f32 %v422, %v910
    %v915 = vmul.f32 %v138, %v910
    %v916 = vmul.f32 %v143, %v910
    %v917 = vmul.f32 %v427, %v910
    %v918 = vmul.f32 %v148, %v910
    %v919 = vmul.f32 %v153, %v910
    %v920 = vmul.f32 %v432, %v910
    %v921 = vmul.f32 %v158, %v910
    %v922 = vmul.f32 %v163, %v910
    %v923 = vmul.f32 %v437, %v910
    %v924 = vmul.f32 %v168, %v910
    %v925 = vmul.f32 %v173, %v910
    %v926 = vmul.f32 %v442, %v910
    %v927 = vmul.f32 %v178, %v910
    %v928 = vmul.f32 %v183, %v910
    %v929 = vmul.f32 %v447, %v910
    %v930 = vmul.f32 %v188, %v910
    %v931 = vmul.f32 %v193, %v910
    %v932 = vmul.f32 %v452, %v910
    %v933 = vmul.f32 %v198, %v910
    %v934 = vmul.f32 %v203, %v910
    %v935 = vmul.f32 %v457, %v910
    %v936 = vmul.f32 %v208, %v910
    %v937 = vmul.f32 %v213, %v910
    %v938 = vmul.f32 %v462, %v910
    %v939 = vmul.f32 %v218, %v910
    %v940 = vmul.f32 %v223, %v910
    %v941 = vmul.f32 %v467, %v910
    %v942 = vmul.f32 %v228, %v910
    %v943 = vmul.f32 %v233, %v910
    %v944 = vmul.f32 %v472, %v910
    %v945 = vmul.f32 %v238, %v910
    %v946 = vmul.f32 %v243, %v910
    %v947 = vmul.f32 %v477, %v910
    %v948 = vmul.f32 %v248, %v910
    %v949 = vmul.f32 %v253, %v910
    %v950 = vmul.f32 %v482, %v910
    %v951 = vmul.f32 %v258, %v910
    %v952 = vmul.f32 %v263, %v910
    %v953 = vmul.f32 %v487, %v910
    %v954 = vmul.f32 %v268, %v910
    %v955 = vmul.f32 %v273, %v910
    %v956 = vmul.f32 %v492, %v910
    %v957 = vmul.f32 %v278, %v910
    %v958 = vmul.f32 %v283, %v910
    %v959 = vmul.f32 %v497, %v910
    %v960 = vmul.f32 %v288, %v910
    %v961 = vmul.f32 %v293, %v910
    %v962 = vmul.f32 %v502, %v910
    %v963 = vmul.f32 %v298, %v910
    %v964 = vmul.f32 %v303, %v910
    %v965 = vmul.f32 %v507, %v910
    %v966 = vmul.f32 %v308, %v910
    %v967 = vmul.f32 %v313, %v910
    %v968 = vmul.f32 %v512, %v910
    %v969 = vmul.f32 %v318, %v910
    %v970 = vmul.f32 %v323, %v910
    %v971 = vmul.f32 %v517, %v910
    %v972 = vmul.f32 %v328, %v910
    %v973 = vmul.f32 %v333, %v910
    %v974 = vmul.f32 %v522, %v910
    %v975 = vmul.f32 %v338, %v910
    %v976 = vmul.f32 %v343, %v910
    %v977 = vmul.f32 %v527, %v910
    %v978 = vmul.f32 %v348, %v910
    %v979 = vmul.f32 %v353, %v910
    %v980 = vmul.f32 %v532, %v910
    %v981 = vmul.f32 %v358, %v910
    %v982 = vmul.f32 %v363, %v910
    %v983 = vmul.f32 %v537, %v910
    %vm1056 = vcmask 1045504
    %v1057 = vrot.slane %v912, 2
    %v1058 = vrot.slane %v913, 2
    %v1059 = vsel %vm1056, %v1057, %v1058
    %v1060 = vrot.slane %v914, 2
    %v1061 = vsel %vm1056, %v1058, %v1060
    %v1062 = vrot.slane %v915, 2
    %v1063 = vrot.slane %v916, 2
    %v1064 = vsel %vm1056, %v1062, %v1063
    %v1065 = vrot.slane %v917, 2
    %v1066 = vsel %vm1056, %v1063, %v1065
    %v1067 = vrot.slane %v918, 2
    %v1068 = vrot.slane %v919, 2
    %v1069 = vsel %vm1056, %v1067, %v1068
    %v1070 = vrot.slane %v920, 2
    %v1071 = vsel %vm1056, %v1068, %v1070
    %v1072 = vrot.slane %v921, 2
    %v1073 = vrot.slane %v922, 2
    %v1074 = vsel %vm1056, %v1072, %v1073
    %v1075 = vrot.slane %v923, 2
    %v1076 = vsel %vm1056, %v1073, %v1075
    %v1077 = vrot.slane %v924, 2
    %v1078 = vrot.slane %v925, 2
    %v1079 = vsel %vm1056, %v1077, %v1078
    %v1080 = vrot.slane %v926, 2
    %v1081 = vsel %vm1056, %v1078, %v1080
    %v1082 = vrot.slane %v927, 2
    %v1083 = vrot.slane %v928, 2
    %v1084 = vsel %vm1056, %v1082, %v1083
    %v1085 = vrot.slane %v929, 2
    %v1086 = vsel %vm1056, %v1083, %v1085
    %v1087 = vrot.slane %v930, 2
    %v1088 = vrot.slane %v931, 2
    %v1089 = vsel %vm1056, %v1087, %v1088
    %v1090 = vrot.slane %v932, 2
    %v1091 = vsel %vm1056, %v1088, %v1090
    %v1092 = vrot.slane %v933, 2
    %v1093 = vrot.slane %v934, 2
    %v1094 = vsel %vm1056, %v1092, %v1093
    %v1095 = vrot.slane %v935, 2
    %v1096 = vsel %vm1056, %v1093, %v1095
    %v1097 = vrot.slane %v936, 2
    %v1098 = vrot.slane %v937, 2
    %v1099 = vsel %vm1056, %v1097, %v1098
    %v1100 = vrot.slane %v938, 2
    %v1101 = vsel %vm1056, %v1098, %v1100
    %v1102 = vrot.slane %v939, 2
    %v1103 = vrot.slane %v940, 2
    %v1104 = vsel %vm1056, %v1102, %v1103
    %v1105 = vrot.slane %v941, 2
    %v1106 = vsel %vm1056, %v1103, %v1105
    %v1107 = vrot.slane %v942, 2
    %v1108 = vrot.slane %v943, 2
    %v1109 = vsel %vm1056, %v1107, %v1108
    %v1110 = vrot.slane %v944, 2
    %v1111 = vsel %vm1056, %v1108, %v1110
    %v1112 = vrot.slane %v945, 2
    %v1113 = vrot.slane %v946, 2
    %v1114 = vsel %vm1056, %v1112, %v1113
    %v1115 = vrot.slane %v947, 2
    %v1116 = vsel %vm1056, %v1113, %v1115
    %v1117 = vrot.slane %v948, 2
    %v1118 = vrot.slane %v949, 2
    %v1119 = vsel %vm1056, %v1117, %v1118
    %v1120 = vrot.slane %v950, 2
    %v1121 = vsel %vm1056, %v1118, %v1120
    %v1122 = vrot.slane %v951, 2
    %v1123 = vrot.slane %v952, 2
    %v1124 = vsel %vm1056, %v1122, %v1123
    %v1125 = vrot.slane %v953, 2
    %v1126 = vsel %vm1056, %v1123, %v1125
    %v1127 = vrot.slane %v954, 2
    %v1128 = vrot.slane %v955, 2
    %v1129 = vsel %vm1056, %v1127, %v1128
    %v1130 = vrot.slane %v956, 2
    %v1131 = vsel %vm1056, %v1128, %v1130
    %v1132 = vrot.slane %v957, 2
    %v1133 = vrot.slane %v958, 2
    %v1134 = vsel %vm1056, %v1132, %v1133
    %v1135 = vrot.slane %v959, 2
    %v1136 = vsel %vm1056, %v1133, %v1135
    %v1137 = vrot.slane %v960, 2
    %v1138 = vrot.slane %v961, 2
    %v1139 = vsel %vm1056, %v1137, %v1138
    %v1140 = vrot.slane %v962, 2
    %v1141 = vsel %vm1056, %v1138, %v1140
    %v1142 = vrot.slane %v963, 2
    %v1143 = vrot.slane %v964, 2
    %v1144 = vsel %vm1056, %v1142, %v1143
    %v1145 = vrot.slane %v965, 2
    %v1146 = vsel %vm1056, %v1143, %v1145
    %v1147 = vrot.slane %v966, 2
    %v1148 = vrot.slane %v967, 2
    %v1149 = vsel %vm1056, %v1147, %v1148
    %v1150 = vrot.slane %v968, 2
    %v1151 = vsel %vm1056, %v1148, %v1150
    %v1152 = vrot.slane %v969, 2
    %v1153 = vrot.slane %v970, 2
    %v1154 = vsel %vm1056, %v1152, %v1153
    %v1155 = vrot.slane %v971, 2
    %v1156 = vsel %vm1056, %v1153, %v1155
    %v1157 = vrot.slane %v972, 2
    %v1158 = vrot.slane %v973, 2
    %v1159 = vsel %vm1056, %v1157, %v1158
    %v1160 = vrot.slane %v974, 2
    %v1161 = vsel %vm1056, %v1158, %v1160
    %v1162 = vrot.slane %v975, 2
    %v1163 = vrot.slane %v976, 2
    %v1164 = vsel %vm1056, %v1162, %v1163
    %v1165 = vrot.slane %v977, 2
    %v1166 = vsel %vm1056, %v1163, %v1165
    %v1167 = vrot.slane %v978, 2
    %v1168 = vrot.slane %v979, 2
    %v1169 = vsel %vm1056, %v1167, %v1168
    %v1170 = vrot.slane %v980, 2
    %v1171 = vsel %vm1056, %v1168, %v1170
    %v1172 = vrot.slane %v981, 2
    %v1173 = vrot.slane %v982, 2
    %v1174 = vsel %vm1056, %v1172, %v1173
    %v1175 = vrot.slane %v983, 2
    %v1176 = vsel %vm1056, %v1173, %v1175
    %v1225 = vadd.f32 %v858, %v1059
    %v1226 = vadd.f32 %v859, %v1061
    %v1227 = vadd.f32 %v860, %v1064
    %v1228 = vadd.f32 %v861, %v1066
    %v1229 = vadd.f32 %v862, %v1069
    %v1230 = vadd.f32 %v863, %v1071
    %v1231 = vadd.f32 %v864, %v1074
    %v1232 = vadd.f32 %v865, %v1076
    %v1233 = vadd.f32 %v866, %v1079
    %v1234 = vadd.f32 %v867, %v1081
    %v1235 = vadd.f32 %v868, %v1084
    %v1236 = vadd.f32 %v869, %v1086
    %v1237 = vadd.f32 %v870, %v1089
    %v1238 = vadd.f32 %v871, %v1091
    %v1239 = vadd.f32 %v872, %v1094
    %v1240 = vadd.f32 %v873, %v1096
    %v1241 = vadd.f32 %v874, %v1099
    %v1242 = vadd.f32 %v875, %v1101
    %v1243 = vadd.f32 %v876, %v1104
    %v1244 = vadd.f32 %v877, %v1106
    %v1245 = vadd.f32 %v878, %v1109
    %v1246 = vadd.f32 %v879, %v1111
    %v1247 = vadd.f32 %v880, %v1114
    %v1248 = vadd.f32 %v881, %v1116
    %v1249 = vadd.f32 %v882, %v1119
    %v1250 = vadd.f32 %v883, %v1121
    %v1251 = vadd.f32 %v884, %v1124
    %v1252 = vadd.f32 %v885, %v1126
    %v1253 = vadd.f32 %v886, %v1129
    %v1254 = vadd.f32 %v887, %v1131
    %v1255 = vadd.f32 %v888, %v1134
    %v1256 = vadd.f32 %v889, %v1136
    %v1257 = vadd.f32 %v890, %v1139
    %v1258 = vadd.f32 %v891, %v1141
    %v1259 = vadd.f32 %v892, %v1144
    %v1260 = vadd.f32 %v893, %v1146
    %v1261 = vadd.f32 %v894, %v1149
    %v1262 = vadd.f32 %v895, %v1151
    %v1263 = vadd.f32 %v896, %v1154
    %v1264 = vadd.f32 %v897, %v1156
    %v1265 = vadd.f32 %v898, %v1159
    %v1266 = vadd.f32 %v899, %v1161
    %v1267 = vadd.f32 %v900, %v1164
    %v1268 = vadd.f32 %v901, %v1166
    %v1269 = vadd.f32 %v902, %v1169
    %v1270 = vadd.f32 %v903, %v1171
    %v1271 = vadd.f32 %v904, %v1174
    %v1272 = vadd.f32 %v905, %v1176
    %v1274 = vlaneseq
    %v1275 = vshrl.u32 %v1274, 7
    %v1276 = vsub.s32 0, %v1275
    %v1277 = vrot.slane %v121, %v1276
    %v1279 = vmul.f32 %v128, %v1277
    %v1280 = vmul.f32 %v133, %v1277
    %v1281 = vmul.f32 %v422, %v1277
    %v1282 = vmul.f32 %v138, %v1277
    %v1283 = vmul.f32 %v143, %v1277
    %v1284 = vmul.f32 %v427, %v1277
    %v1285 = vmul.f32 %v148, %v1277
    %v1286 = vmul.f32 %v153, %v1277
    %v1287 = vmul.f32 %v432, %v1277
    %v1288 = vmul.f32 %v158, %v1277
    %v1289 = vmul.f32 %v163, %v1277
    %v1290 = vmul.f32 %v437, %v1277
    %v1291 = vmul.f32 %v168, %v1277
    %v1292 = vmul.f32 %v173, %v1277
    %v1293 = vmul.f32 %v442, %v1277
    %v1294 = vmul.f32 %v178, %v1277
    %v1295 = vmul.f32 %v183, %v1277
    %v1296 = vmul.f32 %v447, %v1277
    %v1297 = vmul.f32 %v188, %v1277
    %v1298 = vmul.f32 %v193, %v1277
    %v1299 = vmul.f32 %v452, %v1277
    %v1300 = vmul.f32 %v198, %v1277
    %v1301 = vmul.f32 %v203, %v1277
    %v1302 = vmul.f32 %v457, %v1277
    %v1303 = vmul.f32 %v208, %v1277
    %v1304 = vmul.f32 %v213, %v1277
    %v1305 = vmul.f32 %v462, %v1277
    %v1306 = vmul.f32 %v218, %v1277
    %v1307 = vmul.f32 %v223, %v1277
    %v1308 = vmul.f32 %v467, %v1277
    %v1309 = vmul.f32 %v228, %v1277
    %v1310 = vmul.f32 %v233, %v1277
    %v1311 = vmul.f32 %v472, %v1277
    %v1312 = vmul.f32 %v238, %v1277
    %v1313 = vmul.f32 %v243, %v1277
    %v1314 = vmul.f32 %v477, %v1277
    %v1315 = vmul.f32 %v248, %v1277
    %v1316 = vmul.f32 %v253, %v1277
    %v1317 = vmul.f32 %v482, %v1277
    %v1318 = vmul.f32 %v258, %v1277
    %v1319 = vmul.f32 %v263, %v1277
    %v1320 = vmul.f32 %v487, %v1277
    %v1321 = vmul.f32 %v268, %v1277
    %v1322 = vmul.f32 %v273, %v1277
    %v1323 = vmul.f32 %v492, %v1277
    %v1324 = vmul.f32 %v278, %v1277
    %v1325 = vmul.f32 %v283, %v1277
    %v1326 = vmul.f32 %v497, %v1277
    %v1327 = vmul.f32 %v288, %v1277
    %v1328 = vmul.f32 %v293, %v1277
    %v1329 = vmul.f32 %v502, %v1277
    %v1330 = vmul.f32 %v298, %v1277
    %v1331 = vmul.f32 %v303, %v1277
    %v1332 = vmul.f32 %v507, %v1277
    %v1333 = vmul.f32 %v308, %v1277
    %v1334 = vmul.f32 %v313, %v1277
    %v1335 = vmul.f32 %v512, %v1277
    %v1336 = vmul.f32 %v318, %v1277
    %v1337 = vmul.f32 %v323, %v1277
    %v1338 = vmul.f32 %v517, %v1277
    %v1339 = vmul.f32 %v328, %v1277
    %v1340 = vmul.f32 %v333, %v1277
    %v1341 = vmul.f32 %v522, %v1277
    %v1342 = vmul.f32 %v338, %v1277
    %v1343 = vmul.f32 %v343, %v1277
    %v1344 = vmul.f32 %v527, %v1277
    %v1345 = vmul.f32 %v348, %v1277
    %v1346 = vmul.f32 %v353, %v1277
    %v1347 = vmul.f32 %v532, %v1277
    %v1348 = vmul.f32 %v358, %v1277
    %v1349 = vmul.f32 %v363, %v1277
    %v1350 = vmul.f32 %v537, %v1277
    %vm1423 = vcmask 1044480
    %v1424 = vrot.slane %v1279, 3
    %v1425 = vrot.slane %v1280, 3
    %v1426 = vsel %vm1423, %v1424, %v1425
    %v1427 = vrot.slane %v1281, 3
    %v1428 = vsel %vm1423, %v1425, %v1427
    %v1429 = vrot.slane %v1282, 3
    %v1430 = vrot.slane %v1283, 3
    %v1431 = vsel %vm1423, %v1429, %v1430
    %v1432 = vrot.slane %v1284, 3
    %v1433 = vsel %vm1423, %v1430, %v1432
    %v1434 = vrot.slane %v1285, 3
    %v1435 = vrot.slane %v1286, 3
    %v1436 = vsel %vm1423, %v1434, %v1435
    %v1437 = vrot.slane %v1287, 3
    %v1438 = vsel %vm1423, %v1435, %v1437
    %v1439 = vrot.slane %v1288, 3
    %v1440 = vrot.slane %v1289, 3
    %v1441 = vsel %vm1423, %v1439, %v1440
    %v1442 = vrot.slane %v1290, 3
    %v1443 = vsel %vm1423, %v1440, %v1442
    %v1444 = vrot.slane %v1291, 3
    %v1445 = vrot.slane %v1292, 3
    %v1446 = vsel %vm1423, %v1444, %v1445
    %v1447 = vrot.slane %v1293, 3
    %v1448 = vsel %vm1423, %v1445, %v1447
    %v1449 = vrot.slane %v1294, 3
    %v1450 = vrot.slane %v1295, 3
    %v1451 = vsel %vm1423, %v1449, %v1450
    %v1452 = vrot.slane %v1296, 3
    %v1453 = vsel %vm1423, %v1450, %v1452
    %v1454 = vrot.slane %v1297, 3
    %v1455 = vrot.slane %v1298, 3
    %v1456 = vsel %vm1423, %v1454, %v1455
    %v1457 = vrot.slane %v1299, 3
    %v1458 = vsel %vm1423, %v1455, %v1457
    %v1459 = vrot.slane %v1300, 3
    %v1460 = vrot.slane %v1301, 3
    %v1461 = vsel %vm1423, %v1459, %v1460
    %v1462 = vrot.slane %v1302, 3
    %v1463 = vsel %vm1423, %v1460, %v1462
    %v1464 = vrot.slane %v1303, 3
    %v1465 = vrot.slane %v1304, 3
    %v1466 = vsel %vm1423, %v1464, %v1465
    %v1467 = vrot.slane %v1305, 3
    %v1468 = vsel %vm1423, %v1465, %v1467
    %v1469 = vrot.slane %v1306, 3
    %v1470 = vrot.slane %v1307, 3
    %v1471 = vsel %vm1423, %v1469, %v1470
    %v1472 = vrot.slane %v1308, 3
    %v1473 = vsel %vm1423, %v1470, %v1472
    %v1474 = vrot.slane %v1309, 3
    %v1475 = vrot.slane %v1310, 3
    %v1476 = vsel %vm1423, %v1474, %v1475
    %v1477 = vrot.slane %v1311, 3
    %v1478 = vsel %vm1423, %v1475, %v1477
    %v1479 = vrot.slane %v1312, 3
    %v1480 = vrot.slane %v1313, 3
    %v1481 = vsel %vm1423, %v1479, %v1480
    %v1482 = vrot.slane %v1314, 3
    %v1483 = vsel %vm1423, %v1480, %v1482
    %v1484 = vrot.slane %v1315, 3
    %v1485 = vrot.slane %v1316, 3
    %v1486 = vsel %vm1423, %v1484, %v1485
    %v1487 = vrot.slane %v1317, 3
    %v1488 = vsel %vm1423, %v1485, %v1487
    %v1489 = vrot.slane %v1318, 3
    %v1490 = vrot.slane %v1319, 3
    %v1491 = vsel %vm1423, %v1489, %v1490
    %v1492 = vrot.slane %v1320, 3
    %v1493 = vsel %vm1423, %v1490, %v1492
    %v1494 = vrot.slane %v1321, 3
    %v1495 = vrot.slane %v1322, 3
    %v1496 = vsel %vm1423, %v1494, %v1495
    %v1497 = vrot.slane %v1323, 3
    %v1498 = vsel %vm1423, %v1495, %v1497
    %v1499 = vrot.slane %v1324, 3
    %v1500 = vrot.slane %v1325, 3
    %v1501 = vsel %vm1423, %v1499, %v1500
    %v1502 = vrot.slane %v1326, 3
    %v1503 = vsel %vm1423, %v1500, %v1502
    %v1504 = vrot.slane %v1327, 3
    %v1505 = vrot.slane %v1328, 3
    %v1506 = vsel %vm1423, %v1504, %v1505
    %v1507 = vrot.slane %v1329, 3
    %v1508 = vsel %vm1423, %v1505, %v1507
    %v1509 = vrot.slane %v1330, 3
    %v1510 = vrot.slane %v1331, 3
    %v1511 = vsel %vm1423, %v1509, %v1510
    %v1512 = vrot.slane %v1332, 3
    %v1513 = vsel %vm1423, %v1510, %v1512
    %v1514 = vrot.slane %v1333, 3
    %v1515 = vrot.slane %v1334, 3
    %v1516 = vsel %vm1423, %v1514, %v1515
    %v1517 = vrot.slane %v1335, 3
    %v1518 = vsel %vm1423, %v1515, %v1517
    %v1519 = vrot.slane %v1336, 3
    %v1520 = vrot.slane %v1337, 3
    %v1521 = vsel %vm1423, %v1519, %v1520
    %v1522 = vrot.slane %v1338, 3
    %v1523 = vsel %vm1423, %v1520, %v1522
    %v1524 = vrot.slane %v1339, 3
    %v1525 = vrot.slane %v1340, 3
    %v1526 = vsel %vm1423, %v1524, %v1525
    %v1527 = vrot.slane %v1341, 3
    %v1528 = vsel %vm1423, %v1525, %v1527
    %v1529 = vrot.slane %v1342, 3
    %v1530 = vrot.slane %v1343, 3
    %v1531 = vsel %vm1423, %v1529, %v1530
    %v1532 = vrot.slane %v1344, 3
    %v1533 = vsel %vm1423, %v1530, %v1532
    %v1534 = vrot.slane %v1345, 3
    %v1535 = vrot.slane %v1346, 3
    %v1536 = vsel %vm1423, %v1534, %v1535
    %v1537 = vrot.slane %v1347, 3
    %v1538 = vsel %vm1423, %v1535, %v1537
    %v1539 = vrot.slane %v1348, 3
    %v1540 = vrot.slane %v1349, 3
    %v1541 = vsel %vm1423, %v1539, %v1540
    %v1542 = vrot.slane %v1350, 3
    %v1543 = vsel %vm1423, %v1540, %v1542
    %v1592 = vadd.f32 %v1225, %v1426
    %v1593 = vadd.f32 %v1226, %v1428
    %v1594 = vadd.f32 %v1227, %v1431
    %v1595 = vadd.f32 %v1228, %v1433
    %v1596 = vadd.f32 %v1229, %v1436
    %v1597 = vadd.f32 %v1230, %v1438
    %v1598 = vadd.f32 %v1231, %v1441
    %v1599 = vadd.f32 %v1232, %v1443
    %v1600 = vadd.f32 %v1233, %v1446
    %v1601 = vadd.f32 %v1234, %v1448
    %v1602 = vadd.f32 %v1235, %v1451
    %v1603 = vadd.f32 %v1236, %v1453
    %v1604 = vadd.f32 %v1237, %v1456
    %v1605 = vadd.f32 %v1238, %v1458
    %v1606 = vadd.f32 %v1239, %v1461
    %v1607 = vadd.f32 %v1240, %v1463
    %v1608 = vadd.f32 %v1241, %v1466
    %v1609 = vadd.f32 %v1242, %v1468
    %v1610 = vadd.f32 %v1243, %v1471
    %v1611 = vadd.f32 %v1244, %v1473
    %v1612 = vadd.f32 %v1245, %v1476
    %v1613 = vadd.f32 %v1246, %v1478
    %v1614 = vadd.f32 %v1247, %v1481
    %v1615 = vadd.f32 %v1248, %v1483
    %v1616 = vadd.f32 %v1249, %v1486
    %v1617 = vadd.f32 %v1250, %v1488
    %v1618 = vadd.f32 %v1251, %v1491
    %v1619 = vadd.f32 %v1252, %v1493
    %v1620 = vadd.f32 %v1253, %v1496
    %v1621 = vadd.f32 %v1254, %v1498
    %v1622 = vadd.f32 %v1255, %v1501
    %v1623 = vadd.f32 %v1256, %v1503
    %v1624 = vadd.f32 %v1257, %v1506
    %v1625 = vadd.f32 %v1258, %v1508
    %v1626 = vadd.f32 %v1259, %v1511
    %v1627 = vadd.f32 %v1260, %v1513
    %v1628 = vadd.f32 %v1261, %v1516
    %v1629 = vadd.f32 %v1262, %v1518
    %v1630 = vadd.f32 %v1263, %v1521
    %v1631 = vadd.f32 %v1264, %v1523
    %v1632 = vadd.f32 %v1265, %v1526
    %v1633 = vadd.f32 %v1266, %v1528
    %v1634 = vadd.f32 %v1267, %v1531
    %v1635 = vadd.f32 %v1268, %v1533
    %v1636 = vadd.f32 %v1269, %v1536
    %v1637 = vadd.f32 %v1270, %v1538
    %v1638 = vadd.f32 %v1271, %v1541
    %v1639 = vadd.f32 %v1272, %v1543
    %v1641 = vlaneseq
    %v1642 = vshrl.u32 %v1641, 7
    %v1643 = vsub.s32 0, %v1642
    %v1644 = vrot.slane %v122, %v1643
    %v1646 = vmul.f32 %v128, %v1644
    %v1647 = vmul.f32 %v133, %v1644
    %v1648 = vmul.f32 %v422, %v1644
    %v1649 = vmul.f32 %v138, %v1644
    %v1650 = vmul.f32 %v143, %v1644
    %v1651 = vmul.f32 %v427, %v1644
    %v1652 = vmul.f32 %v148, %v1644
    %v1653 = vmul.f32 %v153, %v1644
    %v1654 = vmul.f32 %v432, %v1644
    %v1655 = vmul.f32 %v158, %v1644
    %v1656 = vmul.f32 %v163, %v1644
    %v1657 = vmul.f32 %v437, %v1644
    %v1658 = vmul.f32 %v168, %v1644
    %v1659 = vmul.f32 %v173, %v1644
    %v1660 = vmul.f32 %v442, %v1644
    %v1661 = vmul.f32 %v178, %v1644
    %v1662 = vmul.f32 %v183, %v1644
    %v1663 = vmul.f32 %v447, %v1644
    %v1664 = vmul.f32 %v188, %v1644
    %v1665 = vmul.f32 %v193, %v1644
    %v1666 = vmul.f32 %v452, %v1644
    %v1667 = vmul.f32 %v198, %v1644
    %v1668 = vmul.f32 %v203, %v1644
    %v1669 = vmul.f32 %v457, %v1644
    %v1670 = vmul.f32 %v208, %v1644
    %v1671 = vmul.f32 %v213, %v1644
    %v1672 = vmul.f32 %v462, %v1644
    %v1673 = vmul.f32 %v218, %v1644
    %v1674 = vmul.f32 %v223, %v1644
    %v1675 = vmul.f32 %v467, %v1644
    %v1676 = vmul.f32 %v228, %v1644
    %v1677 = vmul.f32 %v233, %v1644
    %v1678 = vmul.f32 %v472, %v1644
    %v1679 = vmul.f32 %v238, %v1644
    %v1680 = vmul.f32 %v243, %v1644
    %v1681 = vmul.f32 %v477, %v1644
    %v1682 = vmul.f32 %v248, %v1644
    %v1683 = vmul.f32 %v253, %v1644
    %v1684 = vmul.f32 %v482, %v1644
    %v1685 = vmul.f32 %v258, %v1644
    %v1686 = vmul.f32 %v263, %v1644
    %v1687 = vmul.f32 %v487, %v1644
    %v1688 = vmul.f32 %v268, %v1644
    %v1689 = vmul.f32 %v273, %v1644
    %v1690 = vmul.f32 %v492, %v1644
    %v1691 = vmul.f32 %v278, %v1644
    %v1692 = vmul.f32 %v283, %v1644
    %v1693 = vmul.f32 %v497, %v1644
    %v1694 = vmul.f32 %v288, %v1644
    %v1695 = vmul.f32 %v293, %v1644
    %v1696 = vmul.f32 %v502, %v1644
    %v1697 = vmul.f32 %v298, %v1644
    %v1698 = vmul.f32 %v303, %v1644
    %v1699 = vmul.f32 %v507, %v1644
    %v1700 = vmul.f32 %v308, %v1644
    %v1701 = vmul.f32 %v313, %v1644
    %v1702 = vmul.f32 %v512, %v1644
    %v1703 = vmul.f32 %v318, %v1644
    %v1704 = vmul.f32 %v323, %v1644
    %v1705 = vmul.f32 %v517, %v1644
    %v1706 = vmul.f32 %v328, %v1644
    %v1707 = vmul.f32 %v333, %v1644
    %v1708 = vmul.f32 %v522, %v1644
    %v1709 = vmul.f32 %v338, %v1644
    %v1710 = vmul.f32 %v343, %v1644
    %v1711 = vmul.f32 %v527, %v1644
    %v1712 = vmul.f32 %v348, %v1644
    %v1713 = vmul.f32 %v353, %v1644
    %v1714 = vmul.f32 %v532, %v1644
    %v1715 = vmul.f32 %v358, %v1644
    %v1716 = vmul.f32 %v363, %v1644
    %v1717 = vmul.f32 %v537, %v1644
    %vm1790 = vcmask 1043456
    %v1791 = vrot.slane %v1646, 4
    %v1792 = vrot.slane %v1647, 4
    %v1793 = vsel %vm1790, %v1791, %v1792
    %v1794 = vrot.slane %v1648, 4
    %v1795 = vsel %vm1790, %v1792, %v1794
    %v1796 = vrot.slane %v1649, 4
    %v1797 = vrot.slane %v1650, 4
    %v1798 = vsel %vm1790, %v1796, %v1797
    %v1799 = vrot.slane %v1651, 4
    %v1800 = vsel %vm1790, %v1797, %v1799
    %v1801 = vrot.slane %v1652, 4
    %v1802 = vrot.slane %v1653, 4
    %v1803 = vsel %vm1790, %v1801, %v1802
    %v1804 = vrot.slane %v1654, 4
    %v1805 = vsel %vm1790, %v1802, %v1804
    %v1806 = vrot.slane %v1655, 4
    %v1807 = vrot.slane %v1656, 4
    %v1808 = vsel %vm1790, %v1806, %v1807
    %v1809 = vrot.slane %v1657, 4
    %v1810 = vsel %vm1790, %v1807, %v1809
    %v1811 = vrot.slane %v1658, 4
    %v1812 = vrot.slane %v1659, 4
    %v1813 = vsel %vm1790, %v1811, %v1812
    %v1814 = vrot.slane %v1660, 4
    %v1815 = vsel %vm1790, %v1812, %v1814
    %v1816 = vrot.slane %v1661, 4
    %v1817 = vrot.slane %v1662, 4
    %v1818 = vsel %vm1790, %v1816, %v1817
    %v1819 = vrot.slane %v1663, 4
    %v1820 = vsel %vm1790, %v1817, %v1819
    %v1821 = vrot.slane %v1664, 4
    %v1822 = vrot.slane %v1665, 4
    %v1823 = vsel %vm1790, %v1821, %v1822
    %v1824 = vrot.slane %v1666, 4
    %v1825 = vsel %vm1790, %v1822, %v1824
    %v1826 = vrot.slane %v1667, 4
    %v1827 = vrot.slane %v1668, 4
    %v1828 = vsel %vm1790, %v1826, %v1827
    %v1829 = vrot.slane %v1669, 4
    %v1830 = vsel %vm1790, %v1827, %v1829
    %v1831 = vrot.slane %v1670, 4
    %v1832 = vrot.slane %v1671, 4
    %v1833 = vsel %vm1790, %v1831, %v1832
    %v1834 = vrot.slane %v1672, 4
    %v1835 = vsel %vm1790, %v1832, %v1834
    %v1836 = vrot.slane %v1673, 4
    %v1837 = vrot.slane %v1674, 4
    %v1838 = vsel %vm1790, %v1836, %v1837
    %v1839 = vrot.slane %v1675, 4
    %v1840 = vsel %vm1790, %v1837, %v1839
    %v1841 = vrot.slane %v1676, 4
    %v1842 = vrot.slane %v1677, 4
    %v1843 = vsel %vm1790, %v1841, %v1842
    %v1844 = vrot.slane %v1678, 4
    %v1845 = vsel %vm1790, %v1842, %v1844
    %v1846 = vrot.slane %v1679, 4
    %v1847 = vrot.slane %v1680, 4
    %v1848 = vsel %vm1790, %v1846, %v1847
    %v1849 = vrot.slane %v1681, 4
    %v1850 = vsel %vm1790, %v1847, %v1849
    %v1851 = vrot.slane %v1682, 4
    %v1852 = vrot.slane %v1683, 4
    %v1853 = vsel %vm1790, %v1851, %v1852
    %v1854 = vrot.slane %v1684, 4
    %v1855 = vsel %vm1790, %v1852, %v1854
    %v1856 = vrot.slane %v1685, 4
    %v1857 = vrot.slane %v1686, 4
    %v1858 = vsel %vm1790, %v1856, %v1857
    %v1859 = vrot.slane %v1687, 4
    %v1860 = vsel %vm1790, %v1857, %v1859
    %v1861 = vrot.slane %v1688, 4
    %v1862 = vrot.slane %v1689, 4
    %v1863 = vsel %vm1790, %v1861, %v1862
    %v1864 = vrot.slane %v1690, 4
    %v1865 = vsel %vm1790, %v1862, %v1864
    %v1866 = vrot.slane %v1691, 4
    %v1867 = vrot.slane %v1692, 4
    %v1868 = vsel %vm1790, %v1866, %v1867
    %v1869 = vrot.slane %v1693, 4
    %v1870 = vsel %vm1790, %v1867, %v1869
    %v1871 = vrot.slane %v1694, 4
    %v1872 = vrot.slane %v1695, 4
    %v1873 = vsel %vm1790, %v1871, %v1872
    %v1874 = vrot.slane %v1696, 4
    %v1875 = vsel %vm1790, %v1872, %v1874
    %v1876 = vrot.slane %v1697, 4
    %v1877 = vrot.slane %v1698, 4
    %v1878 = vsel %vm1790, %v1876, %v1877
    %v1879 = vrot.slane %v1699, 4
    %v1880 = vsel %vm1790, %v1877, %v1879
    %v1881 = vrot.slane %v1700, 4
    %v1882 = vrot.slane %v1701, 4
    %v1883 = vsel %vm1790, %v1881, %v1882
    %v1884 = vrot.slane %v1702, 4
    %v1885 = vsel %vm1790, %v1882, %v1884
    %v1886 = vrot.slane %v1703, 4
    %v1887 = vrot.slane %v1704, 4
    %v1888 = vsel %vm1790, %v1886, %v1887
    %v1889 = vrot.slane %v1705, 4
    %v1890 = vsel %vm1790, %v1887, %v1889
    %v1891 = vrot.slane %v1706, 4
    %v1892 = vrot.slane %v1707, 4
    %v1893 = vsel %vm1790, %v1891, %v1892
    %v1894 = vrot.slane %v1708, 4
    %v1895 = vsel %vm1790, %v1892, %v1894
    %v1896 = vrot.slane %v1709, 4
    %v1897 = vrot.slane %v1710, 4
    %v1898 = vsel %vm1790, %v1896, %v1897
    %v1899 = vrot.slane %v1711, 4
    %v1900 = vsel %vm1790, %v1897, %v1899
    %v1901 = vrot.slane %v1712, 4
    %v1902 = vrot.slane %v1713, 4
    %v1903 = vsel %vm1790, %v1901, %v1902
    %v1904 = vrot.slane %v1714, 4
    %v1905 = vsel %vm1790, %v1902, %v1904
    %v1906 = vrot.slane %v1715, 4
    %v1907 = vrot.slane %v1716, 4
    %v1908 = vsel %vm1790, %v1906, %v1907
    %v1909 = vrot.slane %v1717, 4
    %v1910 = vsel %vm1790, %v1907, %v1909
    %v1959 = vadd.f32 %v1592, %v1793
    %v1960 = vadd.f32 %v1593, %v1795
    %v1961 = vadd.f32 %v1594, %v1798
    %v1962 = vadd.f32 %v1595, %v1800
    %v1963 = vadd.f32 %v1596, %v1803
    %v1964 = vadd.f32 %v1597, %v1805
    %v1965 = vadd.f32 %v1598, %v1808
    %v1966 = vadd.f32 %v1599, %v1810
    %v1967 = vadd.f32 %v1600, %v1813
    %v1968 = vadd.f32 %v1601, %v1815
    %v1969 = vadd.f32 %v1602, %v1818
    %v1970 = vadd.f32 %v1603, %v1820
    %v1971 = vadd.f32 %v1604, %v1823
    %v1972 = vadd.f32 %v1605, %v1825
    %v1973 = vadd.f32 %v1606, %v1828
    %v1974 = vadd.f32 %v1607, %v1830
    %v1975 = vadd.f32 %v1608, %v1833
    %v1976 = vadd.f32 %v1609, %v1835
    %v1977 = vadd.f32 %v1610, %v1838
    %v1978 = vadd.f32 %v1611, %v1840
    %v1979 = vadd.f32 %v1612, %v1843
    %v1980 = vadd.f32 %v1613, %v1845
    %v1981 = vadd.f32 %v1614, %v1848
    %v1982 = vadd.f32 %v1615, %v1850
    %v1983 = vadd.f32 %v1616, %v1853
    %v1984 = vadd.f32 %v1617, %v1855
    %v1985 = vadd.f32 %v1618, %v1858
    %v1986 = vadd.f32 %v1619, %v1860
    %v1987 = vadd.f32 %v1620, %v1863
    %v1988 = vadd.f32 %v1621, %v1865
    %v1989 = vadd.f32 %v1622, %v1868
    %v1990 = vadd.f32 %v1623, %v1870
    %v1991 = vadd.f32 %v1624, %v1873
    %v1992 = vadd.f32 %v1625, %v1875
    %v1993 = vadd.f32 %v1626, %v1878
    %v1994 = vadd.f32 %v1627, %v1880
    %v1995 = vadd.f32 %v1628, %v1883
    %v1996 = vadd.f32 %v1629, %v1885
    %v1997 = vadd.f32 %v1630, %v1888
    %v1998 = vadd.f32 %v1631, %v1890
    %v1999 = vadd.f32 %v1632, %v1893
    %v2000 = vadd.f32 %v1633, %v1895
    %v2001 = vadd.f32 %v1634, %v1898
    %v2002 = vadd.f32 %v1635, %v1900
    %v2003 = vadd.f32 %v1636, %v1903
    %v2004 = vadd.f32 %v1637, %v1905
    %v2005 = vadd.f32 %v1638, %v1908
    %v2006 = vadd.f32 %v1639, %v1910
    %v2008 = vlaneseq
    %v2009 = vshrl.u32 %v2008, 7
    %v2010 = vsub.s32 0, %v2009
    %v2011 = vrot.slane %v123, %v2010
    %v2013 = vmul.f32 %v128, %v2011
    %v2014 = vmul.f32 %v133, %v2011
    %v2015 = vmul.f32 %v422, %v2011
    %v2016 = vmul.f32 %v138, %v2011
    %v2017 = vmul.f32 %v143, %v2011
    %v2018 = vmul.f32 %v427, %v2011
    %v2019 = vmul.f32 %v148, %v2011
    %v2020 = vmul.f32 %v153, %v2011
    %v2021 = vmul.f32 %v432, %v2011
    %v2022 = vmul.f32 %v158, %v2011
    %v2023 = vmul.f32 %v163, %v2011
    %v2024 = vmul.f32 %v437, %v2011
    %v2025 = vmul.f32 %v168, %v2011
    %v2026 = vmul.f32 %v173, %v2011
    %v2027 = vmul.f32 %v442, %v2011
    %v2028 = vmul.f32 %v178, %v2011
    %v2029 = vmul.f32 %v183, %v2011
    %v2030 = vmul.f32 %v447, %v2011
    %v2031 = vmul.f32 %v188, %v2011
    %v2032 = vmul.f32 %v193, %v2011
    %v2033 = vmul.f32 %v452, %v2011
    %v2034 = vmul.f32 %v198, %v2011
    %v2035 = vmul.f32 %v203, %v2011
    %v2036 = vmul.f32 %v457, %v2011
    %v2037 = vmul.f32 %v208, %v2011
    %v2038 = vmul.f32 %v213, %v2011
    %v2039 = vmul.f32 %v462, %v2011
    %v2040 = vmul.f32 %v218, %v2011
    %v2041 = vmul.f32 %v223, %v2011
    %v2042 = vmul.f32 %v467, %v2011
    %v2043 = vmul.f32 %v228, %v2011
    %v2044 = vmul.f32 %v233, %v2011
    %v2045 = vmul.f32 %v472, %v2011
    %v2046 = vmul.f32 %v238, %v2011
    %v2047 = vmul.f32 %v243, %v2011
    %v2048 = vmul.f32 %v477, %v2011
    %v2049 = vmul.f32 %v248, %v2011
    %v2050 = vmul.f32 %v253, %v2011
    %v2051 = vmul.f32 %v482, %v2011
    %v2052 = vmul.f32 %v258, %v2011
    %v2053 = vmul.f32 %v263, %v2011
    %v2054 = vmul.f32 %v487, %v2011
    %v2055 = vmul.f32 %v268, %v2011
    %v2056 = vmul.f32 %v273, %v2011
    %v2057 = vmul.f32 %v492, %v2011
    %v2058 = vmul.f32 %v278, %v2011
    %v2059 = vmul.f32 %v283, %v2011
    %v2060 = vmul.f32 %v497, %v2011
    %v2061 = vmul.f32 %v288, %v2011
    %v2062 = vmul.f32 %v293, %v2011
    %v2063 = vmul.f32 %v502, %v2011
    %v2064 = vmul.f32 %v298, %v2011
    %v2065 = vmul.f32 %v303, %v2011
    %v2066 = vmul.f32 %v507, %v2011
    %v2067 = vmul.f32 %v308, %v2011
    %v2068 = vmul.f32 %v313, %v2011
    %v2069 = vmul.f32 %v512, %v2011
    %v2070 = vmul.f32 %v318, %v2011
    %v2071 = vmul.f32 %v323, %v2011
    %v2072 = vmul.f32 %v517, %v2011
    %v2073 = vmul.f32 %v328, %v2011
    %v2074 = vmul.f32 %v333, %v2011
    %v2075 = vmul.f32 %v522, %v2011
    %v2076 = vmul.f32 %v338, %v2011
    %v2077 = vmul.f32 %v343, %v2011
    %v2078 = vmul.f32 %v527, %v2011
    %v2079 = vmul.f32 %v348, %v2011
    %v2080 = vmul.f32 %v353, %v2011
    %v2081 = vmul.f32 %v532, %v2011
    %v2082 = vmul.f32 %v358, %v2011
    %v2083 = vmul.f32 %v363, %v2011
    %v2084 = vmul.f32 %v537, %v2011
    %vm2157 = vcmask 1042432
    %v2158 = vrot.slane %v2013, 5
    %v2159 = vrot.slane %v2014, 5
    %v2160 = vsel %vm2157, %v2158, %v2159
    %v2161 = vrot.slane %v2015, 5
    %v2162 = vsel %vm2157, %v2159, %v2161
    %v2163 = vrot.slane %v2016, 5
    %v2164 = vrot.slane %v2017, 5
    %v2165 = vsel %vm2157, %v2163, %v2164
    %v2166 = vrot.slane %v2018, 5
    %v2167 = vsel %vm2157, %v2164, %v2166
    %v2168 = vrot.slane %v2019, 5
    %v2169 = vrot.slane %v2020, 5
    %v2170 = vsel %vm2157, %v2168, %v2169
    %v2171 = vrot.slane %v2021, 5
    %v2172 = vsel %vm2157, %v2169, %v2171
    %v2173 = vrot.slane %v2022, 5
    %v2174 = vrot.slane %v2023, 5
    %v2175 = vsel %vm2157, %v2173, %v2174
    %v2176 = vrot.slane %v2024, 5
    %v2177 = vsel %vm2157, %v2174, %v2176
    %v2178 = vrot.slane %v2025, 5
    %v2179 = vrot.slane %v2026, 5
    %v2180 = vsel %vm2157, %v2178, %v2179
    %v2181 = vrot.slane %v2027, 5
    %v2182 = vsel %vm2157, %v2179, %v2181
    %v2183 = vrot.slane %v2028, 5
    %v2184 = vrot.slane %v2029, 5
    %v2185 = vsel %vm2157, %v2183, %v2184
    %v2186 = vrot.slane %v2030, 5
    %v2187 = vsel %vm2157, %v2184, %v2186
    %v2188 = vrot.slane %v2031, 5
    %v2189 = vrot.slane %v2032, 5
    %v2190 = vsel %vm2157, %v2188, %v2189
    %v2191 = vrot.slane %v2033, 5
    %v2192 = vsel %vm2157, %v2189, %v2191
    %v2193 = vrot.slane %v2034, 5
    %v2194 = vrot.slane %v2035, 5
    %v2195 = vsel %vm2157, %v2193, %v2194
    %v2196 = vrot.slane %v2036, 5
    %v2197 = vsel %vm2157, %v2194, %v2196
    %v2198 = vrot.slane %v2037, 5
    %v2199 = vrot.slane %v2038, 5
    %v2200 = vsel %vm2157, %v2198, %v2199
    %v2201 = vrot.slane %v2039, 5
    %v2202 = vsel %vm2157, %v2199, %v2201
    %v2203 = vrot.slane %v2040, 5
    %v2204 = vrot.slane %v2041, 5
    %v2205 = vsel %vm2157, %v2203, %v2204
    %v2206 = vrot.slane %v2042, 5
    %v2207 = vsel %vm2157, %v2204, %v2206
    %v2208 = vrot.slane %v2043, 5
    %v2209 = vrot.slane %v2044, 5
    %v2210 = vsel %vm2157, %v2208, %v2209
    %v2211 = vrot.slane %v2045, 5
    %v2212 = vsel %vm2157, %v2209, %v2211
    %v2213 = vrot.slane %v2046, 5
    %v2214 = vrot.slane %v2047, 5
    %v2215 = vsel %vm2157, %v2213, %v2214
    %v2216 = vrot.slane %v2048, 5
    %v2217 = vsel %vm2157, %v2214, %v2216
    %v2218 = vrot.slane %v2049, 5
    %v2219 = vrot.slane %v2050, 5
    %v2220 = vsel %vm2157, %v2218, %v2219
    %v2221 = vrot.slane %v2051, 5
    %v2222 = vsel %vm2157, %v2219, %v2221
    %v2223 = vrot.slane %v2052, 5
    %v2224 = vrot.slane %v2053, 5
    %v2225 = vsel %vm2157, %v2223, %v2224
    %v2226 = vrot.slane %v2054, 5
    %v2227 = vsel %vm2157, %v2224, %v2226
    %v2228 = vrot.slane %v2055, 5
    %v2229 = vrot.slane %v2056, 5
    %v2230 = vsel %vm2157, %v2228, %v2229
    %v2231 = vrot.slane %v2057, 5
    %v2232 = vsel %vm2157, %v2229, %v2231
    %v2233 = vrot.slane %v2058, 5
    %v2234 = vrot.slane %v2059, 5
    %v2235 = vsel %vm2157, %v2233, %v2234
    %v2236 = vrot.slane %v2060, 5
    %v2237 = vsel %vm2157, %v2234, %v2236
    %v2238 = vrot.slane %v2061, 5
    %v2239 = vrot.slane %v2062, 5
    %v2240 = vsel %vm2157, %v2238, %v2239
    %v2241 = vrot.slane %v2063, 5
    %v2242 = vsel %vm2157, %v2239, %v2241
    %v2243 = vrot.slane %v2064, 5
    %v2244 = vrot.slane %v2065, 5
    %v2245 = vsel %vm2157, %v2243, %v2244
    %v2246 = vrot.slane %v2066, 5
    %v2247 = vsel %vm2157, %v2244, %v2246
    %v2248 = vrot.slane %v2067, 5
    %v2249 = vrot.slane %v2068, 5
    %v2250 = vsel %vm2157, %v2248, %v2249
    %v2251 = vrot.slane %v2069, 5
    %v2252 = vsel %vm2157, %v2249, %v2251
    %v2253 = vrot.slane %v2070, 5
    %v2254 = vrot.slane %v2071, 5
    %v2255 = vsel %vm2157, %v2253, %v2254
    %v2256 = vrot.slane %v2072, 5
    %v2257 = vsel %vm2157, %v2254, %v2256
    %v2258 = vrot.slane %v2073, 5
    %v2259 = vrot.slane %v2074, 5
    %v2260 = vsel %vm2157, %v2258, %v2259
    %v2261 = vrot.slane %v2075, 5
    %v2262 = vsel %vm2157, %v2259, %v2261
    %v2263 = vrot.slane %v2076, 5
    %v2264 = vrot.slane %v2077, 5
    %v2265 = vsel %vm2157, %v2263, %v2264
    %v2266 = vrot.slane %v2078, 5
    %v2267 = vsel %vm2157, %v2264, %v2266
    %v2268 = vrot.slane %v2079, 5
    %v2269 = vrot.slane %v2080, 5
    %v2270 = vsel %vm2157, %v2268, %v2269
    %v2271 = vrot.slane %v2081, 5
    %v2272 = vsel %vm2157, %v2269, %v2271
    %v2273 = vrot.slane %v2082, 5
    %v2274 = vrot.slane %v2083, 5
    %v2275 = vsel %vm2157, %v2273, %v2274
    %v2276 = vrot.slane %v2084, 5
    %v2277 = vsel %vm2157, %v2274, %v2276
    %v2326 = vadd.f32 %v1959, %v2160
    %v2327 = vadd.f32 %v1960, %v2162
    %v2328 = vadd.f32 %v1961, %v2165
    %v2329 = vadd.f32 %v1962, %v2167
    %v2330 = vadd.f32 %v1963, %v2170
    %v2331 = vadd.f32 %v1964, %v2172
    %v2332 = vadd.f32 %v1965, %v2175
    %v2333 = vadd.f32 %v1966, %v2177
    %v2334 = vadd.f32 %v1967, %v2180
    %v2335 = vadd.f32 %v1968, %v2182
    %v2336 = vadd.f32 %v1969, %v2185
    %v2337 = vadd.f32 %v1970, %v2187
    %v2338 = vadd.f32 %v1971, %v2190
    %v2339 = vadd.f32 %v1972, %v2192
    %v2340 = vadd.f32 %v1973, %v2195
    %v2341 = vadd.f32 %v1974, %v2197
    %v2342 = vadd.f32 %v1975, %v2200
    %v2343 = vadd.f32 %v1976, %v2202
    %v2344 = vadd.f32 %v1977, %v2205
    %v2345 = vadd.f32 %v1978, %v2207
    %v2346 = vadd.f32 %v1979, %v2210
    %v2347 = vadd.f32 %v1980, %v2212
    %v2348 = vadd.f32 %v1981, %v2215
    %v2349 = vadd.f32 %v1982, %v2217
    %v2350 = vadd.f32 %v1983, %v2220
    %v2351 = vadd.f32 %v1984, %v2222
    %v2352 = vadd.f32 %v1985, %v2225
    %v2353 = vadd.f32 %v1986, %v2227
    %v2354 = vadd.f32 %v1987, %v2230
    %v2355 = vadd.f32 %v1988, %v2232
    %v2356 = vadd.f32 %v1989, %v2235
    %v2357 = vadd.f32 %v1990, %v2237
    %v2358 = vadd.f32 %v1991, %v2240
    %v2359 = vadd.f32 %v1992, %v2242
    %v2360 = vadd.f32 %v1993, %v2245
    %v2361 = vadd.f32 %v1994, %v2247
    %v2362 = vadd.f32 %v1995, %v2250
    %v2363 = vadd.f32 %v1996, %v2252
    %v2364 = vadd.f32 %v1997, %v2255
    %v2365 = vadd.f32 %v1998, %v2257
    %v2366 = vadd.f32 %v1999, %v2260
    %v2367 = vadd.f32 %v2000, %v2262
    %v2368 = vadd.f32 %v2001, %v2265
    %v2369 = vadd.f32 %v2002, %v2267
    %v2370 = vadd.f32 %v2003, %v2270
    %v2371 = vadd.f32 %v2004, %v2272
    %v2372 = vadd.f32 %v2005, %v2275
    %v2373 = vadd.f32 %v2006, %v2277
    %v2375 = vlaneseq
    %v2376 = vshrl.u32 %v2375, 7
    %v2377 = vsub.s32 0, %v2376
    %v2378 = vrot.slane %v124, %v2377
    %v2380 = vmul.f32 %v128, %v2378
    %v2381 = vmul.f32 %v133, %v2378
    %v2382 = vmul.f32 %v422, %v2378
    %v2383 = vmul.f32 %v138, %v2378
    %v2384 = vmul.f32 %v143, %v2378
    %v2385 = vmul.f32 %v427, %v2378
    %v2386 = vmul.f32 %v148, %v2378
    %v2387 = vmul.f32 %v153, %v2378
    %v2388 = vmul.f32 %v432, %v2378
    %v2389 = vmul.f32 %v158, %v2378
    %v2390 = vmul.f32 %v163, %v2378
    %v2391 = vmul.f32 %v437, %v2378
    %v2392 = vmul.f32 %v168, %v2378
    %v2393 = vmul.f32 %v173, %v2378
    %v2394 = vmul.f32 %v442, %v2378
    %v2395 = vmul.f32 %v178, %v2378
    %v2396 = vmul.f32 %v183, %v2378
    %v2397 = vmul.f32 %v447, %v2378
    %v2398 = vmul.f32 %v188, %v2378
    %v2399 = vmul.f32 %v193, %v2378
    %v2400 = vmul.f32 %v452, %v2378
    %v2401 = vmul.f32 %v198, %v2378
    %v2402 = vmul.f32 %v203, %v2378
    %v2403 = vmul.f32 %v457, %v2378
    %v2404 = vmul.f32 %v208, %v2378
    %v2405 = vmul.f32 %v213, %v2378
    %v2406 = vmul.f32 %v462, %v2378
    %v2407 = vmul.f32 %v218, %v2378
    %v2408 = vmul.f32 %v223, %v2378
    %v2409 = vmul.f32 %v467, %v2378
    %v2410 = vmul.f32 %v228, %v2378
    %v2411 = vmul.f32 %v233, %v2378
    %v2412 = vmul.f32 %v472, %v2378
    %v2413 = vmul.f32 %v238, %v2378
    %v2414 = vmul.f32 %v243, %v2378
    %v2415 = vmul.f32 %v477, %v2378
    %v2416 = vmul.f32 %v248, %v2378
    %v2417 = vmul.f32 %v253, %v2378
    %v2418 = vmul.f32 %v482, %v2378
    %v2419 = vmul.f32 %v258, %v2378
    %v2420 = vmul.f32 %v263, %v2378
    %v2421 = vmul.f32 %v487, %v2378
    %v2422 = vmul.f32 %v268, %v2378
    %v2423 = vmul.f32 %v273, %v2378
    %v2424 = vmul.f32 %v492, %v2378
    %v2425 = vmul.f32 %v278, %v2378
    %v2426 = vmul.f32 %v283, %v2378
    %v2427 = vmul.f32 %v497, %v2378
    %v2428 = vmul.f32 %v288, %v2378
    %v2429 = vmul.f32 %v293, %v2378
    %v2430 = vmul.f32 %v502, %v2378
    %v2431 = vmul.f32 %v298, %v2378
    %v2432 = vmul.f32 %v303, %v2378
    %v2433 = vmul.f32 %v507, %v2378
    %v2434 = vmul.f32 %v308, %v2378
    %v2435 = vmul.f32 %v313, %v2378
    %v2436 = vmul.f32 %v512, %v2378
    %v2437 = vmul.f32 %v318, %v2378
    %v2438 = vmul.f32 %v323, %v2378
    %v2439 = vmul.f32 %v517, %v2378
    %v2440 = vmul.f32 %v328, %v2378
    %v2441 = vmul.f32 %v333, %v2378
    %v2442 = vmul.f32 %v522, %v2378
    %v2443 = vmul.f32 %v338, %v2378
    %v2444 = vmul.f32 %v343, %v2378
    %v2445 = vmul.f32 %v527, %v2378
    %v2446 = vmul.f32 %v348, %v2378
    %v2447 = vmul.f32 %v353, %v2378
    %v2448 = vmul.f32 %v532, %v2378
    %v2449 = vmul.f32 %v358, %v2378
    %v2450 = vmul.f32 %v363, %v2378
    %v2451 = vmul.f32 %v537, %v2378
    %vm2524 = vcmask 1041408
    %v2525 = vrot.slane %v2380, 6
    %v2526 = vrot.slane %v2381, 6
    %v2527 = vsel %vm2524, %v2525, %v2526
    %v2528 = vrot.slane %v2382, 6
    %v2529 = vsel %vm2524, %v2526, %v2528
    %v2530 = vrot.slane %v2383, 6
    %v2531 = vrot.slane %v2384, 6
    %v2532 = vsel %vm2524, %v2530, %v2531
    %v2533 = vrot.slane %v2385, 6
    %v2534 = vsel %vm2524, %v2531, %v2533
    %v2535 = vrot.slane %v2386, 6
    %v2536 = vrot.slane %v2387, 6
    %v2537 = vsel %vm2524, %v2535, %v2536
    %v2538 = vrot.slane %v2388, 6
    %v2539 = vsel %vm2524, %v2536, %v2538
    %v2540 = vrot.slane %v2389, 6
    %v2541 = vrot.slane %v2390, 6
    %v2542 = vsel %vm2524, %v2540, %v2541
    %v2543 = vrot.slane %v2391, 6
    %v2544 = vsel %vm2524, %v2541, %v2543
    %v2545 = vrot.slane %v2392, 6
    %v2546 = vrot.slane %v2393, 6
    %v2547 = vsel %vm2524, %v2545, %v2546
    %v2548 = vrot.slane %v2394, 6
    %v2549 = vsel %vm2524, %v2546, %v2548
    %v2550 = vrot.slane %v2395, 6
    %v2551 = vrot.slane %v2396, 6
    %v2552 = vsel %vm2524, %v2550, %v2551
    %v2553 = vrot.slane %v2397, 6
    %v2554 = vsel %vm2524, %v2551, %v2553
    %v2555 = vrot.slane %v2398, 6
    %v2556 = vrot.slane %v2399, 6
    %v2557 = vsel %vm2524, %v2555, %v2556
    %v2558 = vrot.slane %v2400, 6
    %v2559 = vsel %vm2524, %v2556, %v2558
    %v2560 = vrot.slane %v2401, 6
    %v2561 = vrot.slane %v2402, 6
    %v2562 = vsel %vm2524, %v2560, %v2561
    %v2563 = vrot.slane %v2403, 6
    %v2564 = vsel %vm2524, %v2561, %v2563
    %v2565 = vrot.slane %v2404, 6
    %v2566 = vrot.slane %v2405, 6
    %v2567 = vsel %vm2524, %v2565, %v2566
    %v2568 = vrot.slane %v2406, 6
    %v2569 = vsel %vm2524, %v2566, %v2568
    %v2570 = vrot.slane %v2407, 6
    %v2571 = vrot.slane %v2408, 6
    %v2572 = vsel %vm2524, %v2570, %v2571
    %v2573 = vrot.slane %v2409, 6
    %v2574 = vsel %vm2524, %v2571, %v2573
    %v2575 = vrot.slane %v2410, 6
    %v2576 = vrot.slane %v2411, 6
    %v2577 = vsel %vm2524, %v2575, %v2576
    %v2578 = vrot.slane %v2412, 6
    %v2579 = vsel %vm2524, %v2576, %v2578
    %v2580 = vrot.slane %v2413, 6
    %v2581 = vrot.slane %v2414, 6
    %v2582 = vsel %vm2524, %v2580, %v2581
    %v2583 = vrot.slane %v2415, 6
    %v2584 = vsel %vm2524, %v2581, %v2583
    %v2585 = vrot.slane %v2416, 6
    %v2586 = vrot.slane %v2417, 6
    %v2587 = vsel %vm2524, %v2585, %v2586
    %v2588 = vrot.slane %v2418, 6
    %v2589 = vsel %vm2524, %v2586, %v2588
    %v2590 = vrot.slane %v2419, 6
    %v2591 = vrot.slane %v2420, 6
    %v2592 = vsel %vm2524, %v2590, %v2591
    %v2593 = vrot.slane %v2421, 6
    %v2594 = vsel %vm2524, %v2591, %v2593
    %v2595 = vrot.slane %v2422, 6
    %v2596 = vrot.slane %v2423, 6
    %v2597 = vsel %vm2524, %v2595, %v2596
    %v2598 = vrot.slane %v2424, 6
    %v2599 = vsel %vm2524, %v2596, %v2598
    %v2600 = vrot.slane %v2425, 6
    %v2601 = vrot.slane %v2426, 6
    %v2602 = vsel %vm2524, %v2600, %v2601
    %v2603 = vrot.slane %v2427, 6
    %v2604 = vsel %vm2524, %v2601, %v2603
    %v2605 = vrot.slane %v2428, 6
    %v2606 = vrot.slane %v2429, 6
    %v2607 = vsel %vm2524, %v2605, %v2606
    %v2608 = vrot.slane %v2430, 6
    %v2609 = vsel %vm2524, %v2606, %v2608
    %v2610 = vrot.slane %v2431, 6
    %v2611 = vrot.slane %v2432, 6
    %v2612 = vsel %vm2524, %v2610, %v2611
    %v2613 = vrot.slane %v2433, 6
    %v2614 = vsel %vm2524, %v2611, %v2613
    %v2615 = vrot.slane %v2434, 6
    %v2616 = vrot.slane %v2435, 6
    %v2617 = vsel %vm2524, %v2615, %v2616
    %v2618 = vrot.slane %v2436, 6
    %v2619 = vsel %vm2524, %v2616, %v2618
    %v2620 = vrot.slane %v2437, 6
    %v2621 = vrot.slane %v2438, 6
    %v2622 = vsel %vm2524, %v2620, %v2621
    %v2623 = vrot.slane %v2439, 6
    %v2624 = vsel %vm2524, %v2621, %v2623
    %v2625 = vrot.slane %v2440, 6
    %v2626 = vrot.slane %v2441, 6
    %v2627 = vsel %vm2524, %v2625, %v2626
    %v2628 = vrot.slane %v2442, 6
    %v2629 = vsel %vm2524, %v2626, %v2628
    %v2630 = vrot.slane %v2443, 6
    %v2631 = vrot.slane %v2444, 6
    %v2632 = vsel %vm2524, %v2630, %v2631
    %v2633 = vrot.slane %v2445, 6
    %v2634 = vsel %vm2524, %v2631, %v2633
    %v2635 = vrot.slane %v2446, 6
    %v2636 = vrot.slane %v2447, 6
    %v2637 = vsel %vm2524, %v2635, %v2636
    %v2638 = vrot.slane %v2448, 6
    %v2639 = vsel %vm2524, %v2636, %v2638
    %v2640 = vrot.slane %v2449, 6
    %v2641 = vrot.slane %v2450, 6
    %v2642 = vsel %vm2524, %v2640, %v2641
    %v2643 = vrot.slane %v2451, 6
    %v2644 = vsel %vm2524, %v2641, %v2643
    %v2693 = vadd.f32 %v2326, %v2527
    %v2694 = vadd.f32 %v2327, %v2529
    %v2695 = vadd.f32 %v2328, %v2532
    %v2696 = vadd.f32 %v2329, %v2534
    %v2697 = vadd.f32 %v2330, %v2537
    %v2698 = vadd.f32 %v2331, %v2539
    %v2699 = vadd.f32 %v2332, %v2542
    %v2700 = vadd.f32 %v2333, %v2544
    %v2701 = vadd.f32 %v2334, %v2547
    %v2702 = vadd.f32 %v2335, %v2549
    %v2703 = vadd.f32 %v2336, %v2552
    %v2704 = vadd.f32 %v2337, %v2554
    %v2705 = vadd.f32 %v2338, %v2557
    %v2706 = vadd.f32 %v2339, %v2559
    %v2707 = vadd.f32 %v2340, %v2562
    %v2708 = vadd.f32 %v2341, %v2564
    %v2709 = vadd.f32 %v2342, %v2567
    %v2710 = vadd.f32 %v2343, %v2569
    %v2711 = vadd.f32 %v2344, %v2572
    %v2712 = vadd.f32 %v2345, %v2574
    %v2713 = vadd.f32 %v2346, %v2577
    %v2714 = vadd.f32 %v2347, %v2579
    %v2715 = vadd.f32 %v2348, %v2582
    %v2716 = vadd.f32 %v2349, %v2584
    %v2717 = vadd.f32 %v2350, %v2587
    %v2718 = vadd.f32 %v2351, %v2589
    %v2719 = vadd.f32 %v2352, %v2592
    %v2720 = vadd.f32 %v2353, %v2594
    %v2721 = vadd.f32 %v2354, %v2597
    %v2722 = vadd.f32 %v2355, %v2599
    %v2723 = vadd.f32 %v2356, %v2602
    %v2724 = vadd.f32 %v2357, %v2604
    %v2725 = vadd.f32 %v2358, %v2607
    %v2726 = vadd.f32 %v2359, %v2609
    %v2727 = vadd.f32 %v2360, %v2612
    %v2728 = vadd.f32 %v2361, %v2614
    %v2729 = vadd.f32 %v2362, %v2617
    %v2730 = vadd.f32 %v2363, %v2619
    %v2731 = vadd.f32 %v2364, %v2622
    %v2732 = vadd.f32 %v2365, %v2624
    %v2733 = vadd.f32 %v2366, %v2627
    %v2734 = vadd.f32 %v2367, %v2629
    %v2735 = vadd.f32 %v2368, %v2632
    %v2736 = vadd.f32 %v2369, %v2634
    %v2737 = vadd.f32 %v2370, %v2637
    %v2738 = vadd.f32 %v2371, %v2639
    %v2739 = vadd.f32 %v2372, %v2642
    %v2740 = vadd.f32 %v2373, %v2644
    %v2741 = vld [vmem:[%s3] sm:$0x1]
    %v2743 = vlaneseq
    %v2744 = vshrl.u32 %v2743, 7
    %v2745 = vsub.s32 0, %v2744
    %v2746 = vrot.slane %v2741, %v2745
    %v2748 = vadd.f32 %v2693, %v2746
    %v2749 = vadd.f32 %v2694, %v2746
    %v2750 = vadd.f32 %v2695, %v2746
    %v2751 = vadd.f32 %v2696, %v2746
    %v2752 = vadd.f32 %v2697, %v2746
    %v2753 = vadd.f32 %v2698, %v2746
    %v2754 = vadd.f32 %v2699, %v2746
    %v2755 = vadd.f32 %v2700, %v2746
    %v2756 = vadd.f32 %v2701, %v2746
    %v2757 = vadd.f32 %v2702, %v2746
    %v2758 = vadd.f32 %v2703, %v2746
    %v2759 = vadd.f32 %v2704, %v2746
    %v2760 = vadd.f32 %v2705, %v2746
    %v2761 = vadd.f32 %v2706, %v2746
    %v2762 = vadd.f32 %v2707, %v2746
    %v2763 = vadd.f32 %v2708, %v2746
    %v2764 = vadd.f32 %v2709, %v2746
    %v2765 = vadd.f32 %v2710, %v2746
    %v2766 = vadd.f32 %v2711, %v2746
    %v2767 = vadd.f32 %v2712, %v2746
    %v2768 = vadd.f32 %v2713, %v2746
    %v2769 = vadd.f32 %v2714, %v2746
    %v2770 = vadd.f32 %v2715, %v2746
    %v2771 = vadd.f32 %v2716, %v2746
    %v2772 = vadd.f32 %v2717, %v2746
    %v2773 = vadd.f32 %v2718, %v2746
    %v2774 = vadd.f32 %v2719, %v2746
    %v2775 = vadd.f32 %v2720, %v2746
    %v2776 = vadd.f32 %v2721, %v2746
    %v2777 = vadd.f32 %v2722, %v2746
    %v2778 = vadd.f32 %v2723, %v2746
    %v2779 = vadd.f32 %v2724, %v2746
    %v2780 = vadd.f32 %v2725, %v2746
    %v2781 = vadd.f32 %v2726, %v2746
    %v2782 = vadd.f32 %v2727, %v2746
    %v2783 = vadd.f32 %v2728, %v2746
    %v2784 = vadd.f32 %v2729, %v2746
    %v2785 = vadd.f32 %v2730, %v2746
    %v2786 = vadd.f32 %v2731, %v2746
    %v2787 = vadd.f32 %v2732, %v2746
    %v2788 = vadd.f32 %v2733, %v2746
    %v2789 = vadd.f32 %v2734, %v2746
    %v2790 = vadd.f32 %v2735, %v2746
    %v2791 = vadd.f32 %v2736, %v2746
    %v2792 = vadd.f32 %v2737, %v2746
    %v2793 = vadd.f32 %v2738, %v2746
    %v2794 = vadd.f32 %v2739, %v2746
    %v2795 = vadd.f32 %v2740, %v2746
    %v2796 = vmax.f32 %v2748, 0.0
    %v2797 = vmax.f32 %v2749, 0.0
    %v2798 = vmax.f32 %v2750, 0.0
    %v2799 = vmax.f32 %v2751, 0.0
    %v2800 = vmax.f32 %v2752, 0.0
    %v2801 = vmax.f32 %v2753, 0.0
    %v2802 = vmax.f32 %v2754, 0.0
    %v2803 = vmax.f32 %v2755, 0.0
    %v2804 = vmax.f32 %v2756, 0.0
    %v2805 = vmax.f32 %v2757, 0.0
    %v2806 = vmax.f32 %v2758, 0.0
    %v2807 = vmax.f32 %v2759, 0.0
    %v2808 = vmax.f32 %v2760, 0.0
    %v2809 = vmax.f32 %v2761, 0.0
    %v2810 = vmax.f32 %v2762, 0.0
    %v2811 = vmax.f32 %v2763, 0.0
    %v2812 = vmax.f32 %v2764, 0.0
    %v2813 = vmax.f32 %v2765, 0.0
    %v2814 = vmax.f32 %v2766, 0.0
    %v2815 = vmax.f32 %v2767, 0.0
    %v2816 = vmax.f32 %v2768, 0.0
    %v2817 = vmax.f32 %v2769, 0.0
    %v2818 = vmax.f32 %v2770, 0.0
    %v2819 = vmax.f32 %v2771, 0.0
    %v2820 = vmax.f32 %v2772, 0.0
    %v2821 = vmax.f32 %v2773, 0.0
    %v2822 = vmax.f32 %v2774, 0.0
    %v2823 = vmax.f32 %v2775, 0.0
    %v2824 = vmax.f32 %v2776, 0.0
    %v2825 = vmax.f32 %v2777, 0.0
    %v2826 = vmax.f32 %v2778, 0.0
    %v2827 = vmax.f32 %v2779, 0.0
    %v2828 = vmax.f32 %v2780, 0.0
    %v2829 = vmax.f32 %v2781, 0.0
    %v2830 = vmax.f32 %v2782, 0.0
    %v2831 = vmax.f32 %v2783, 0.0
    %v2832 = vmax.f32 %v2784, 0.0
    %v2833 = vmax.f32 %v2785, 0.0
    %v2834 = vmax.f32 %v2786, 0.0
    %v2835 = vmax.f32 %v2787, 0.0
    %v2836 = vmax.f32 %v2788, 0.0
    %v2837 = vmax.f32 %v2789, 0.0
    %v2838 = vmax.f32 %v2790, 0.0
    %v2839 = vmax.f32 %v2791, 0.0
    %v2840 = vmax.f32 %v2792, 0.0
    %v2841 = vmax.f32 %v2793, 0.0
    %v2842 = vmax.f32 %v2794, 0.0
    %v2843 = vmax.f32 %v2795, 0.0
    %vm2892 = vcmask 1040384
    %v2893 = vrot.slane %v2796, 7
    %v2894 = vrot.slane %v2797, 7
    %v2895 = vsel %vm2892, %v2893, %v2894
    %v2896 = vrot.slane %v2798, 7
    %v2897 = vrot.slane %v2799, 7
    %v2898 = vsel %vm2892, %v2896, %v2897
    %v2899 = vrot.slane %v2800, 7
    %v2900 = vrot.slane %v2801, 7
    %v2901 = vsel %vm2892, %v2899, %v2900
    %v2902 = vrot.slane %v2802, 7
    %v2903 = vrot.slane %v2803, 7
    %v2904 = vsel %vm2892, %v2902, %v2903
    %v2905 = vrot.slane %v2804, 7
    %v2906 = vrot.slane %v2805, 7
    %v2907 = vsel %vm2892, %v2905, %v2906
    %v2908 = vrot.slane %v2806, 7
    %v2909 = vrot.slane %v2807, 7
    %v2910 = vsel %vm2892, %v2908, %v2909
    %v2911 = vrot.slane %v2808, 7
    %v2912 = vrot.slane %v2809, 7
    %v2913 = vsel %vm2892, %v2911, %v2912
    %v2914 = vrot.slane %v2810, 7
    %v2915 = vrot.slane %v2811, 7
    %v2916 = vsel %vm2892, %v2914, %v2915
    %v2917 = vrot.slane %v2812, 7
    %v2918 = vrot.slane %v2813, 7
    %v2919 = vsel %vm2892, %v2917, %v2918
    %v2920 = vrot.slane %v2814, 7
    %v2921 = vrot.slane %v2815, 7
    %v2922 = vsel %vm2892, %v2920, %v2921
    %v2923 = vrot.slane %v2816, 7
    %v2924 = vrot.slane %v2817, 7
    %v2925 = vsel %vm2892, %v2923, %v2924
    %v2926 = vrot.slane %v2818, 7
    %v2927 = vrot.slane %v2819, 7
    %v2928 = vsel %vm2892, %v2926, %v2927
    %v2929 = vrot.slane %v2820, 7
    %v2930 = vrot.slane %v2821, 7
    %v2931 = vsel %vm2892, %v2929, %v2930
    %v2932 = vrot.slane %v2822, 7
    %v2933 = vrot.slane %v2823, 7
    %v2934 = vsel %vm2892, %v2932, %v2933
    %v2935 = vrot.slane %v2824, 7
    %v2936 = vrot.slane %v2825, 7
    %v2937 = vsel %vm2892, %v2935, %v2936
    %v2938 = vrot.slane %v2826, 7
    %v2939 = vrot.slane %v2827, 7
    %v2940 = vsel %vm2892, %v2938, %v2939
    %v2941 = vrot.slane %v2828, 7
    %v2942 = vrot.slane %v2829, 7
    %v2943 = vsel %vm2892, %v2941, %v2942
    %v2944 = vrot.slane %v2830, 7
    %v2945 = vrot.slane %v2831, 7
    %v2946 = vsel %vm2892, %v2944, %v2945
    %v2947 = vrot.slane %v2832, 7
    %v2948 = vrot.slane %v2833, 7
    %v2949 = vsel %vm2892, %v2947, %v2948
    %v2950 = vrot.slane %v2834, 7
    %v2951 = vrot.slane %v2835, 7
    %v2952 = vsel %vm2892, %v2950, %v2951
    %v2953 = vrot.slane %v2836, 7
    %v2954 = vrot.slane %v2837, 7
    %v2955 = vsel %vm2892, %v2953, %v2954
    %v2956 = vrot.slane %v2838, 7
    %v2957 = vrot.slane %v2839, 7
    %v2958 = vsel %vm2892, %v2956, %v2957
    %v2959 = vrot.slane %v2840, 7
    %v2960 = vrot.slane %v2841, 7
    %v2961 = vsel %vm2892, %v2959, %v2960
    %v2962 = vrot.slane %v2842, 7
    %v2963 = vrot.slane %v2843, 7
    %v2964 = vsel %vm2892, %v2962, %v2963
    %v3037 = vsel %vm2892, 0.0, %v2893
    %v3038 = vsel %vm2892, 0.0, %v2896
    %v3039 = vsel %vm2892, 0.0, %v2899
    %v3040 = vsel %vm2892, 0.0, %v2902
    %v3041 = vsel %vm2892, 0.0, %v2905
    %v3042 = vsel %vm2892, 0.0, %v2908
    %v3043 = vsel %vm2892, 0.0, %v2911
    %v3044 = vsel %vm2892, 0.0, %v2914
    %v3045 = vsel %vm2892, 0.0, %v2917
    %v3046 = vsel %vm2892, 0.0, %v2920
    %v3047 = vsel %vm2892, 0.0, %v2923
    %v3048 = vsel %vm2892, 0.0, %v2926
    %v3049 = vsel %vm2892, 0.0, %v2929
    %v3050 = vsel %vm2892, 0.0, %v2932
    %v3051 = vsel %vm2892, 0.0, %v2935
    %v3052 = vsel %vm2892, 0.0, %v2938
    %v3053 = vsel %vm2892, 0.0, %v2941
    %v3054 = vsel %vm2892, 0.0, %v2944
    %v3055 = vsel %vm2892, 0.0, %v2947
    %v3056 = vsel %vm2892, 0.0, %v2950
    %v3057 = vsel %vm2892, 0.0, %v2953
    %v3058 = vsel %vm2892, 0.0, %v2956
    %v3059 = vsel %vm2892, 0.0, %v2959
    %v3060 = vsel %vm2892, 0.0, %v2962
    %v3061 = vsel %vm2892, %v2894, 0.0
    %v3062 = vsel %vm2892, %v2897, 0.0
    %v3063 = vsel %vm2892, %v2900, 0.0
    %v3064 = vsel %vm2892, %v2903, 0.0
    %v3065 = vsel %vm2892, %v2906, 0.0
    %v3066 = vsel %vm2892, %v2909, 0.0
    %v3067 = vsel %vm2892, %v2912, 0.0
    %v3068 = vsel %vm2892, %v2915, 0.0
    %v3069 = vsel %vm2892, %v2918, 0.0
    %v3070 = vsel %vm2892, %v2921, 0.0
    %v3071 = vsel %vm2892, %v2924, 0.0
    %v3072 = vsel %vm2892, %v2927, 0.0
    %v3073 = vsel %vm2892, %v2930, 0.0
    %v3074 = vsel %vm2892, %v2933, 0.0
    %v3075 = vsel %vm2892, %v2936, 0.0
    %v3076 = vsel %vm2892, %v2939, 0.0
    %v3077 = vsel %vm2892, %v2942, 0.0
    %v3078 = vsel %vm2892, %v2945, 0.0
    %v3079 = vsel %vm2892, %v2948, 0.0
    %v3080 = vsel %vm2892, %v2951, 0.0
    %v3081 = vsel %vm2892, %v2954, 0.0
    %v3082 = vsel %vm2892, %v2957, 0.0
    %v3083 = vsel %vm2892, %v2960, 0.0
    %v3084 = vsel %vm2892, %v2963, 0.0
    %v3085 = vpack.c.bf16 %v2895, %v3037
    %v3086 = vpack.c.bf16 %v3061, %v3061
    %v3087 = vpack.c.bf16 %v2898, %v3038
    %v3088 = vpack.c.bf16 %v3062, %v3062
    %v3089 = vpack.c.bf16 %v2901, %v3039
    %v3090 = vpack.c.bf16 %v3063, %v3063
    %v3091 = vpack.c.bf16 %v2904, %v3040
    %v3092 = vpack.c.bf16 %v3064, %v3064
    %v3093 = vpack.c.bf16 %v2907, %v3041
    %v3094 = vpack.c.bf16 %v3065, %v3065
    %v3095 = vpack.c.bf16 %v2910, %v3042
    %v3096 = vpack.c.bf16 %v3066, %v3066
    %v3097 = vpack.c.bf16 %v2913, %v3043
    %v3098 = vpack.c.bf16 %v3067, %v3067
    %v3099 = vpack.c.bf16 %v2916, %v3044
    %v3100 = vpack.c.bf16 %v3068, %v3068
    %v3101 = vpack.c.bf16 %v2919, %v3045
    %v3102 = vpack.c.bf16 %v3069, %v3069
    %v3103 = vpack.c.bf16 %v2922, %v3046
    %v3104 = vpack.c.bf16 %v3070, %v3070
    %v3105 = vpack.c.bf16 %v2925, %v3047
    %v3106 = vpack.c.bf16 %v3071, %v3071
    %v3107 = vpack.c.bf16 %v2928, %v3048
    %v3108 = vpack.c.bf16 %v3072, %v3072
    %v3109 = vpack.c.bf16 %v2931, %v3049
    %v3110 = vpack.c.bf16 %v3073, %v3073
    %v3111 = vpack.c.bf16 %v2934, %v3050
    %v3112 = vpack.c.bf16 %v3074, %v3074
    %v3113 = vpack.c.bf16 %v2937, %v3051
    %v3114 = vpack.c.bf16 %v3075, %v3075
    %v3115 = vpack.c.bf16 %v2940, %v3052
    %v3116 = vpack.c.bf16 %v3076, %v3076
    %v3117 = vpack.c.bf16 %v2943, %v3053
    %v3118 = vpack.c.bf16 %v3077, %v3077
    %v3119 = vpack.c.bf16 %v2946, %v3054
    %v3120 = vpack.c.bf16 %v3078, %v3078
    %v3121 = vpack.c.bf16 %v2949, %v3055
    %v3122 = vpack.c.bf16 %v3079, %v3079
    %v3123 = vpack.c.bf16 %v2952, %v3056
    %v3124 = vpack.c.bf16 %v3080, %v3080
    %v3125 = vpack.c.bf16 %v2955, %v3057
    %v3126 = vpack.c.bf16 %v3081, %v3081
    %v3127 = vpack.c.bf16 %v2958, %v3058
    %v3128 = vpack.c.bf16 %v3082, %v3082
    %v3129 = vpack.c.bf16 %v2961, %v3059
    %v3130 = vpack.c.bf16 %v3083, %v3083
    %v3131 = vpack.c.bf16 %v2964, %v3060
    %v3132 = vpack.c.bf16 %v3084, %v3084
    %vm3133 = vsmask.f32 7424
    %v3135 = vshrl.u32 %v3085, 16
    %v3137 = vshll.u32 %v3085, 16
    %v3139 = vrot.slane %v3137, 1
    %v3140 = vor.u32 %v3135, %v3139
    %v3142 = vshll.u32 %v3086, 16
    %v3144 = vrot.slane %v3142, 1
    %v3145 = vsel %vm3133, %v3140, %v3144
    %v3147 = vshrl.u32 %v3087, 16
    %v3149 = vshll.u32 %v3087, 16
    %v3151 = vrot.slane %v3149, 1
    %v3152 = vor.u32 %v3147, %v3151
    %v3154 = vshll.u32 %v3088, 16
    %v3156 = vrot.slane %v3154, 1
    %v3157 = vsel %vm3133, %v3152, %v3156
    %v3159 = vshrl.u32 %v3089, 16
    %v3161 = vshll.u32 %v3089, 16
    %v3163 = vrot.slane %v3161, 1
    %v3164 = vor.u32 %v3159, %v3163
    %v3166 = vshll.u32 %v3090, 16
    %v3168 = vrot.slane %v3166, 1
    %v3169 = vsel %vm3133, %v3164, %v3168
    %v3171 = vshrl.u32 %v3091, 16
    %v3173 = vshll.u32 %v3091, 16
    %v3175 = vrot.slane %v3173, 1
    %v3176 = vor.u32 %v3171, %v3175
    %v3178 = vshll.u32 %v3092, 16
    %v3180 = vrot.slane %v3178, 1
    %v3181 = vsel %vm3133, %v3176, %v3180
    %v3183 = vshrl.u32 %v3093, 16
    %v3185 = vshll.u32 %v3093, 16
    %v3187 = vrot.slane %v3185, 1
    %v3188 = vor.u32 %v3183, %v3187
    %v3190 = vshll.u32 %v3094, 16
    %v3192 = vrot.slane %v3190, 1
    %v3193 = vsel %vm3133, %v3188, %v3192
    %v3195 = vshrl.u32 %v3095, 16
    %v3197 = vshll.u32 %v3095, 16
    %v3199 = vrot.slane %v3197, 1
    %v3200 = vor.u32 %v3195, %v3199
    %v3202 = vshll.u32 %v3096, 16
    %v3204 = vrot.slane %v3202, 1
    %v3205 = vsel %vm3133, %v3200, %v3204
    %v3207 = vshrl.u32 %v3097, 16
    %v3209 = vshll.u32 %v3097, 16
    %v3211 = vrot.slane %v3209, 1
    %v3212 = vor.u32 %v3207, %v3211
    %v3214 = vshll.u32 %v3098, 16
    %v3216 = vrot.slane %v3214, 1
    %v3217 = vsel %vm3133, %v3212, %v3216
    %v3219 = vshrl.u32 %v3099, 16
    %v3221 = vshll.u32 %v3099, 16
    %v3223 = vrot.slane %v3221, 1
    %v3224 = vor.u32 %v3219, %v3223
    %v3226 = vshll.u32 %v3100, 16
    %v3228 = vrot.slane %v3226, 1
    %v3229 = vsel %vm3133, %v3224, %v3228
    %v3231 = vshrl.u32 %v3101, 16
    %v3233 = vshll.u32 %v3101, 16
    %v3235 = vrot.slane %v3233, 1
    %v3236 = vor.u32 %v3231, %v3235
    %v3238 = vshll.u32 %v3102, 16
    %v3240 = vrot.slane %v3238, 1
    %v3241 = vsel %vm3133, %v3236, %v3240
    %v3243 = vshrl.u32 %v3103, 16
    %v3245 = vshll.u32 %v3103, 16
    %v3247 = vrot.slane %v3245, 1
    %v3248 = vor.u32 %v3243, %v3247
    %v3250 = vshll.u32 %v3104, 16
    %v3252 = vrot.slane %v3250, 1
    %v3253 = vsel %vm3133, %v3248, %v3252
    %v3255 = vshrl.u32 %v3105, 16
    %v3257 = vshll.u32 %v3105, 16
    %v3259 = vrot.slane %v3257, 1
    %v3260 = vor.u32 %v3255, %v3259
    %v3262 = vshll.u32 %v3106, 16
    %v3264 = vrot.slane %v3262, 1
    %v3265 = vsel %vm3133, %v3260, %v3264
    %v3267 = vshrl.u32 %v3107, 16
    %v3269 = vshll.u32 %v3107, 16
    %v3271 = vrot.slane %v3269, 1
    %v3272 = vor.u32 %v3267, %v3271
    %v3274 = vshll.u32 %v3108, 16
    %v3276 = vrot.slane %v3274, 1
    %v3277 = vsel %vm3133, %v3272, %v3276
    %v3279 = vshrl.u32 %v3109, 16
    %v3281 = vshll.u32 %v3109, 16
    %v3283 = vrot.slane %v3281, 1
    %v3284 = vor.u32 %v3279, %v3283
    %v3286 = vshll.u32 %v3110, 16
    %v3288 = vrot.slane %v3286, 1
    %v3289 = vsel %vm3133, %v3284, %v3288
    %v3291 = vshrl.u32 %v3111, 16
    %v3293 = vshll.u32 %v3111, 16
    %v3295 = vrot.slane %v3293, 1
    %v3296 = vor.u32 %v3291, %v3295
    %v3298 = vshll.u32 %v3112, 16
    %v3300 = vrot.slane %v3298, 1
    %v3301 = vsel %vm3133, %v3296, %v3300
    %v3303 = vshrl.u32 %v3113, 16
    %v3305 = vshll.u32 %v3113, 16
    %v3307 = vrot.slane %v3305, 1
    %v3308 = vor.u32 %v3303, %v3307
    %v3310 = vshll.u32 %v3114, 16
    %v3312 = vrot.slane %v3310, 1
    %v3313 = vsel %vm3133, %v3308, %v3312
    %v3315 = vshrl.u32 %v3115, 16
    %v3317 = vshll.u32 %v3115, 16
    %v3319 = vrot.slane %v3317, 1
    %v3320 = vor.u32 %v3315, %v3319
    %v3322 = vshll.u32 %v3116, 16
    %v3324 = vrot.slane %v3322, 1
    %v3325 = vsel %vm3133, %v3320, %v3324
    %v3327 = vshrl.u32 %v3117, 16
    %v3329 = vshll.u32 %v3117, 16
    %v3331 = vrot.slane %v3329, 1
    %v3332 = vor.u32 %v3327, %v3331
    %v3334 = vshll.u32 %v3118, 16
    %v3336 = vrot.slane %v3334, 1
    %v3337 = vsel %vm3133, %v3332, %v3336
    %v3339 = vshrl.u32 %v3119, 16
    %v3341 = vshll.u32 %v3119, 16
    %v3343 = vrot.slane %v3341, 1
    %v3344 = vor.u32 %v3339, %v3343
    %v3346 = vshll.u32 %v3120, 16
    %v3348 = vrot.slane %v3346, 1
    %v3349 = vsel %vm3133, %v3344, %v3348
    %v3351 = vshrl.u32 %v3121, 16
    %v3353 = vshll.u32 %v3121, 16
    %v3355 = vrot.slane %v3353, 1
    %v3356 = vor.u32 %v3351, %v3355
    %v3358 = vshll.u32 %v3122, 16
    %v3360 = vrot.slane %v3358, 1
    %v3361 = vsel %vm3133, %v3356, %v3360
    %v3363 = vshrl.u32 %v3123, 16
    %v3365 = vshll.u32 %v3123, 16
    %v3367 = vrot.slane %v3365, 1
    %v3368 = vor.u32 %v3363, %v3367
    %v3370 = vshll.u32 %v3124, 16
    %v3372 = vrot.slane %v3370, 1
    %v3373 = vsel %vm3133, %v3368, %v3372
    %v3375 = vshrl.u32 %v3125, 16
    %v3377 = vshll.u32 %v3125, 16
    %v3379 = vrot.slane %v3377, 1
    %v3380 = vor.u32 %v3375, %v3379
    %v3382 = vshll.u32 %v3126, 16
    %v3384 = vrot.slane %v3382, 1
    %v3385 = vsel %vm3133, %v3380, %v3384
    %v3387 = vshrl.u32 %v3127, 16
    %v3389 = vshll.u32 %v3127, 16
    %v3391 = vrot.slane %v3389, 1
    %v3392 = vor.u32 %v3387, %v3391
    %v3394 = vshll.u32 %v3128, 16
    %v3396 = vrot.slane %v3394, 1
    %v3397 = vsel %vm3133, %v3392, %v3396
    %v3399 = vshrl.u32 %v3129, 16
    %v3401 = vshll.u32 %v3129, 16
    %v3403 = vrot.slane %v3401, 1
    %v3404 = vor.u32 %v3399, %v3403
    %v3406 = vshll.u32 %v3130, 16
    %v3408 = vrot.slane %v3406, 1
    %v3409 = vsel %vm3133, %v3404, %v3408
    %v3411 = vshrl.u32 %v3131, 16
    %v3413 = vshll.u32 %v3131, 16
    %v3415 = vrot.slane %v3413, 1
    %v3416 = vor.u32 %v3411, %v3415
    %v3418 = vshll.u32 %v3132, 16
    %v3420 = vrot.slane %v3418, 1
    %v3421 = vsel %vm3133, %v3416, %v3420
    %vm3494 = vcmask 1046528
    %v3495 = vrot.slane %v3085, 1
    %v3496 = vrot.slane %v3086, 1
    %v3497 = vsel %vm3494, %v3495, %v3496
    %v3498 = vrot.slane %v3087, 1
    %v3499 = vrot.slane %v3088, 1
    %v3500 = vsel %vm3494, %v3498, %v3499
    %v3501 = vrot.slane %v3089, 1
    %v3502 = vrot.slane %v3090, 1
    %v3503 = vsel %vm3494, %v3501, %v3502
    %v3504 = vrot.slane %v3091, 1
    %v3505 = vrot.slane %v3092, 1
    %v3506 = vsel %vm3494, %v3504, %v3505
    %v3507 = vrot.slane %v3093, 1
    %v3508 = vrot.slane %v3094, 1
    %v3509 = vsel %vm3494, %v3507, %v3508
    %v3510 = vrot.slane %v3095, 1
    %v3511 = vrot.slane %v3096, 1
    %v3512 = vsel %vm3494, %v3510, %v3511
    %v3513 = vrot.slane %v3097, 1
    %v3514 = vrot.slane %v3098, 1
    %v3515 = vsel %vm3494, %v3513, %v3514
    %v3516 = vrot.slane %v3099, 1
    %v3517 = vrot.slane %v3100, 1
    %v3518 = vsel %vm3494, %v3516, %v3517
    %v3519 = vrot.slane %v3101, 1
    %v3520 = vrot.slane %v3102, 1
    %v3521 = vsel %vm3494, %v3519, %v3520
    %v3522 = vrot.slane %v3103, 1
    %v3523 = vrot.slane %v3104, 1
    %v3524 = vsel %vm3494, %v3522, %v3523
    %v3525 = vrot.slane %v3105, 1
    %v3526 = vrot.slane %v3106, 1
    %v3527 = vsel %vm3494, %v3525, %v3526
    %v3528 = vrot.slane %v3107, 1
    %v3529 = vrot.slane %v3108, 1
    %v3530 = vsel %vm3494, %v3528, %v3529
    %v3531 = vrot.slane %v3109, 1
    %v3532 = vrot.slane %v3110, 1
    %v3533 = vsel %vm3494, %v3531, %v3532
    %v3534 = vrot.slane %v3111, 1
    %v3535 = vrot.slane %v3112, 1
    %v3536 = vsel %vm3494, %v3534, %v3535
    %v3537 = vrot.slane %v3113, 1
    %v3538 = vrot.slane %v3114, 1
    %v3539 = vsel %vm3494, %v3537, %v3538
    %v3540 = vrot.slane %v3115, 1
    %v3541 = vrot.slane %v3116, 1
    %v3542 = vsel %vm3494, %v3540, %v3541
    %v3543 = vrot.slane %v3117, 1
    %v3544 = vrot.slane %v3118, 1
    %v3545 = vsel %vm3494, %v3543, %v3544
    %v3546 = vrot.slane %v3119, 1
    %v3547 = vrot.slane %v3120, 1
    %v3548 = vsel %vm3494, %v3546, %v3547
    %v3549 = vrot.slane %v3121, 1
    %v3550 = vrot.slane %v3122, 1
    %v3551 = vsel %vm3494, %v3549, %v3550
    %v3552 = vrot.slane %v3123, 1
    %v3553 = vrot.slane %v3124, 1
    %v3554 = vsel %vm3494, %v3552, %v3553
    %v3555 = vrot.slane %v3125, 1
    %v3556 = vrot.slane %v3126, 1
    %v3557 = vsel %vm3494, %v3555, %v3556
    %v3558 = vrot.slane %v3127, 1
    %v3559 = vrot.slane %v3128, 1
    %v3560 = vsel %vm3494, %v3558, %v3559
    %v3561 = vrot.slane %v3129, 1
    %v3562 = vrot.slane %v3130, 1
    %v3563 = vsel %vm3494, %v3561, %v3562
    %v3564 = vrot.slane %v3131, 1
    %v3565 = vrot.slane %v3132, 1
    %v3566 = vsel %vm3494, %v3564, %v3565
    %v3591 = vld [vmem:[%s4] sm:$0xf]
    %v3592 = vld [vmem:[%s4 + $0x4] sm:$0xf]
    %v3593 = vld [vmem:[%s4 + $0x8] sm:$0xf]
    %v3594 = vld [vmem:[%s4 + $0xc] sm:$0xf]
    %v3595 = vld [vmem:[%s4 + $0x10] sm:$0xf]
    %v3596 = vld [vmem:[%s4 + $0x14] sm:$0xf]
    %v3597 = vld [vmem:[%s4 + $0x18] sm:$0xf]
    %v3598 = vld [vmem:[%s4 + $0x1c] sm:$0xf]
    %v3599 = vld [vmem:[%s4 + $0x20] sm:$0xf]
    %v3600 = vld [vmem:[%s4 + $0x24] sm:$0xf]
    %v3601 = vld [vmem:[%s4 + $0x28] sm:$0xf]
    %v3602 = vld [vmem:[%s4 + $0x2c] sm:$0xf]
    %v3603 = vld [vmem:[%s4 + $0x30] sm:$0xf]
    %v3604 = vld [vmem:[%s4 + $0x34] sm:$0xf]
    %v3605 = vld [vmem:[%s4 + $0x38] sm:$0xf]
    %v3606 = vld [vmem:[%s4 + $0x3c] sm:$0xf]
    %v3607 = vld [vmem:[%s4 + $0x40] sm:$0xf]
    %v3608 = vld [vmem:[%s4 + $0x44] sm:$0xf]
    %v3609 = vld [vmem:[%s4 + $0x48] sm:$0xf]
    %v3610 = vld [vmem:[%s4 + $0x4c] sm:$0xf]
    %v3611 = vld [vmem:[%s4 + $0x50] sm:$0xf]
    %v3612 = vld [vmem:[%s4 + $0x54] sm:$0xf]
    %v3613 = vld [vmem:[%s4 + $0x58] sm:$0xf]
    %v3614 = vld [vmem:[%s4 + $0x5c] sm:$0xf]
    %v3615 = vld [vmem:[%s4 + $0x60] sm:$0xf]
    %v3616 = vld [vmem:[%s4 + $0x64] sm:$0xf]
    %v3617 = vld [vmem:[%s4 + $0x68] sm:$0xf]
    %v3618 = vld [vmem:[%s4 + $0x6c] sm:$0xf]
    %v3619 = vld [vmem:[%s4 + $0x70] sm:$0xf]
    %v3620 = vld [vmem:[%s4 + $0x74] sm:$0xf]
    %v3621 = vld [vmem:[%s4 + $0x78] sm:$0xf]
    %v3622 = vld [vmem:[%s4 + $0x7c] sm:$0xf]
    %v3623 = vld [vmem:[%s4 + $0x80] sm:$0xf]
    %v3624 = vld [vmem:[%s4 + $0x84] sm:$0xf]
    %v3625 = vld [vmem:[%s4 + $0x88] sm:$0xf]
    %v3626 = vld [vmem:[%s4 + $0x8c] sm:$0xf]
    %v3627 = vld [vmem:[%s4 + $0x90] sm:$0xf]
    %v3628 = vld [vmem:[%s4 + $0x94] sm:$0xf]
    %v3629 = vld [vmem:[%s4 + $0x98] sm:$0xf]
    %v3630 = vld [vmem:[%s4 + $0x9c] sm:$0xf]
    %v3631 = vld [vmem:[%s4 + $0xa0] sm:$0xf]
    %v3632 = vld [vmem:[%s4 + $0xa4] sm:$0xf]
    %v3633 = vld [vmem:[%s4 + $0xa8] sm:$0xf]
    %v3634 = vld [vmem:[%s4 + $0xac] sm:$0xf]
    %v3635 = vld [vmem:[%s4 + $0xb0] sm:$0xf]
    %v3636 = vld [vmem:[%s4 + $0xb4] sm:$0xf]
    %v3637 = vld [vmem:[%s4 + $0xb8] sm:$0xf]
    %v3638 = vld [vmem:[%s4 + $0xbc] sm:$0xf]
    %v3639 = vld [vmem:[%s5] sm:$0x1]
    %v3641 = vlaneseq
    %v3642 = vshrl.u32 %v3641, 7
    %v3643 = vsub.s32 0, %v3642
    %v3644 = vrot.slane %v3639, %v3643
    %v3694 = vunpack.c.l.b16 %v3591
    %v3695 = vunpack.c.l.b16 %v3592
    %v3696 = vunpack.c.l.b16 %v3593
    %v3697 = vunpack.c.l.b16 %v3594
    %v3698 = vunpack.c.l.b16 %v3595
    %v3699 = vunpack.c.l.b16 %v3596
    %v3700 = vunpack.c.l.b16 %v3597
    %v3701 = vunpack.c.l.b16 %v3598
    %v3702 = vunpack.c.l.b16 %v3599
    %v3703 = vunpack.c.l.b16 %v3600
    %v3704 = vunpack.c.l.b16 %v3601
    %v3705 = vunpack.c.l.b16 %v3602
    %v3706 = vunpack.c.l.b16 %v3603
    %v3707 = vunpack.c.l.b16 %v3604
    %v3708 = vunpack.c.l.b16 %v3605
    %v3709 = vunpack.c.l.b16 %v3606
    %v3710 = vunpack.c.l.b16 %v3607
    %v3711 = vunpack.c.l.b16 %v3608
    %v3712 = vunpack.c.l.b16 %v3609
    %v3713 = vunpack.c.l.b16 %v3610
    %v3714 = vunpack.c.l.b16 %v3611
    %v3715 = vunpack.c.l.b16 %v3612
    %v3716 = vunpack.c.l.b16 %v3613
    %v3717 = vunpack.c.l.b16 %v3614
    %v3718 = vunpack.c.l.b16 %v3615
    %v3719 = vunpack.c.l.b16 %v3616
    %v3720 = vunpack.c.l.b16 %v3617
    %v3721 = vunpack.c.l.b16 %v3618
    %v3722 = vunpack.c.l.b16 %v3619
    %v3723 = vunpack.c.l.b16 %v3620
    %v3724 = vunpack.c.l.b16 %v3621
    %v3725 = vunpack.c.l.b16 %v3622
    %v3726 = vunpack.c.l.b16 %v3623
    %v3727 = vunpack.c.l.b16 %v3624
    %v3728 = vunpack.c.l.b16 %v3625
    %v3729 = vunpack.c.l.b16 %v3626
    %v3730 = vunpack.c.l.b16 %v3627
    %v3731 = vunpack.c.l.b16 %v3628
    %v3732 = vunpack.c.l.b16 %v3629
    %v3733 = vunpack.c.l.b16 %v3630
    %v3734 = vunpack.c.l.b16 %v3631
    %v3735 = vunpack.c.l.b16 %v3632
    %v3736 = vunpack.c.l.b16 %v3633
    %v3737 = vunpack.c.l.b16 %v3634
    %v3738 = vunpack.c.l.b16 %v3635
    %v3739 = vunpack.c.l.b16 %v3636
    %v3740 = vunpack.c.l.b16 %v3637
    %v3741 = vunpack.c.l.b16 %v3638
    %v3742 = vpack.c.b16 %v3695, %v3694
    %v3743 = vpack.c.b16 %v3697, %v3696
    %v3744 = vpack.c.b16 %v3699, %v3698
    %v3745 = vpack.c.b16 %v3701, %v3700
    %v3746 = vpack.c.b16 %v3703, %v3702
    %v3747 = vpack.c.b16 %v3705, %v3704
    %v3748 = vpack.c.b16 %v3707, %v3706
    %v3749 = vpack.c.b16 %v3709, %v3708
    %v3750 = vpack.c.b16 %v3711, %v3710
    %v3751 = vpack.c.b16 %v3713, %v3712
    %v3752 = vpack.c.b16 %v3715, %v3714
    %v3753 = vpack.c.b16 %v3717, %v3716
    %v3754 = vpack.c.b16 %v3719, %v3718
    %v3755 = vpack.c.b16 %v3721, %v3720
    %v3756 = vpack.c.b16 %v3723, %v3722
    %v3757 = vpack.c.b16 %v3725, %v3724
    %v3758 = vpack.c.b16 %v3727, %v3726
    %v3759 = vpack.c.b16 %v3729, %v3728
    %v3760 = vpack.c.b16 %v3731, %v3730
    %v3761 = vpack.c.b16 %v3733, %v3732
    %v3762 = vpack.c.b16 %v3735, %v3734
    %v3763 = vpack.c.b16 %v3737, %v3736
    %v3764 = vpack.c.b16 %v3739, %v3738
    %v3765 = vpack.c.b16 %v3741, %v3740
    %3790 = vmatprep.subr.bf16.mxu0 0
    %3791 = vmatpush1.bf16.msra.mxu0 %v3742
    %3792 = vmatprep.subr.bf16.mxu0 0
    %3793 = vmatpush1.bf16.msra.mxu0 %v3743
    %3794 = vmatprep.subr.bf16.mxu0 0
    %3795 = vmatpush1.bf16.msra.mxu0 %v3744
    %3796 = vmatprep.subr.bf16.mxu0 0
    %3797 = vmatpush1.bf16.msra.mxu0 %v3745
    %3798 = vmatprep.subr.bf16.mxu0 0
    %3799 = vmatpush1.bf16.msra.mxu0 %v3746
    %3800 = vmatprep.subr.bf16.mxu0 0
    %3801 = vmatpush1.bf16.msra.mxu0 %v3747
    %3802 = vmatprep.subr.bf16.mxu0 0
    %3803 = vmatpush1.bf16.msra.mxu0 %v3748
    %3804 = vmatprep.subr.bf16.mxu0 0
    %3805 = vmatpush1.bf16.msra.mxu0 %v3749
    %3806 = vmatprep.subr.bf16.mxu0 0
    %3807 = vmatpush1.bf16.msra.mxu0 %v3750
    %3808 = vmatprep.subr.bf16.mxu0 0
    %3809 = vmatpush1.bf16.msra.mxu0 %v3751
    %3810 = vmatprep.subr.bf16.mxu0 0
    %3811 = vmatpush1.bf16.msra.mxu0 %v3752
    %3812 = vmatprep.subr.bf16.mxu0 0
    %3813 = vmatpush1.bf16.msra.mxu0 %v3753
    %3814 = vmatprep.subr.bf16.mxu0 0
    %3815 = vmatpush1.bf16.msra.mxu0 %v3754
    %3816 = vmatprep.subr.bf16.mxu0 0
    %3817 = vmatpush1.bf16.msra.mxu0 %v3755
    %3818 = vmatprep.subr.bf16.mxu0 0
    %3819 = vmatpush1.bf16.msra.mxu0 %v3756
    %3820 = vmatprep.subr.bf16.mxu0 0
    %3821 = vmatpush1.bf16.msra.mxu0 %v3757
    %3822 = vmatprep.mubr.bf16.mxu0 %v3145
    %3823 = vmatmul.mubr.bf16.gmra.mrb[0].mxu0 %v3085
    %v3824 = vpop.f32.mrb[0].mxu0
    %v3825 = vadd.f32 %v3644, %v3824
    %v3826 = vpop.f32.mrb[0].mxu0
    %v3827 = vpop.f32.mrb[0].mxu0
    %v3828 = vadd.f32 %v3644, %v3827
    %v3829 = vpop.f32.mrb[0].mxu0
    %3830 = vmatprep.mubr.bf16.mxu0 %v3157
    %3831 = vmatmul.mubr.bf16.gmra.mrb[0].mxu0 %v3087
    %v3832 = vpop.f32.mrb[0].mxu0
    %v3833 = vadd.f32 %v3644, %v3832
    %v3834 = vpop.f32.mrb[0].mxu0
    %v3835 = vpop.f32.mrb[0].mxu0
    %v3836 = vadd.f32 %v3644, %v3835
    %v3837 = vpop.f32.mrb[0].mxu0
    %3838 = vmatprep.mubr.bf16.mxu0 %v3169
    %3839 = vmatmul.mubr.bf16.gmra.mrb[0].mxu0 %v3089
    %v3840 = vpop.f32.mrb[0].mxu0
    %v3841 = vadd.f32 %v3644, %v3840
    %v3842 = vpop.f32.mrb[0].mxu0
    %v3843 = vpop.f32.mrb[0].mxu0
    %v3844 = vadd.f32 %v3644, %v3843
    %v3845 = vpop.f32.mrb[0].mxu0
    %3846 = vmatprep.mubr.bf16.mxu0 %v3181
    %3847 = vmatmul.mubr.bf16.gmra.mrb[0].mxu0 %v3091
    %v3848 = vpop.f32.mrb[0].mxu0
    %v3849 = vadd.f32 %v3644, %v3848
    %v3850 = vpop.f32.mrb[0].mxu0
    %v3851 = vpop.f32.mrb[0].mxu0
    %v3852 = vadd.f32 %v3644, %v3851
    %v3853 = vpop.f32.mrb[0].mxu0
    %3854 = vmatprep.mubr.bf16.mxu0 %v3193
    %3855 = vmatmul.mubr.bf16.gmra.mrb[0].mxu0 %v3093
    %v3856 = vpop.f32.mrb[0].mxu0
    %v3857 = vadd.f32 %v3644, %v3856
    %v3858 = vpop.f32.mrb[0].mxu0
    %v3859 = vpop.f32.mrb[0].mxu0
    %v3860 = vadd.f32 %v3644, %v3859
    %v3861 = vpop.f32.mrb[0].mxu0
    %3862 = vmatprep.mubr.bf16.mxu0 %v3205
    %3863 = vmatmul.mubr.bf16.gmra.mrb[0].mxu0 %v3095
    %v3864 = vpop.f32.mrb[0].mxu0
    %v3865 = vadd.f32 %v3644, %v3864
    %v3866 = vpop.f32.mrb[0].mxu0
    %v3867 = vpop.f32.mrb[0].mxu0
    %v3868 = vadd.f32 %v3644, %v3867
    %v3869 = vpop.f32.mrb[0].mxu0
    %3870 = vmatprep.mubr.bf16.mxu0 %v3217
    %3871 = vmatmul.mubr.bf16.gmra.mrb[0].mxu0 %v3097
    %v3872 = vpop.f32.mrb[0].mxu0
    %v3873 = vadd.f32 %v3644, %v3872
    %v3874 = vpop.f32.mrb[0].mxu0
    %v3875 = vpop.f32.mrb[0].mxu0
    %v3876 = vadd.f32 %v3644, %v3875
    %v3877 = vpop.f32.mrb[0].mxu0
    %3878 = vmatprep.mubr.bf16.mxu0 %v3229
    %3879 = vmatmul.mubr.bf16.gmra.mrb[0].mxu0 %v3099
    %v3880 = vpop.f32.mrb[0].mxu0
    %v3881 = vadd.f32 %v3644, %v3880
    %v3882 = vpop.f32.mrb[0].mxu0
    %v3883 = vpop.f32.mrb[0].mxu0
    %v3884 = vadd.f32 %v3644, %v3883
    %v3885 = vpop.f32.mrb[0].mxu0
    %3886 = vmatprep.mubr.bf16.mxu0 %v3241
    %3887 = vmatmul.mubr.bf16.gmra.mrb[0].mxu0 %v3101
    %v3888 = vpop.f32.mrb[0].mxu0
    %v3889 = vadd.f32 %v3644, %v3888
    %v3890 = vpop.f32.mrb[0].mxu0
    %v3891 = vpop.f32.mrb[0].mxu0
    %v3892 = vadd.f32 %v3644, %v3891
    %v3893 = vpop.f32.mrb[0].mxu0
    %3894 = vmatprep.mubr.bf16.mxu0 %v3253
    %3895 = vmatmul.mubr.bf16.gmra.mrb[0].mxu0 %v3103
    %v3896 = vpop.f32.mrb[0].mxu0
    %v3897 = vadd.f32 %v3644, %v3896
    %v3898 = vpop.f32.mrb[0].mxu0
    %v3899 = vpop.f32.mrb[0].mxu0
    %v3900 = vadd.f32 %v3644, %v3899
    %v3901 = vpop.f32.mrb[0].mxu0
    %3902 = vmatprep.mubr.bf16.mxu0 %v3265
    %3903 = vmatmul.mubr.bf16.gmra.mrb[0].mxu0 %v3105
    %v3904 = vpop.f32.mrb[0].mxu0
    %v3905 = vadd.f32 %v3644, %v3904
    %v3906 = vpop.f32.mrb[0].mxu0
    %v3907 = vpop.f32.mrb[0].mxu0
    %v3908 = vadd.f32 %v3644, %v3907
    %v3909 = vpop.f32.mrb[0].mxu0
    %3910 = vmatprep.mubr.bf16.mxu0 %v3277
    %3911 = vmatmul.mubr.bf16.gmra.mrb[0].mxu0 %v3107
    %v3912 = vpop.f32.mrb[0].mxu0
    %v3913 = vadd.f32 %v3644, %v3912
    %v3914 = vpop.f32.mrb[0].mxu0
    %v3915 = vpop.f32.mrb[0].mxu0
    %v3916 = vadd.f32 %v3644, %v3915
    %v3917 = vpop.f32.mrb[0].mxu0
    %3918 = vmatprep.mubr.bf16.mxu0 %v3289
    %3919 = vmatmul.mubr.bf16.gmra.mrb[0].mxu0 %v3109
    %v3920 = vpop.f32.mrb[0].mxu0
    %v3921 = vadd.f32 %v3644, %v3920
    %v3922 = vpop.f32.mrb[0].mxu0
    %v3923 = vpop.f32.mrb[0].mxu0
    %v3924 = vadd.f32 %v3644, %v3923
    %v3925 = vpop.f32.mrb[0].mxu0
    %3926 = vmatprep.mubr.bf16.mxu0 %v3301
    %3927 = vmatmul.mubr.bf16.gmra.mrb[0].mxu0 %v3111
    %v3928 = vpop.f32.mrb[0].mxu0
    %v3929 = vadd.f32 %v3644, %v3928
    %v3930 = vpop.f32.mrb[0].mxu0
    %v3931 = vpop.f32.mrb[0].mxu0
    %v3932 = vadd.f32 %v3644, %v3931
    %v3933 = vpop.f32.mrb[0].mxu0
    %3934 = vmatprep.mubr.bf16.mxu0 %v3313
    %3935 = vmatmul.mubr.bf16.gmra.mrb[0].mxu0 %v3113
    %v3936 = vpop.f32.mrb[0].mxu0
    %v3937 = vadd.f32 %v3644, %v3936
    %v3938 = vpop.f32.mrb[0].mxu0
    %v3939 = vpop.f32.mrb[0].mxu0
    %v3940 = vadd.f32 %v3644, %v3939
    %v3941 = vpop.f32.mrb[0].mxu0
    %3942 = vmatprep.mubr.bf16.mxu0 %v3325
    %3943 = vmatmul.mubr.bf16.gmra.mrb[0].mxu0 %v3115
    %v3944 = vpop.f32.mrb[0].mxu0
    %v3945 = vadd.f32 %v3644, %v3944
    %v3946 = vpop.f32.mrb[0].mxu0
    %v3947 = vpop.f32.mrb[0].mxu0
    %v3948 = vadd.f32 %v3644, %v3947
    %v3949 = vpop.f32.mrb[0].mxu0
    %3950 = vmatprep.mubr.bf16.mxu0 %v3337
    %3951 = vmatmul.mubr.bf16.gmra.mrb[0].mxu0 %v3117
    %v3952 = vpop.f32.mrb[0].mxu0
    %v3953 = vadd.f32 %v3644, %v3952
    %v3954 = vpop.f32.mrb[0].mxu0
    %v3955 = vpop.f32.mrb[0].mxu0
    %v3956 = vadd.f32 %v3644, %v3955
    %v3957 = vpop.f32.mrb[0].mxu0
    %3958 = vmatprep.mubr.bf16.mxu0 %v3349
    %3959 = vmatmul.mubr.bf16.gmra.mrb[0].mxu0 %v3119
    %v3960 = vpop.f32.mrb[0].mxu0
    %v3961 = vadd.f32 %v3644, %v3960
    %v3962 = vpop.f32.mrb[0].mxu0
    %v3963 = vpop.f32.mrb[0].mxu0
    %v3964 = vadd.f32 %v3644, %v3963
    %v3965 = vpop.f32.mrb[0].mxu0
    %3966 = vmatprep.mubr.bf16.mxu0 %v3361
    %3967 = vmatmul.mubr.bf16.gmra.mrb[0].mxu0 %v3121
    %v3968 = vpop.f32.mrb[0].mxu0
    %v3969 = vadd.f32 %v3644, %v3968
    %v3970 = vpop.f32.mrb[0].mxu0
    %v3971 = vpop.f32.mrb[0].mxu0
    %v3972 = vadd.f32 %v3644, %v3971
    %v3973 = vpop.f32.mrb[0].mxu0
    %3974 = vmatprep.mubr.bf16.mxu0 %v3373
    %3975 = vmatmul.mubr.bf16.gmra.mrb[0].mxu0 %v3123
    %v3976 = vpop.f32.mrb[0].mxu0
    %v3977 = vadd.f32 %v3644, %v3976
    %v3978 = vpop.f32.mrb[0].mxu0
    %v3979 = vpop.f32.mrb[0].mxu0
    %v3980 = vadd.f32 %v3644, %v3979
    %v3981 = vpop.f32.mrb[0].mxu0
    %3982 = vmatprep.mubr.bf16.mxu0 %v3385
    %3983 = vmatmul.mubr.bf16.gmra.mrb[0].mxu0 %v3125
    %v3984 = vpop.f32.mrb[0].mxu0
    %v3985 = vadd.f32 %v3644, %v3984
    %v3986 = vpop.f32.mrb[0].mxu0
    %v3987 = vpop.f32.mrb[0].mxu0
    %v3988 = vadd.f32 %v3644, %v3987
    %v3989 = vpop.f32.mrb[0].mxu0
    %3990 = vmatprep.mubr.bf16.mxu0 %v3397
    %3991 = vmatmul.mubr.bf16.gmra.mrb[0].mxu0 %v3127
    %v3992 = vpop.f32.mrb[0].mxu0
    %v3993 = vadd.f32 %v3644, %v3992
    %v3994 = vpop.f32.mrb[0].mxu0
    %v3995 = vpop.f32.mrb[0].mxu0
    %v3996 = vadd.f32 %v3644, %v3995
    %v3997 = vpop.f32.mrb[0].mxu0
    %3998 = vmatprep.mubr.bf16.mxu0 %v3409
    %3999 = vmatmul.mubr.bf16.gmra.mrb[0].mxu0 %v3129
    %v4000 = vpop.f32.mrb[0].mxu0
    %v4001 = vadd.f32 %v3644, %v4000
    %v4002 = vpop.f32.mrb[0].mxu0
    %v4003 = vpop.f32.mrb[0].mxu0
    %v4004 = vadd.f32 %v3644, %v4003
    %v4005 = vpop.f32.mrb[0].mxu0
    %4006 = vmatprep.mubr.bf16.mxu0 %v3421
    %4007 = vmatmul.mubr.bf16.gmra.mrb[0].mxu0 %v3131
    %v4008 = vpop.f32.mrb[0].mxu0
    %v4009 = vadd.f32 %v3644, %v4008
    %v4010 = vpop.f32.mrb[0].mxu0
    %v4011 = vpop.f32.mrb[0].mxu0
    %v4012 = vadd.f32 %v3644, %v4011
    %v4013 = vpop.f32.mrb[0].mxu0
    %4014 = vdwg.mxu0
    %4015 = vmatprep.subr.bf16.mxu0 0
    %4016 = vmatpush1.bf16.msra.mxu0 %v3758
    %4017 = vmatprep.subr.bf16.mxu0 0
    %4018 = vmatpush1.bf16.msra.mxu0 %v3759
    %4019 = vmatprep.subr.bf16.mxu0 0
    %4020 = vmatpush1.bf16.msra.mxu0 %v3760
    %4021 = vmatprep.subr.bf16.mxu0 0
    %4022 = vmatpush1.bf16.msra.mxu0 %v3761
    %4023 = vmatprep.subr.bf16.mxu0 0
    %4024 = vmatpush1.bf16.msra.mxu0 %v3762
    %4025 = vmatprep.subr.bf16.mxu0 0
    %4026 = vmatpush1.bf16.msra.mxu0 %v3763
    %4027 = vmatprep.subr.bf16.mxu0 0
    %4028 = vmatpush1.bf16.msra.mxu0 %v3764
    %4029 = vmatprep.subr.bf16.mxu0 0
    %4030 = vmatpush1.bf16.msra.mxu0 %v3765
    %4031 = vmatprep.subr.bf16.mxu0 0
    %4032 = vmatpush1.bf16.msra.mxu0 0
    %4033 = vmatprep.subr.bf16.mxu0 0
    %4034 = vmatpush1.bf16.msra.mxu0 0
    %4035 = vmatprep.subr.bf16.mxu0 0
    %4036 = vmatpush1.bf16.msra.mxu0 0
    %4037 = vmatprep.subr.bf16.mxu0 0
    %4038 = vmatpush1.bf16.msra.mxu0 0
    %4039 = vmatprep.subr.bf16.mxu0 0
    %4040 = vmatpush1.bf16.msra.mxu0 0
    %4041 = vmatprep.subr.bf16.mxu0 0
    %4042 = vmatpush1.bf16.msra.mxu0 0
    %4043 = vmatprep.subr.bf16.mxu0 0
    %4044 = vmatpush1.bf16.msra.mxu0 0
    %4045 = vmatprep.subr.bf16.mxu0 0
    %4046 = vmatpush1.bf16.msra.mxu0 0
    %4047 = vmatprep.mubr.bf16.mxu0 0
    %4048 = vmatmul.mubr.bf16.gmra.mrb[0].mxu0 %v3497
    %v4049 = vpop.f32.mrb[0].mxu0
    %v4050 = vadd.f32 %v3825, %v4049
    %v4051 = vpop.f32.mrb[0].mxu0
    %v4052 = vpop.f32.mrb[0].mxu0
    %v4053 = vadd.f32 %v3828, %v4052
    %v4054 = vpop.f32.mrb[0].mxu0
    %4055 = vmatprep.mubr.bf16.mxu0 0
    %4056 = vmatmul.mubr.bf16.gmra.mrb[0].mxu0 %v3500
    %v4057 = vpop.f32.mrb[0].mxu0
    %v4058 = vadd.f32 %v3833, %v4057
    %v4059 = vpop.f32.mrb[0].mxu0
    %v4060 = vpop.f32.mrb[0].mxu0
    %v4061 = vadd.f32 %v3836, %v4060
    %v4062 = vpop.f32.mrb[0].mxu0
    %4063 = vmatprep.mubr.bf16.mxu0 0
    %4064 = vmatmul.mubr.bf16.gmra.mrb[0].mxu0 %v3503
    %v4065 = vpop.f32.mrb[0].mxu0
    %v4066 = vadd.f32 %v3841, %v4065
    %v4067 = vpop.f32.mrb[0].mxu0
    %v4068 = vpop.f32.mrb[0].mxu0
    %v4069 = vadd.f32 %v3844, %v4068
    %v4070 = vpop.f32.mrb[0].mxu0
    %4071 = vmatprep.mubr.bf16.mxu0 0
    %4072 = vmatmul.mubr.bf16.gmra.mrb[0].mxu0 %v3506
    %v4073 = vpop.f32.mrb[0].mxu0
    %v4074 = vadd.f32 %v3849, %v4073
    %v4075 = vpop.f32.mrb[0].mxu0
    %v4076 = vpop.f32.mrb[0].mxu0
    %v4077 = vadd.f32 %v3852, %v4076
    %v4078 = vpop.f32.mrb[0].mxu0
    %4079 = vmatprep.mubr.bf16.mxu0 0
    %4080 = vmatmul.mubr.bf16.gmra.mrb[0].mxu0 %v3509
    %v4081 = vpop.f32.mrb[0].mxu0
    %v4082 = vadd.f32 %v3857, %v4081
    %v4083 = vpop.f32.mrb[0].mxu0
    %v4084 = vpop.f32.mrb[0].mxu0
    %v4085 = vadd.f32 %v3860, %v4084
    %v4086 = vpop.f32.mrb[0].mxu0
    %4087 = vmatprep.mubr.bf16.mxu0 0
    %4088 = vmatmul.mubr.bf16.gmra.mrb[0].mxu0 %v3512
    %v4089 = vpop.f32.mrb[0].mxu0
    %v4090 = vadd.f32 %v3865, %v4089
    %v4091 = vpop.f32.mrb[0].mxu0
    %v4092 = vpop.f32.mrb[0].mxu0
    %v4093 = vadd.f32 %v3868, %v4092
    %v4094 = vpop.f32.mrb[0].mxu0
    %4095 = vmatprep.mubr.bf16.mxu0 0
    %4096 = vmatmul.mubr.bf16.gmra.mrb[0].mxu0 %v3515
    %v4097 = vpop.f32.mrb[0].mxu0
    %v4098 = vadd.f32 %v3873, %v4097
    %v4099 = vpop.f32.mrb[0].mxu0
    %v4100 = vpop.f32.mrb[0].mxu0
    %v4101 = vadd.f32 %v3876, %v4100
    %v4102 = vpop.f32.mrb[0].mxu0
    %4103 = vmatprep.mubr.bf16.mxu0 0
    %4104 = vmatmul.mubr.bf16.gmra.mrb[0].mxu0 %v3518
    %v4105 = vpop.f32.mrb[0].mxu0
    %v4106 = vadd.f32 %v3881, %v4105
    %v4107 = vpop.f32.mrb[0].mxu0
    %v4108 = vpop.f32.mrb[0].mxu0
    %v4109 = vadd.f32 %v3884, %v4108
    %v4110 = vpop.f32.mrb[0].mxu0
    %4111 = vmatprep.mubr.bf16.mxu0 0
    %4112 = vmatmul.mubr.bf16.gmra.mrb[0].mxu0 %v3521
    %v4113 = vpop.f32.mrb[0].mxu0
    %v4114 = vadd.f32 %v3889, %v4113
    %v4115 = vpop.f32.mrb[0].mxu0
    %v4116 = vpop.f32.mrb[0].mxu0
    %v4117 = vadd.f32 %v3892, %v4116
    %v4118 = vpop.f32.mrb[0].mxu0
    %4119 = vmatprep.mubr.bf16.mxu0 0
    %4120 = vmatmul.mubr.bf16.gmra.mrb[0].mxu0 %v3524
    %v4121 = vpop.f32.mrb[0].mxu0
    %v4122 = vadd.f32 %v3897, %v4121
    %v4123 = vpop.f32.mrb[0].mxu0
    %v4124 = vpop.f32.mrb[0].mxu0
    %v4125 = vadd.f32 %v3900, %v4124
    %v4126 = vpop.f32.mrb[0].mxu0
    %4127 = vmatprep.mubr.bf16.mxu0 0
    %4128 = vmatmul.mubr.bf16.gmra.mrb[0].mxu0 %v3527
    %v4129 = vpop.f32.mrb[0].mxu0
    %v4130 = vadd.f32 %v3905, %v4129
    %v4131 = vpop.f32.mrb[0].mxu0
    %v4132 = vpop.f32.mrb[0].mxu0
    %v4133 = vadd.f32 %v3908, %v4132
    %v4134 = vpop.f32.mrb[0].mxu0
    %4135 = vmatprep.mubr.bf16.mxu0 0
    %4136 = vmatmul.mubr.bf16.gmra.mrb[0].mxu0 %v3530
    %v4137 = vpop.f32.mrb[0].mxu0
    %v4138 = vadd.f32 %v3913, %v4137
    %v4139 = vpop.f32.mrb[0].mxu0
    %v4140 = vpop.f32.mrb[0].mxu0
    %v4141 = vadd.f32 %v3916, %v4140
    %v4142 = vpop.f32.mrb[0].mxu0
    %4143 = vmatprep.mubr.bf16.mxu0 0
    %4144 = vmatmul.mubr.bf16.gmra.mrb[0].mxu0 %v3533
    %v4145 = vpop.f32.mrb[0].mxu0
    %v4146 = vadd.f32 %v3921, %v4145
    %v4147 = vpop.f32.mrb[0].mxu0
    %v4148 = vpop.f32.mrb[0].mxu0
    %v4149 = vadd.f32 %v3924, %v4148
    %v4150 = vpop.f32.mrb[0].mxu0
    %4151 = vmatprep.mubr.bf16.mxu0 0
    %4152 = vmatmul.mubr.bf16.gmra.mrb[0].mxu0 %v3536
    %v4153 = vpop.f32.mrb[0].mxu0
    %v4154 = vadd.f32 %v3929, %v4153
    %v4155 = vpop.f32.mrb[0].mxu0
    %v4156 = vpop.f32.mrb[0].mxu0
    %v4157 = vadd.f32 %v3932, %v4156
    %v4158 = vpop.f32.mrb[0].mxu0
    %4159 = vmatprep.mubr.bf16.mxu0 0
    %4160 = vmatmul.mubr.bf16.gmra.mrb[0].mxu0 %v3539
    %v4161 = vpop.f32.mrb[0].mxu0
    %v4162 = vadd.f32 %v3937, %v4161
    %v4163 = vpop.f32.mrb[0].mxu0
    %v4164 = vpop.f32.mrb[0].mxu0
    %v4165 = vadd.f32 %v3940, %v4164
    %v4166 = vpop.f32.mrb[0].mxu0
    %4167 = vmatprep.mubr.bf16.mxu0 0
    %4168 = vmatmul.mubr.bf16.gmra.mrb[0].mxu0 %v3542
    %v4169 = vpop.f32.mrb[0].mxu0
    %v4170 = vadd.f32 %v3945, %v4169
    %v4171 = vpop.f32.mrb[0].mxu0
    %v4172 = vpop.f32.mrb[0].mxu0
    %v4173 = vadd.f32 %v3948, %v4172
    %v4174 = vpop.f32.mrb[0].mxu0
    %4175 = vmatprep.mubr.bf16.mxu0 0
    %4176 = vmatmul.mubr.bf16.gmra.mrb[0].mxu0 %v3545
    %v4177 = vpop.f32.mrb[0].mxu0
    %v4178 = vadd.f32 %v3953, %v4177
    %v4179 = vpop.f32.mrb[0].mxu0
    %v4180 = vpop.f32.mrb[0].mxu0
    %v4181 = vadd.f32 %v3956, %v4180
    %v4182 = vpop.f32.mrb[0].mxu0
    %4183 = vmatprep.mubr.bf16.mxu0 0
    %4184 = vmatmul.mubr.bf16.gmra.mrb[0].mxu0 %v3548
    %v4185 = vpop.f32.mrb[0].mxu0
    %v4186 = vadd.f32 %v3961, %v4185
    %v4187 = vpop.f32.mrb[0].mxu0
    %v4188 = vpop.f32.mrb[0].mxu0
    %v4189 = vadd.f32 %v3964, %v4188
    %v4190 = vpop.f32.mrb[0].mxu0
    %4191 = vmatprep.mubr.bf16.mxu0 0
    %4192 = vmatmul.mubr.bf16.gmra.mrb[0].mxu0 %v3551
    %v4193 = vpop.f32.mrb[0].mxu0
    %v4194 = vadd.f32 %v3969, %v4193
    %v4195 = vpop.f32.mrb[0].mxu0
    %v4196 = vpop.f32.mrb[0].mxu0
    %v4197 = vadd.f32 %v3972, %v4196
    %v4198 = vpop.f32.mrb[0].mxu0
    %4199 = vmatprep.mubr.bf16.mxu0 0
    %4200 = vmatmul.mubr.bf16.gmra.mrb[0].mxu0 %v3554
    %v4201 = vpop.f32.mrb[0].mxu0
    %v4202 = vadd.f32 %v3977, %v4201
    %v4203 = vpop.f32.mrb[0].mxu0
    %v4204 = vpop.f32.mrb[0].mxu0
    %v4205 = vadd.f32 %v3980, %v4204
    %v4206 = vpop.f32.mrb[0].mxu0
    %4207 = vmatprep.mubr.bf16.mxu0 0
    %4208 = vmatmul.mubr.bf16.gmra.mrb[0].mxu0 %v3557
    %v4209 = vpop.f32.mrb[0].mxu0
    %v4210 = vadd.f32 %v3985, %v4209
    %v4211 = vpop.f32.mrb[0].mxu0
    %v4212 = vpop.f32.mrb[0].mxu0
    %v4213 = vadd.f32 %v3988, %v4212
    %v4214 = vpop.f32.mrb[0].mxu0
    %4215 = vmatprep.mubr.bf16.mxu0 0
    %4216 = vmatmul.mubr.bf16.gmra.mrb[0].mxu0 %v3560
    %v4217 = vpop.f32.mrb[0].mxu0
    %v4218 = vadd.f32 %v3993, %v4217
    %v4219 = vpop.f32.mrb[0].mxu0
    %v4220 = vpop.f32.mrb[0].mxu0
    %v4221 = vadd.f32 %v3996, %v4220
    %v4222 = vpop.f32.mrb[0].mxu0
    %4223 = vmatprep.mubr.bf16.mxu0 0
    %4224 = vmatmul.mubr.bf16.gmra.mrb[0].mxu0 %v3563
    %v4225 = vpop.f32.mrb[0].mxu0
    %v4226 = vadd.f32 %v4001, %v4225
    %v4227 = vpop.f32.mrb[0].mxu0
    %v4228 = vpop.f32.mrb[0].mxu0
    %v4229 = vadd.f32 %v4004, %v4228
    %v4230 = vpop.f32.mrb[0].mxu0
    %4231 = vmatprep.mubr.bf16.mxu0 0
    %4232 = vmatmul.mubr.bf16.gmra.mrb[0].mxu0 %v3566
    %v4233 = vpop.f32.mrb[0].mxu0
    %v4234 = vadd.f32 %v4009, %v4233
    %v4235 = vpop.f32.mrb[0].mxu0
    %v4236 = vpop.f32.mrb[0].mxu0
    %v4237 = vadd.f32 %v4012, %v4236
    %v4238 = vpop.f32.mrb[0].mxu0
    %4239 = vdwg.mxu0
    %v4240 = vmax.f32 %v4050, 0.0
    %v4241 = vmax.f32 %v4053, 0.0
    %v4242 = vmax.f32 %v4058, 0.0
    %v4243 = vmax.f32 %v4061, 0.0
    %v4244 = vmax.f32 %v4066, 0.0
    %v4245 = vmax.f32 %v4069, 0.0
    %v4246 = vmax.f32 %v4074, 0.0
    %v4247 = vmax.f32 %v4077, 0.0
    %v4248 = vmax.f32 %v4082, 0.0
    %v4249 = vmax.f32 %v4085, 0.0
    %v4250 = vmax.f32 %v4090, 0.0
    %v4251 = vmax.f32 %v4093, 0.0
    %v4252 = vmax.f32 %v4098, 0.0
    %v4253 = vmax.f32 %v4101, 0.0
    %v4254 = vmax.f32 %v4106, 0.0
    %v4255 = vmax.f32 %v4109, 0.0
    %v4256 = vmax.f32 %v4114, 0.0
    %v4257 = vmax.f32 %v4117, 0.0
    %v4258 = vmax.f32 %v4122, 0.0
    %v4259 = vmax.f32 %v4125, 0.0
    %v4260 = vmax.f32 %v4130, 0.0
    %v4261 = vmax.f32 %v4133, 0.0
    %v4262 = vmax.f32 %v4138, 0.0
    %v4263 = vmax.f32 %v4141, 0.0
    %v4264 = vmax.f32 %v4146, 0.0
    %v4265 = vmax.f32 %v4149, 0.0
    %v4266 = vmax.f32 %v4154, 0.0
    %v4267 = vmax.f32 %v4157, 0.0
    %v4268 = vmax.f32 %v4162, 0.0
    %v4269 = vmax.f32 %v4165, 0.0
    %v4270 = vmax.f32 %v4170, 0.0
    %v4271 = vmax.f32 %v4173, 0.0
    %v4272 = vmax.f32 %v4178, 0.0
    %v4273 = vmax.f32 %v4181, 0.0
    %v4274 = vmax.f32 %v4186, 0.0
    %v4275 = vmax.f32 %v4189, 0.0
    %v4276 = vmax.f32 %v4194, 0.0
    %v4277 = vmax.f32 %v4197, 0.0
    %v4278 = vmax.f32 %v4202, 0.0
    %v4279 = vmax.f32 %v4205, 0.0
    %v4280 = vmax.f32 %v4210, 0.0
    %v4281 = vmax.f32 %v4213, 0.0
    %v4282 = vmax.f32 %v4218, 0.0
    %v4283 = vmax.f32 %v4221, 0.0
    %v4284 = vmax.f32 %v4226, 0.0
    %v4285 = vmax.f32 %v4229, 0.0
    %v4286 = vmax.f32 %v4234, 0.0
    %v4287 = vmax.f32 %v4237, 0.0
    %v4288 = vadd.f32 %v4240, %v4241
    %v4289 = vrot.slane %v4288, 4
    %v4290 = vadd.f32 %v4288, %v4289
    %v4291 = vrot.slane %v4290, 2
    %v4292 = vadd.f32 %v4290, %v4291
    %v4293 = vrot.slane %v4292, 1
    %v4294 = vadd.f32 %v4292, %v4293
    %v4295 = vadd.f32 %v4242, %v4243
    %v4296 = vrot.slane %v4295, 4
    %v4297 = vadd.f32 %v4295, %v4296
    %v4298 = vrot.slane %v4297, 2
    %v4299 = vadd.f32 %v4297, %v4298
    %v4300 = vrot.slane %v4299, 1
    %v4301 = vadd.f32 %v4299, %v4300
    %v4302 = vadd.f32 %v4244, %v4245
    %v4303 = vrot.slane %v4302, 4
    %v4304 = vadd.f32 %v4302, %v4303
    %v4305 = vrot.slane %v4304, 2
    %v4306 = vadd.f32 %v4304, %v4305
    %v4307 = vrot.slane %v4306, 1
    %v4308 = vadd.f32 %v4306, %v4307
    %v4309 = vadd.f32 %v4246, %v4247
    %v4310 = vrot.slane %v4309, 4
    %v4311 = vadd.f32 %v4309, %v4310
    %v4312 = vrot.slane %v4311, 2
    %v4313 = vadd.f32 %v4311, %v4312
    %v4314 = vrot.slane %v4313, 1
    %v4315 = vadd.f32 %v4313, %v4314
    %v4316 = vadd.f32 %v4248, %v4249
    %v4317 = vrot.slane %v4316, 4
    %v4318 = vadd.f32 %v4316, %v4317
    %v4319 = vrot.slane %v4318, 2
    %v4320 = vadd.f32 %v4318, %v4319
    %v4321 = vrot.slane %v4320, 1
    %v4322 = vadd.f32 %v4320, %v4321
    %v4323 = vadd.f32 %v4250, %v4251
    %v4324 = vrot.slane %v4323, 4
    %v4325 = vadd.f32 %v4323, %v4324
    %v4326 = vrot.slane %v4325, 2
    %v4327 = vadd.f32 %v4325, %v4326
    %v4328 = vrot.slane %v4327, 1
    %v4329 = vadd.f32 %v4327, %v4328
    %v4330 = vadd.f32 %v4252, %v4253
    %v4331 = vrot.slane %v4330, 4
    %v4332 = vadd.f32 %v4330, %v4331
    %v4333 = vrot.slane %v4332, 2
    %v4334 = vadd.f32 %v4332, %v4333
    %v4335 = vrot.slane %v4334, 1
    %v4336 = vadd.f32 %v4334, %v4335
    %v4337 = vadd.f32 %v4254, %v4255
    %v4338 = vrot.slane %v4337, 4
    %v4339 = vadd.f32 %v4337, %v4338
    %v4340 = vrot.slane %v4339, 2
    %v4341 = vadd.f32 %v4339, %v4340
    %v4342 = vrot.slane %v4341, 1
    %v4343 = vadd.f32 %v4341, %v4342
    %v4344 = vadd.f32 %v4256, %v4257
    %v4345 = vrot.slane %v4344, 4
    %v4346 = vadd.f32 %v4344, %v4345
    %v4347 = vrot.slane %v4346, 2
    %v4348 = vadd.f32 %v4346, %v4347
    %v4349 = vrot.slane %v4348, 1
    %v4350 = vadd.f32 %v4348, %v4349
    %v4351 = vadd.f32 %v4258, %v4259
    %v4352 = vrot.slane %v4351, 4
    %v4353 = vadd.f32 %v4351, %v4352
    %v4354 = vrot.slane %v4353, 2
    %v4355 = vadd.f32 %v4353, %v4354
    %v4356 = vrot.slane %v4355, 1
    %v4357 = vadd.f32 %v4355, %v4356
    %v4358 = vadd.f32 %v4260, %v4261
    %v4359 = vrot.slane %v4358, 4
    %v4360 = vadd.f32 %v4358, %v4359
    %v4361 = vrot.slane %v4360, 2
    %v4362 = vadd.f32 %v4360, %v4361
    %v4363 = vrot.slane %v4362, 1
    %v4364 = vadd.f32 %v4362, %v4363
    %v4365 = vadd.f32 %v4262, %v4263
    %v4366 = vrot.slane %v4365, 4
    %v4367 = vadd.f32 %v4365, %v4366
    %v4368 = vrot.slane %v4367, 2
    %v4369 = vadd.f32 %v4367, %v4368
    %v4370 = vrot.slane %v4369, 1
    %v4371 = vadd.f32 %v4369, %v4370
    %v4372 = vadd.f32 %v4264, %v4265
    %v4373 = vrot.slane %v4372, 4
    %v4374 = vadd.f32 %v4372, %v4373
    %v4375 = vrot.slane %v4374, 2
    %v4376 = vadd.f32 %v4374, %v4375
    %v4377 = vrot.slane %v4376, 1
    %v4378 = vadd.f32 %v4376, %v4377
    %v4379 = vadd.f32 %v4266, %v4267
    %v4380 = vrot.slane %v4379, 4
    %v4381 = vadd.f32 %v4379, %v4380
    %v4382 = vrot.slane %v4381, 2
    %v4383 = vadd.f32 %v4381, %v4382
    %v4384 = vrot.slane %v4383, 1
    %v4385 = vadd.f32 %v4383, %v4384
    %v4386 = vadd.f32 %v4268, %v4269
    %v4387 = vrot.slane %v4386, 4
    %v4388 = vadd.f32 %v4386, %v4387
    %v4389 = vrot.slane %v4388, 2
    %v4390 = vadd.f32 %v4388, %v4389
    %v4391 = vrot.slane %v4390, 1
    %v4392 = vadd.f32 %v4390, %v4391
    %v4393 = vadd.f32 %v4270, %v4271
    %v4394 = vrot.slane %v4393, 4
    %v4395 = vadd.f32 %v4393, %v4394
    %v4396 = vrot.slane %v4395, 2
    %v4397 = vadd.f32 %v4395, %v4396
    %v4398 = vrot.slane %v4397, 1
    %v4399 = vadd.f32 %v4397, %v4398
    %v4400 = vadd.f32 %v4272, %v4273
    %v4401 = vrot.slane %v4400, 4
    %v4402 = vadd.f32 %v4400, %v4401
    %v4403 = vrot.slane %v4402, 2
    %v4404 = vadd.f32 %v4402, %v4403
    %v4405 = vrot.slane %v4404, 1
    %v4406 = vadd.f32 %v4404, %v4405
    %v4407 = vadd.f32 %v4274, %v4275
    %v4408 = vrot.slane %v4407, 4
    %v4409 = vadd.f32 %v4407, %v4408
    %v4410 = vrot.slane %v4409, 2
    %v4411 = vadd.f32 %v4409, %v4410
    %v4412 = vrot.slane %v4411, 1
    %v4413 = vadd.f32 %v4411, %v4412
    %v4414 = vadd.f32 %v4276, %v4277
    %v4415 = vrot.slane %v4414, 4
    %v4416 = vadd.f32 %v4414, %v4415
    %v4417 = vrot.slane %v4416, 2
    %v4418 = vadd.f32 %v4416, %v4417
    %v4419 = vrot.slane %v4418, 1
    %v4420 = vadd.f32 %v4418, %v4419
    %v4421 = vadd.f32 %v4278, %v4279
    %v4422 = vrot.slane %v4421, 4
    %v4423 = vadd.f32 %v4421, %v4422
    %v4424 = vrot.slane %v4423, 2
    %v4425 = vadd.f32 %v4423, %v4424
    %v4426 = vrot.slane %v4425, 1
    %v4427 = vadd.f32 %v4425, %v4426
    %v4428 = vadd.f32 %v4280, %v4281
    %v4429 = vrot.slane %v4428, 4
    %v4430 = vadd.f32 %v4428, %v4429
    %v4431 = vrot.slane %v4430, 2
    %v4432 = vadd.f32 %v4430, %v4431
    %v4433 = vrot.slane %v4432, 1
    %v4434 = vadd.f32 %v4432, %v4433
    %v4435 = vadd.f32 %v4282, %v4283
    %v4436 = vrot.slane %v4435, 4
    %v4437 = vadd.f32 %v4435, %v4436
    %v4438 = vrot.slane %v4437, 2
    %v4439 = vadd.f32 %v4437, %v4438
    %v4440 = vrot.slane %v4439, 1
    %v4441 = vadd.f32 %v4439, %v4440
    %v4442 = vadd.f32 %v4284, %v4285
    %v4443 = vrot.slane %v4442, 4
    %v4444 = vadd.f32 %v4442, %v4443
    %v4445 = vrot.slane %v4444, 2
    %v4446 = vadd.f32 %v4444, %v4445
    %v4447 = vrot.slane %v4446, 1
    %v4448 = vadd.f32 %v4446, %v4447
    %v4449 = vadd.f32 %v4286, %v4287
    %v4450 = vrot.slane %v4449, 4
    %v4451 = vadd.f32 %v4449, %v4450
    %v4452 = vrot.slane %v4451, 2
    %v4453 = vadd.f32 %v4451, %v4452
    %v4454 = vrot.slane %v4453, 1
    %v4455 = vadd.f32 %v4453, %v4454
    %v4456 = vrcp.pop 16.0
    %v4457 = vmul.f32 %v4294, %v4456
    %v4458 = vmul.f32 %v4301, %v4456
    %v4459 = vmul.f32 %v4308, %v4456
    %v4460 = vmul.f32 %v4315, %v4456
    %v4461 = vmul.f32 %v4322, %v4456
    %v4462 = vmul.f32 %v4329, %v4456
    %v4463 = vmul.f32 %v4336, %v4456
    %v4464 = vmul.f32 %v4343, %v4456
    %v4465 = vmul.f32 %v4350, %v4456
    %v4466 = vmul.f32 %v4357, %v4456
    %v4467 = vmul.f32 %v4364, %v4456
    %v4468 = vmul.f32 %v4371, %v4456
    %v4469 = vmul.f32 %v4378, %v4456
    %v4470 = vmul.f32 %v4385, %v4456
    %v4471 = vmul.f32 %v4392, %v4456
    %v4472 = vmul.f32 %v4399, %v4456
    %v4473 = vmul.f32 %v4406, %v4456
    %v4474 = vmul.f32 %v4413, %v4456
    %v4475 = vmul.f32 %v4420, %v4456
    %v4476 = vmul.f32 %v4427, %v4456
    %v4477 = vmul.f32 %v4434, %v4456
    %v4478 = vmul.f32 %v4441, %v4456
    %v4479 = vmul.f32 %v4448, %v4456
    %v4480 = vmul.f32 %v4455, %v4456
    %v4481 = vld [vmem:[%s1] sm:$0xff]
    %v4482 = vld [vmem:[%s1 + $0x8] sm:$0xff]
    %v4483 = vld [vmem:[%s1 + $0x10] sm:$0xff]
    %v4484 = vpack.c.bf16 %v4482, %v4481
    %v4485 = vpack.c.bf16 %v4483, %v4483
    %v4486 = vld [vmem:[%s6] sm:$0xff]
    %v4487 = vld [vmem:[%s6 + $0x8] sm:$0xf]
    %v4488 = vld [vmem:[%s6 + $0xc] sm:$0xff]
    %v4489 = vld [vmem:[%s6 + $0x14] sm:$0xf]
    %v4490 = vld [vmem:[%s7] sm:$0x7]
    %v4492 = vlaneseq
    %v4493 = vshrl.u32 %v4492, 7
    %v4494 = vsub.s32 0, %v4493
    %v4495 = vrot.slane %v4490, %v4494
    %v4496 = vlaneseq
    %v4497 = vshrl.u32 %v4496, 7
    %v4498 = vsub.s32 1, %v4497
    %v4499 = vrot.slane %v4490, %v4498
    %v4500 = vlaneseq
    %v4501 = vshrl.u32 %v4500, 7
    %v4502 = vsub.s32 2, %v4501
    %v4503 = vrot.slane %v4490, %v4502
    %v4511 = vunpack.c.l.b16 %v4486
    %v4512 = vunpack.c.h.b16 %v4486
    %v4513 = vunpack.c.l.b16 %v4487
    %v4514 = vunpack.c.l.b16 %v4488
    %v4515 = vunpack.c.h.b16 %v4488
    %v4516 = vunpack.c.l.b16 %v4489
    %v4517 = vpack.c.b16 %v4514, %v4511
    %v4518 = vpack.c.b16 %v4515, %v4512
    %v4519 = vpack.c.b16 %v4516, %v4513
    %vm4523 = vcmask 130048
    %v4525 = vsel %vm4523, %v4484, 0
    %v4528 = vsel %vm4523, %v4485, 0
    %4530 = vmatprep.subr.bf16.mxu0 %v4518
    %4531 = vmatpush1.bf16.msra.mxu0 %v4517
    %4532 = vmatprep.subr.bf16.mxu0 0
    %4533 = vmatpush1.bf16.msra.mxu0 0
    %4534 = vmatprep.subr.bf16.mxu0 0
    %4535 = vmatpush1.bf16.msra.mxu0 0
    %4536 = vmatprep.subr.bf16.mxu0 0
    %4537 = vmatpush1.bf16.msra.mxu0 0
    %4538 = vmatprep.subr.bf16.mxu0 0
    %4539 = vmatpush1.bf16.msra.mxu0 0
    %4540 = vmatprep.subr.bf16.mxu0 0
    %4541 = vmatpush1.bf16.msra.mxu0 0
    %4542 = vmatprep.subr.bf16.mxu0 0
    %4543 = vmatpush1.bf16.msra.mxu0 0
    %4544 = vmatprep.subr.bf16.mxu0 0
    %4545 = vmatpush1.bf16.msra.mxu0 0
    %4546 = vmatprep.subr.bf16.mxu0 0
    %4547 = vmatpush1.bf16.msra.mxu0 0
    %4548 = vmatprep.subr.bf16.mxu0 0
    %4549 = vmatpush1.bf16.msra.mxu0 0
    %4550 = vmatprep.subr.bf16.mxu0 0
    %4551 = vmatpush1.bf16.msra.mxu0 0
    %4552 = vmatprep.subr.bf16.mxu0 0
    %4553 = vmatpush1.bf16.msra.mxu0 0
    %4554 = vmatprep.subr.bf16.mxu0 0
    %4555 = vmatpush1.bf16.msra.mxu0 0
    %4556 = vmatprep.subr.bf16.mxu0 0
    %4557 = vmatpush1.bf16.msra.mxu0 0
    %4558 = vmatprep.subr.bf16.mxu0 0
    %4559 = vmatpush1.bf16.msra.mxu0 0
    %4560 = vmatprep.subr.bf16.mxu0 0
    %4561 = vmatpush1.bf16.msra.mxu0 0
    %4562 = vmatprep.mubr.bf16.mxu0 0
    %4563 = vmatmul.mubr.bf16.gmra.mrb[0].mxu0 %v4525
    %v4564 = vpop.f32.mrb[0].mxu0
    %v4565 = vadd.f32 %v4495, %v4564
    %v4566 = vpop.f32.mrb[0].mxu0
    %v4567 = vadd.f32 %v4499, %v4566
    %v4568 = vpop.f32.mrb[0].mxu0
    %v4569 = vadd.f32 %v4495, %v4568
    %v4570 = vpop.f32.mrb[0].mxu0
    %v4571 = vadd.f32 %v4499, %v4570
    %4572 = vmatprep.mubr.bf16.mxu0 0
    %4573 = vmatmul.mubr.bf16.gmra.mrb[0].mxu0 %v4528
    %v4574 = vpop.f32.mrb[0].mxu0
    %v4575 = vadd.f32 %v4495, %v4574
    %v4576 = vpop.f32.mrb[0].mxu0
    %v4577 = vadd.f32 %v4499, %v4576
    %v4578 = vpop.f32.mrb[0].mxu0
    %v4579 = vpop.f32.mrb[0].mxu0
    %4580 = vdwg.mxu0
    %4581 = vmatprep.subr.bf16.mxu0 0
    %4582 = vmatpush1.bf16.msra.mxu0 %v4519
    %4583 = vmatprep.subr.bf16.mxu0 0
    %4584 = vmatpush1.bf16.msra.mxu0 0
    %4585 = vmatprep.subr.bf16.mxu0 0
    %4586 = vmatpush1.bf16.msra.mxu0 0
    %4587 = vmatprep.subr.bf16.mxu0 0
    %4588 = vmatpush1.bf16.msra.mxu0 0
    %4589 = vmatprep.subr.bf16.mxu0 0
    %4590 = vmatpush1.bf16.msra.mxu0 0
    %4591 = vmatprep.subr.bf16.mxu0 0
    %4592 = vmatpush1.bf16.msra.mxu0 0
    %4593 = vmatprep.subr.bf16.mxu0 0
    %4594 = vmatpush1.bf16.msra.mxu0 0
    %4595 = vmatprep.subr.bf16.mxu0 0
    %4596 = vmatpush1.bf16.msra.mxu0 0
    %4597 = vmatprep.subr.bf16.mxu0 0
    %4598 = vmatpush1.bf16.msra.mxu0 0
    %4599 = vmatprep.subr.bf16.mxu0 0
    %4600 = vmatpush1.bf16.msra.mxu0 0
    %4601 = vmatprep.subr.bf16.mxu0 0
    %4602 = vmatpush1.bf16.msra.mxu0 0
    %4603 = vmatprep.subr.bf16.mxu0 0
    %4604 = vmatpush1.bf16.msra.mxu0 0
    %4605 = vmatprep.subr.bf16.mxu0 0
    %4606 = vmatpush1.bf16.msra.mxu0 0
    %4607 = vmatprep.subr.bf16.mxu0 0
    %4608 = vmatpush1.bf16.msra.mxu0 0
    %4609 = vmatprep.subr.bf16.mxu0 0
    %4610 = vmatpush1.bf16.msra.mxu0 0
    %4611 = vmatprep.subr.bf16.mxu0 0
    %4612 = vmatpush1.bf16.msra.mxu0 0
    %4613 = vmatprep.mubr.bf16.mxu0 0
    %4614 = vmatmul.mubr.bf16.gmra.mrb[0].mxu0 %v4525
    %v4615 = vpop.f32.mrb[0].mxu0
    %v4616 = vadd.f32 %v4503, %v4615
    %v4617 = vpop.f32.mrb[0].mxu0
    %v4618 = vpop.f32.mrb[0].mxu0
    %v4619 = vadd.f32 %v4503, %v4618
    %v4620 = vpop.f32.mrb[0].mxu0
    %4621 = vmatprep.mubr.bf16.mxu0 0
    %4622 = vmatmul.mubr.bf16.gmra.mrb[0].mxu0 %v4528
    %v4623 = vpop.f32.mrb[0].mxu0
    %v4624 = vadd.f32 %v4503, %v4623
    %v4625 = vpop.f32.mrb[0].mxu0
    %v4626 = vpop.f32.mrb[0].mxu0
    %v4627 = vpop.f32.mrb[0].mxu0
    %4628 = vdwg.mxu0
    %v4629 = vxor.u32 %v4565, 2147483648
    %v4630 = vxor.u32 %v4569, 2147483648
    %v4631 = vxor.u32 %v4575, 2147483648
    %v4632 = vmul.f32 %v4629, 1.442695
    %v4633 = vpow.pop %v4632
    %v4634 = vmul.f32 %v4630, 1.442695
    %v4635 = vpow.pop %v4634
    %v4636 = vmul.f32 %v4631, 1.442695
    %v4637 = vpow.pop %v4636
    %v4638 = vadd.f32 %v4633, 1.0
    %v4639 = vadd.f32 %v4635, 1.0
    %v4640 = vadd.f32 %v4637, 1.0
    %v4641 = vrcp.pop %v4638
    %v4642 = vmul.f32 1.0, %v4641
    %v4643 = vrcp.pop %v4639
    %v4644 = vmul.f32 1.0, %v4643
    %v4645 = vrcp.pop %v4640
    %v4646 = vmul.f32 1.0, %v4645
    %v4647 = vtanh.pop %v4567
    %v4648 = vtanh.pop %v4571
    %v4649 = vtanh.pop %v4577
    %v4650 = vxor.u32 %v4616, 2147483648
    %v4651 = vxor.u32 %v4619, 2147483648
    %v4652 = vxor.u32 %v4624, 2147483648
    %v4653 = vmul.f32 %v4650, 1.442695
    %v4654 = vpow.pop %v4653
    %v4655 = vmul.f32 %v4651, 1.442695
    %v4656 = vpow.pop %v4655
    %v4657 = vmul.f32 %v4652, 1.442695
    %v4658 = vpow.pop %v4657
    %v4659 = vadd.f32 %v4654, 1.0
    %v4660 = vadd.f32 %v4656, 1.0
    %v4661 = vadd.f32 %v4658, 1.0
    %v4662 = vrcp.pop %v4659
    %v4663 = vmul.f32 1.0, %v4662
    %v4664 = vrcp.pop %v4660
    %v4665 = vmul.f32 1.0, %v4664
    %v4666 = vrcp.pop %v4661
    %v4667 = vmul.f32 1.0, %v4666
    %v4668 = vmul.f32 %v4642, %v4647
    %v4669 = vmul.f32 %v4644, %v4648
    %v4670 = vmul.f32 %v4646, %v4649
    %v4671 = vtanh.pop %v4668
    %v4672 = vtanh.pop %v4669
    %v4673 = vtanh.pop %v4670
    %v4674 = vmul.f32 %v4663, %v4671
    %v4675 = vmul.f32 %v4665, %v4672
    %v4676 = vmul.f32 %v4667, %v4673
    %v4677 = vpack.c.bf16 %v4675, %v4674
    %v4678 = vpack.c.bf16 %v4676, %v4676
    %v4679 = vld [vmem:[%s8] sm:$0xff]
    %v4680 = vld [vmem:[%s8 + $0x8] sm:$0xf]
    %v4681 = vld [vmem:[%s8 + $0xc] sm:$0xff]
    %v4682 = vld [vmem:[%s8 + $0x14] sm:$0xf]
    %v4683 = vld [vmem:[%s8 + $0x18] sm:$0xff]
    %v4684 = vld [vmem:[%s8 + $0x20] sm:$0xf]
    %v4685 = vld [vmem:[%s8 + $0x24] sm:$0xff]
    %v4686 = vld [vmem:[%s8 + $0x2c] sm:$0xf]
    %v4687 = vld [vmem:[%s8 + $0x30] sm:$0xff]
    %v4688 = vld [vmem:[%s8 + $0x38] sm:$0xf]
    %v4689 = vld [vmem:[%s8 + $0x3c] sm:$0xff]
    %v4690 = vld [vmem:[%s8 + $0x44] sm:$0xf]
    %v4691 = vld [vmem:[%s8 + $0x48] sm:$0xff]
    %v4692 = vld [vmem:[%s8 + $0x50] sm:$0xf]
    %v4693 = vld [vmem:[%s8 + $0x54] sm:$0xff]
    %v4694 = vld [vmem:[%s8 + $0x5c] sm:$0xf]
    %v4695 = vld [vmem:[%s8 + $0x60] sm:$0xff]
    %v4696 = vld [vmem:[%s8 + $0x68] sm:$0xf]
    %v4697 = vld [vmem:[%s8 + $0x6c] sm:$0xff]
    %v4698 = vld [vmem:[%s8 + $0x74] sm:$0xf]
    %v4699 = vld [vmem:[%s8 + $0x78] sm:$0xff]
    %v4700 = vld [vmem:[%s8 + $0x80] sm:$0xf]
    %v4701 = vld [vmem:[%s8 + $0x84] sm:$0xff]
    %v4702 = vld [vmem:[%s8 + $0x8c] sm:$0xf]
    %v4703 = vld [vmem:[%s8 + $0x90] sm:$0xff]
    %v4704 = vld [vmem:[%s8 + $0x98] sm:$0xf]
    %v4705 = vld [vmem:[%s8 + $0x9c] sm:$0xff]
    %v4706 = vld [vmem:[%s8 + $0xa4] sm:$0xf]
    %v4707 = vld [vmem:[%s8 + $0xa8] sm:$0xff]
    %v4708 = vld [vmem:[%s8 + $0xb0] sm:$0xf]
    %v4709 = vld [vmem:[%s8 + $0xb4] sm:$0xff]
    %v4710 = vld [vmem:[%s8 + $0xbc] sm:$0xf]
    %v4711 = vld [vmem:[%s9] sm:$0x7]
    %v4713 = vlaneseq
    %v4714 = vshrl.u32 %v4713, 7
    %v4715 = vsub.s32 0, %v4714
    %v4716 = vrot.slane %v4711, %v4715
    %v4717 = vlaneseq
    %v4718 = vshrl.u32 %v4717, 7
    %v4719 = vsub.s32 1, %v4718
    %v4720 = vrot.slane %v4711, %v4719
    %v4721 = vlaneseq
    %v4722 = vshrl.u32 %v4721, 7
    %v4723 = vsub.s32 2, %v4722
    %v4724 = vrot.slane %v4711, %v4723
    %v4760 = vunpack.c.l.b16 %v4679
    %v4761 = vunpack.c.h.b16 %v4679
    %v4762 = vunpack.c.l.b16 %v4680
    %v4763 = vunpack.c.l.b16 %v4681
    %v4764 = vunpack.c.h.b16 %v4681
    %v4765 = vunpack.c.l.b16 %v4682
    %v4766 = vunpack.c.l.b16 %v4683
    %v4767 = vunpack.c.h.b16 %v4683
    %v4768 = vunpack.c.l.b16 %v4684
    %v4769 = vunpack.c.l.b16 %v4685
    %v4770 = vunpack.c.h.b16 %v4685
    %v4771 = vunpack.c.l.b16 %v4686
    %v4772 = vunpack.c.l.b16 %v4687
    %v4773 = vunpack.c.h.b16 %v4687
    %v4774 = vunpack.c.l.b16 %v4688
    %v4775 = vunpack.c.l.b16 %v4689
    %v4776 = vunpack.c.h.b16 %v4689
    %v4777 = vunpack.c.l.b16 %v4690
    %v4778 = vunpack.c.l.b16 %v4691
    %v4779 = vunpack.c.h.b16 %v4691
    %v4780 = vunpack.c.l.b16 %v4692
    %v4781 = vunpack.c.l.b16 %v4693
    %v4782 = vunpack.c.h.b16 %v4693
    %v4783 = vunpack.c.l.b16 %v4694
    %v4784 = vunpack.c.l.b16 %v4695
    %v4785 = vunpack.c.h.b16 %v4695
    %v4786 = vunpack.c.l.b16 %v4696
    %v4787 = vunpack.c.l.b16 %v4697
    %v4788 = vunpack.c.h.b16 %v4697
    %v4789 = vunpack.c.l.b16 %v4698
    %v4790 = vunpack.c.l.b16 %v4699
    %v4791 = vunpack.c.h.b16 %v4699
    %v4792 = vunpack.c.l.b16 %v4700
    %v4793 = vunpack.c.l.b16 %v4701
    %v4794 = vunpack.c.h.b16 %v4701
    %v4795 = vunpack.c.l.b16 %v4702
    %v4796 = vunpack.c.l.b16 %v4703
    %v4797 = vunpack.c.h.b16 %v4703
    %v4798 = vunpack.c.l.b16 %v4704
    %v4799 = vunpack.c.l.b16 %v4705
    %v4800 = vunpack.c.h.b16 %v4705
    %v4801 = vunpack.c.l.b16 %v4706
    %v4802 = vunpack.c.l.b16 %v4707
    %v4803 = vunpack.c.h.b16 %v4707
    %v4804 = vunpack.c.l.b16 %v4708
    %v4805 = vunpack.c.l.b16 %v4709
    %v4806 = vunpack.c.h.b16 %v4709
    %v4807 = vunpack.c.l.b16 %v4710
    %v4808 = vpack.c.b16 %v4763, %v4760
    %v4809 = vpack.c.b16 %v4764, %v4761
    %v4810 = vpack.c.b16 %v4765, %v4762
    %v4811 = vpack.c.b16 %v4769, %v4766
    %v4812 = vpack.c.b16 %v4770, %v4767
    %v4813 = vpack.c.b16 %v4771, %v4768
    %v4814 = vpack.c.b16 %v4775, %v4772
    %v4815 = vpack.c.b16 %v4776, %v4773
    %v4816 = vpack.c.b16 %v4777, %v4774
    %v4817 = vpack.c.b16 %v4781, %v4778
    %v4818 = vpack.c.b16 %v4782, %v4779
    %v4819 = vpack.c.b16 %v4783, %v4780
    %v4820 = vpack.c.b16 %v4787, %v4784
    %v4821 = vpack.c.b16 %v4788, %v4785
    %v4822 = vpack.c.b16 %v4789, %v4786
    %v4823 = vpack.c.b16 %v4793, %v4790
    %v4824 = vpack.c.b16 %v4794, %v4791
    %v4825 = vpack.c.b16 %v4795, %v4792
    %v4826 = vpack.c.b16 %v4799, %v4796
    %v4827 = vpack.c.b16 %v4800, %v4797
    %v4828 = vpack.c.b16 %v4801, %v4798
    %v4829 = vpack.c.b16 %v4805, %v4802
    %v4830 = vpack.c.b16 %v4806, %v4803
    %v4831 = vpack.c.b16 %v4807, %v4804
    %4856 = vmatprep.subr.bf16.mxu0 %v4809
    %4857 = vmatpush1.bf16.msra.mxu0 %v4808
    %4858 = vmatprep.subr.bf16.mxu0 %v4812
    %4859 = vmatpush1.bf16.msra.mxu0 %v4811
    %4860 = vmatprep.subr.bf16.mxu0 %v4815
    %4861 = vmatpush1.bf16.msra.mxu0 %v4814
    %4862 = vmatprep.subr.bf16.mxu0 %v4818
    %4863 = vmatpush1.bf16.msra.mxu0 %v4817
    %4864 = vmatprep.subr.bf16.mxu0 %v4821
    %4865 = vmatpush1.bf16.msra.mxu0 %v4820
    %4866 = vmatprep.subr.bf16.mxu0 %v4824
    %4867 = vmatpush1.bf16.msra.mxu0 %v4823
    %4868 = vmatprep.subr.bf16.mxu0 %v4827
    %4869 = vmatpush1.bf16.msra.mxu0 %v4826
    %4870 = vmatprep.subr.bf16.mxu0 %v4830
    %4871 = vmatpush1.bf16.msra.mxu0 %v4829
    %4872 = vmatprep.subr.bf16.mxu0 0
    %4873 = vmatpush1.bf16.msra.mxu0 0
    %4874 = vmatprep.subr.bf16.mxu0 0
    %4875 = vmatpush1.bf16.msra.mxu0 0
    %4876 = vmatprep.subr.bf16.mxu0 0
    %4877 = vmatpush1.bf16.msra.mxu0 0
    %4878 = vmatprep.subr.bf16.mxu0 0
    %4879 = vmatpush1.bf16.msra.mxu0 0
    %4880 = vmatprep.subr.bf16.mxu0 0
    %4881 = vmatpush1.bf16.msra.mxu0 0
    %4882 = vmatprep.subr.bf16.mxu0 0
    %4883 = vmatpush1.bf16.msra.mxu0 0
    %4884 = vmatprep.subr.bf16.mxu0 0
    %4885 = vmatpush1.bf16.msra.mxu0 0
    %4886 = vmatprep.subr.bf16.mxu0 0
    %4887 = vmatpush1.bf16.msra.mxu0 0
    %4888 = vmatprep.mubr.bf16.mxu0 0
    %4889 = vmatmul.mubr.bf16.gmra.mrb[0].mxu0 %v4677
    %v4890 = vpop.f32.mrb[0].mxu0
    %v4891 = vadd.f32 %v4716, %v4890
    %v4892 = vpop.f32.mrb[0].mxu0
    %v4893 = vadd.f32 %v4720, %v4892
    %v4894 = vpop.f32.mrb[0].mxu0
    %v4895 = vadd.f32 %v4716, %v4894
    %v4896 = vpop.f32.mrb[0].mxu0
    %v4897 = vadd.f32 %v4720, %v4896
    %4898 = vmatprep.mubr.bf16.mxu0 0
    %4899 = vmatmul.mubr.bf16.gmra.mrb[0].mxu0 %v4678
    %v4900 = vpop.f32.mrb[0].mxu0
    %v4901 = vadd.f32 %v4716, %v4900
    %v4902 = vpop.f32.mrb[0].mxu0
    %v4903 = vadd.f32 %v4720, %v4902
    %v4904 = vpop.f32.mrb[0].mxu0
    %v4905 = vpop.f32.mrb[0].mxu0
    %4906 = vdwg.mxu0
    %4907 = vmatprep.subr.bf16.mxu0 0
    %4908 = vmatpush1.bf16.msra.mxu0 %v4810
    %4909 = vmatprep.subr.bf16.mxu0 0
    %4910 = vmatpush1.bf16.msra.mxu0 %v4813
    %4911 = vmatprep.subr.bf16.mxu0 0
    %4912 = vmatpush1.bf16.msra.mxu0 %v4816
    %4913 = vmatprep.subr.bf16.mxu0 0
    %4914 = vmatpush1.bf16.msra.mxu0 %v4819
    %4915 = vmatprep.subr.bf16.mxu0 0
    %4916 = vmatpush1.bf16.msra.mxu0 %v4822
    %4917 = vmatprep.subr.bf16.mxu0 0
    %4918 = vmatpush1.bf16.msra.mxu0 %v4825
    %4919 = vmatprep.subr.bf16.mxu0 0
    %4920 = vmatpush1.bf16.msra.mxu0 %v4828
    %4921 = vmatprep.subr.bf16.mxu0 0
    %4922 = vmatpush1.bf16.msra.mxu0 %v4831
    %4923 = vmatprep.subr.bf16.mxu0 0
    %4924 = vmatpush1.bf16.msra.mxu0 0
    %4925 = vmatprep.subr.bf16.mxu0 0
    %4926 = vmatpush1.bf16.msra.mxu0 0
    %4927 = vmatprep.subr.bf16.mxu0 0
    %4928 = vmatpush1.bf16.msra.mxu0 0
    %4929 = vmatprep.subr.bf16.mxu0 0
    %4930 = vmatpush1.bf16.msra.mxu0 0
    %4931 = vmatprep.subr.bf16.mxu0 0
    %4932 = vmatpush1.bf16.msra.mxu0 0
    %4933 = vmatprep.subr.bf16.mxu0 0
    %4934 = vmatpush1.bf16.msra.mxu0 0
    %4935 = vmatprep.subr.bf16.mxu0 0
    %4936 = vmatpush1.bf16.msra.mxu0 0
    %4937 = vmatprep.subr.bf16.mxu0 0
    %4938 = vmatpush1.bf16.msra.mxu0 0
    %4939 = vmatprep.mubr.bf16.mxu0 0
    %4940 = vmatmul.mubr.bf16.gmra.mrb[0].mxu0 %v4677
    %v4941 = vpop.f32.mrb[0].mxu0
    %v4942 = vadd.f32 %v4724, %v4941
    %v4943 = vpop.f32.mrb[0].mxu0
    %v4944 = vpop.f32.mrb[0].mxu0
    %v4945 = vadd.f32 %v4724, %v4944
    %v4946 = vpop.f32.mrb[0].mxu0
    %4947 = vmatprep.mubr.bf16.mxu0 0
    %4948 = vmatmul.mubr.bf16.gmra.mrb[0].mxu0 %v4678
    %v4949 = vpop.f32.mrb[0].mxu0
    %v4950 = vadd.f32 %v4724, %v4949
    %v4951 = vpop.f32.mrb[0].mxu0
    %v4952 = vpop.f32.mrb[0].mxu0
    %v4953 = vpop.f32.mrb[0].mxu0
    %4954 = vdwg.mxu0
    %v4955 = vxor.u32 %v4891, 2147483648
    %v4956 = vxor.u32 %v4895, 2147483648
    %v4957 = vxor.u32 %v4901, 2147483648
    %v4958 = vmul.f32 %v4955, 1.442695
    %v4959 = vpow.pop %v4958
    %v4960 = vmul.f32 %v4956, 1.442695
    %v4961 = vpow.pop %v4960
    %v4962 = vmul.f32 %v4957, 1.442695
    %v4963 = vpow.pop %v4962
    %v4964 = vadd.f32 %v4959, 1.0
    %v4965 = vadd.f32 %v4961, 1.0
    %v4966 = vadd.f32 %v4963, 1.0
    %v4967 = vrcp.pop %v4964
    %v4968 = vmul.f32 1.0, %v4967
    %v4969 = vrcp.pop %v4965
    %v4970 = vmul.f32 1.0, %v4969
    %v4971 = vrcp.pop %v4966
    %v4972 = vmul.f32 1.0, %v4971
    %v4973 = vtanh.pop %v4893
    %v4974 = vtanh.pop %v4897
    %v4975 = vtanh.pop %v4903
    %v4976 = vxor.u32 %v4942, 2147483648
    %v4977 = vxor.u32 %v4945, 2147483648
    %v4978 = vxor.u32 %v4950, 2147483648
    %v4979 = vmul.f32 %v4976, 1.442695
    %v4980 = vpow.pop %v4979
    %v4981 = vmul.f32 %v4977, 1.442695
    %v4982 = vpow.pop %v4981
    %v4983 = vmul.f32 %v4978, 1.442695
    %v4984 = vpow.pop %v4983
    %v4985 = vadd.f32 %v4980, 1.0
    %v4986 = vadd.f32 %v4982, 1.0
    %v4987 = vadd.f32 %v4984, 1.0
    %v4988 = vrcp.pop %v4985
    %v4989 = vmul.f32 1.0, %v4988
    %v4990 = vrcp.pop %v4986
    %v4991 = vmul.f32 1.0, %v4990
    %v4992 = vrcp.pop %v4987
    %v4993 = vmul.f32 1.0, %v4992
    %v4994 = vmul.f32 %v4968, %v4973
    %v4995 = vmul.f32 %v4970, %v4974
    %v4996 = vmul.f32 %v4972, %v4975
    %v4997 = vtanh.pop %v4994
    %v4998 = vtanh.pop %v4995
    %v4999 = vtanh.pop %v4996
    %v5000 = vmul.f32 %v4989, %v4997
    %v5001 = vmul.f32 %v4991, %v4998
    %v5002 = vmul.f32 %v4993, %v4999
    %v5003 = vpack.c.bf16 %v4457, %v4457
    %v5004 = vpack.c.bf16 %v4458, %v4458
    %v5005 = vpack.c.bf16 %v4459, %v4459
    %v5006 = vpack.c.bf16 %v4460, %v4460
    %v5007 = vpack.c.bf16 %v4461, %v4461
    %v5008 = vpack.c.bf16 %v4462, %v4462
    %v5009 = vpack.c.bf16 %v4463, %v4463
    %v5010 = vpack.c.bf16 %v4464, %v4464
    %v5011 = vpack.c.bf16 %v4465, %v4465
    %v5012 = vpack.c.bf16 %v4466, %v4466
    %v5013 = vpack.c.bf16 %v4467, %v4467
    %v5014 = vpack.c.bf16 %v4468, %v4468
    %v5015 = vpack.c.bf16 %v4469, %v4469
    %v5016 = vpack.c.bf16 %v4470, %v4470
    %v5017 = vpack.c.bf16 %v4471, %v4471
    %v5018 = vpack.c.bf16 %v4472, %v4472
    %v5019 = vpack.c.bf16 %v4473, %v4473
    %v5020 = vpack.c.bf16 %v4474, %v4474
    %v5021 = vpack.c.bf16 %v4475, %v4475
    %v5022 = vpack.c.bf16 %v4476, %v4476
    %v5023 = vpack.c.bf16 %v4477, %v4477
    %v5024 = vpack.c.bf16 %v4478, %v4478
    %v5025 = vpack.c.bf16 %v4479, %v4479
    %v5026 = vpack.c.bf16 %v4480, %v4480
    %v5027 = vld [vmem:[%s10] sm:$0xf]
    %v5028 = vld [vmem:[%s10 + $0x4] sm:$0xf]
    %v5029 = vld [vmem:[%s10 + $0x8] sm:$0xf]
    %v5030 = vld [vmem:[%s10 + $0xc] sm:$0xf]
    %v5031 = vld [vmem:[%s10 + $0x10] sm:$0xf]
    %v5032 = vld [vmem:[%s10 + $0x14] sm:$0xf]
    %v5033 = vld [vmem:[%s10 + $0x18] sm:$0xf]
    %v5034 = vld [vmem:[%s10 + $0x1c] sm:$0xf]
    %v5035 = vld [vmem:[%s10 + $0x20] sm:$0xf]
    %v5036 = vld [vmem:[%s10 + $0x24] sm:$0xf]
    %v5037 = vld [vmem:[%s10 + $0x28] sm:$0xf]
    %v5038 = vld [vmem:[%s10 + $0x2c] sm:$0xf]
    %v5039 = vld [vmem:[%s10 + $0x30] sm:$0xf]
    %v5040 = vld [vmem:[%s10 + $0x34] sm:$0xf]
    %v5041 = vld [vmem:[%s10 + $0x38] sm:$0xf]
    %v5042 = vld [vmem:[%s10 + $0x3c] sm:$0xf]
    %v5043 = vpack.c.bf16 %v5001, %v5000
    %v5044 = vpack.c.bf16 %v5002, %v5002
    %v5045 = vld [vmem:[%s11] sm:$0xf]
    %v5046 = vld [vmem:[%s11 + $0x4] sm:$0xf]
    %v5047 = vld [vmem:[%s11 + $0x8] sm:$0xf]
    %v5048 = vld [vmem:[%s11 + $0xc] sm:$0xf]
    %v5049 = vld [vmem:[%s11 + $0x10] sm:$0xf]
    %v5050 = vld [vmem:[%s11 + $0x14] sm:$0xf]
    %v5051 = vld [vmem:[%s11 + $0x18] sm:$0xf]
    %v5052 = vld [vmem:[%s11 + $0x1c] sm:$0xf]
    %v5053 = vld [vmem:[%s11 + $0x20] sm:$0xf]
    %v5054 = vld [vmem:[%s11 + $0x24] sm:$0xf]
    %v5055 = vld [vmem:[%s11 + $0x28] sm:$0xf]
    %v5056 = vld [vmem:[%s11 + $0x2c] sm:$0xf]
    %v5057 = vld [vmem:[%s11 + $0x30] sm:$0xf]
    %v5058 = vld [vmem:[%s11 + $0x34] sm:$0xf]
    %v5059 = vld [vmem:[%s11 + $0x38] sm:$0xf]
    %v5060 = vld [vmem:[%s11 + $0x3c] sm:$0xf]
    %v5077 = vunpack.c.l.b16 %v5045
    %v5078 = vunpack.c.l.b16 %v5046
    %v5079 = vunpack.c.l.b16 %v5047
    %v5080 = vunpack.c.l.b16 %v5048
    %v5081 = vunpack.c.l.b16 %v5049
    %v5082 = vunpack.c.l.b16 %v5050
    %v5083 = vunpack.c.l.b16 %v5051
    %v5084 = vunpack.c.l.b16 %v5052
    %v5085 = vunpack.c.l.b16 %v5053
    %v5086 = vunpack.c.l.b16 %v5054
    %v5087 = vunpack.c.l.b16 %v5055
    %v5088 = vunpack.c.l.b16 %v5056
    %v5089 = vunpack.c.l.b16 %v5057
    %v5090 = vunpack.c.l.b16 %v5058
    %v5091 = vunpack.c.l.b16 %v5059
    %v5092 = vunpack.c.l.b16 %v5060
    %v5093 = vpack.c.b16 %v5078, %v5077
    %v5094 = vpack.c.b16 %v5080, %v5079
    %v5095 = vpack.c.b16 %v5082, %v5081
    %v5096 = vpack.c.b16 %v5084, %v5083
    %v5097 = vpack.c.b16 %v5086, %v5085
    %v5098 = vpack.c.b16 %v5088, %v5087
    %v5099 = vpack.c.b16 %v5090, %v5089
    %v5100 = vpack.c.b16 %v5092, %v5091
    %5109 = vmatprep.subr.bf16.mxu0 0
    %5110 = vmatpush1.bf16.msra.mxu0 %v5093
    %5111 = vmatprep.subr.bf16.mxu0 0
    %5112 = vmatpush1.bf16.msra.mxu0 %v5094
    %5113 = vmatprep.subr.bf16.mxu0 0
    %5114 = vmatpush1.bf16.msra.mxu0 %v5095
    %5115 = vmatprep.subr.bf16.mxu0 0
    %5116 = vmatpush1.bf16.msra.mxu0 %v5096
    %5117 = vmatprep.subr.bf16.mxu0 0
    %5118 = vmatpush1.bf16.msra.mxu0 %v5097
    %5119 = vmatprep.subr.bf16.mxu0 0
    %5120 = vmatpush1.bf16.msra.mxu0 %v5098
    %5121 = vmatprep.subr.bf16.mxu0 0
    %5122 = vmatpush1.bf16.msra.mxu0 %v5099
    %5123 = vmatprep.subr.bf16.mxu0 0
    %5124 = vmatpush1.bf16.msra.mxu0 %v5100
    %5125 = vmatprep.subr.bf16.mxu0 0
    %5126 = vmatpush1.bf16.msra.mxu0 0
    %5127 = vmatprep.subr.bf16.mxu0 0
    %5128 = vmatpush1.bf16.msra.mxu0 0
    %5129 = vmatprep.subr.bf16.mxu0 0
    %5130 = vmatpush1.bf16.msra.mxu0 0
    %5131 = vmatprep.subr.bf16.mxu0 0
    %5132 = vmatpush1.bf16.msra.mxu0 0
    %5133 = vmatprep.subr.bf16.mxu0 0
    %5134 = vmatpush1.bf16.msra.mxu0 0
    %5135 = vmatprep.subr.bf16.mxu0 0
    %5136 = vmatpush1.bf16.msra.mxu0 0
    %5137 = vmatprep.subr.bf16.mxu0 0
    %5138 = vmatpush1.bf16.msra.mxu0 0
    %5139 = vmatprep.subr.bf16.mxu0 0
    %5140 = vmatpush1.bf16.msra.mxu0 0
    %5141 = vmatprep.mubr.bf16.mxu0 0
    %5142 = vmatmul.mubr.bf16.gmra.mrb[0].mxu0 %v5043
    %v5143 = vpop.f32.mrb[0].mxu0
    %v5144 = vadd.f32 0.0, %v5143
    %v5145 = vpop.f32.mrb[0].mxu0
    %v5146 = vpop.f32.mrb[0].mxu0
    %v5147 = vadd.f32 0.0, %v5146
    %v5148 = vpop.f32.mrb[0].mxu0
    %5149 = vmatprep.mubr.bf16.mxu0 0
    %5150 = vmatmul.mubr.bf16.gmra.mrb[0].mxu0 %v5044
    %v5151 = vpop.f32.mrb[0].mxu0
    %v5152 = vadd.f32 0.0, %v5151
    %v5153 = vpop.f32.mrb[0].mxu0
    %v5154 = vpop.f32.mrb[0].mxu0
    %v5155 = vpop.f32.mrb[0].mxu0
    %5156 = vdwg.mxu0
    %v5181 = vunpack.c.l.b16 %v5003
    %v5182 = vunpack.c.l.b16 %v5004
    %v5183 = vunpack.c.l.b16 %v5005
    %v5184 = vunpack.c.l.b16 %v5006
    %v5185 = vunpack.c.l.b16 %v5007
    %v5186 = vunpack.c.l.b16 %v5008
    %v5187 = vunpack.c.l.b16 %v5009
    %v5188 = vunpack.c.l.b16 %v5010
    %v5189 = vunpack.c.l.b16 %v5011
    %v5190 = vunpack.c.l.b16 %v5012
    %v5191 = vunpack.c.l.b16 %v5013
    %v5192 = vunpack.c.l.b16 %v5014
    %v5193 = vunpack.c.l.b16 %v5015
    %v5194 = vunpack.c.l.b16 %v5016
    %v5195 = vunpack.c.l.b16 %v5017
    %v5196 = vunpack.c.l.b16 %v5018
    %v5197 = vunpack.c.l.b16 %v5019
    %v5198 = vunpack.c.l.b16 %v5020
    %v5199 = vunpack.c.l.b16 %v5021
    %v5200 = vunpack.c.l.b16 %v5022
    %v5201 = vunpack.c.l.b16 %v5023
    %v5202 = vunpack.c.l.b16 %v5024
    %v5203 = vunpack.c.l.b16 %v5025
    %v5204 = vunpack.c.l.b16 %v5026
    %vm5205 = vcmask 1041409
    %v5206 = vsel %vm5205, %v5182, %v5181
    %vm5207 = vcmask 1042434
    %v5208 = vsel %vm5207, %v5183, %v5206
    %vm5209 = vcmask 1043459
    %v5210 = vsel %vm5209, %v5184, %v5208
    %vm5211 = vcmask 1044484
    %v5212 = vsel %vm5211, %v5185, %v5210
    %vm5213 = vcmask 1045509
    %v5214 = vsel %vm5213, %v5186, %v5212
    %vm5215 = vcmask 1046534
    %v5216 = vsel %vm5215, %v5187, %v5214
    %vm5217 = vcmask 1047559
    %v5218 = vsel %vm5217, %v5188, %v5216
    %v5219 = vsel %vm5205, %v5190, %v5189
    %v5220 = vsel %vm5207, %v5191, %v5219
    %v5221 = vsel %vm5209, %v5192, %v5220
    %v5222 = vsel %vm5211, %v5193, %v5221
    %v5223 = vsel %vm5213, %v5194, %v5222
    %v5224 = vsel %vm5215, %v5195, %v5223
    %v5225 = vsel %vm5217, %v5196, %v5224
    %v5226 = vsel %vm5205, %v5198, %v5197
    %v5227 = vsel %vm5207, %v5199, %v5226
    %v5228 = vsel %vm5209, %v5200, %v5227
    %v5229 = vsel %vm5211, %v5201, %v5228
    %v5230 = vsel %vm5213, %v5202, %v5229
    %v5231 = vsel %vm5215, %v5203, %v5230
    %v5232 = vsel %vm5217, %v5204, %v5231
    %v5233 = vpack.c.b16 %v5225, %v5218
    %v5234 = vpack.c.b16 %v5232, %v5232
    %v5253 = vunpack.c.l.b16 %v5027
    %v5254 = vunpack.c.l.b16 %v5028
    %v5255 = vunpack.c.l.b16 %v5029
    %v5256 = vunpack.c.l.b16 %v5030
    %v5257 = vunpack.c.l.b16 %v5031
    %v5258 = vunpack.c.l.b16 %v5032
    %v5259 = vunpack.c.l.b16 %v5033
    %v5260 = vunpack.c.l.b16 %v5034
    %v5261 = vunpack.c.l.b16 %v5035
    %v5262 = vunpack.c.l.b16 %v5036
    %v5263 = vunpack.c.l.b16 %v5037
    %v5264 = vunpack.c.l.b16 %v5038
    %v5265 = vunpack.c.l.b16 %v5039
    %v5266 = vunpack.c.l.b16 %v5040
    %v5267 = vunpack.c.l.b16 %v5041
    %v5268 = vunpack.c.l.b16 %v5042
    %v5269 = vpack.c.b16 %v5254, %v5253
    %v5270 = vpack.c.b16 %v5256, %v5255
    %v5271 = vpack.c.b16 %v5258, %v5257
    %v5272 = vpack.c.b16 %v5260, %v5259
    %v5273 = vpack.c.b16 %v5262, %v5261
    %v5274 = vpack.c.b16 %v5264, %v5263
    %v5275 = vpack.c.b16 %v5266, %v5265
    %v5276 = vpack.c.b16 %v5268, %v5267
    %5285 = vmatprep.subr.bf16.mxu0 0
    %5286 = vmatpush1.bf16.msra.mxu0 %v5269
    %5287 = vmatprep.subr.bf16.mxu0 0
    %5288 = vmatpush1.bf16.msra.mxu0 %v5270
    %5289 = vmatprep.subr.bf16.mxu0 0
    %5290 = vmatpush1.bf16.msra.mxu0 %v5271
    %5291 = vmatprep.subr.bf16.mxu0 0
    %5292 = vmatpush1.bf16.msra.mxu0 %v5272
    %5293 = vmatprep.subr.bf16.mxu0 0
    %5294 = vmatpush1.bf16.msra.mxu0 %v5273
    %5295 = vmatprep.subr.bf16.mxu0 0
    %5296 = vmatpush1.bf16.msra.mxu0 %v5274
    %5297 = vmatprep.subr.bf16.mxu0 0
    %5298 = vmatpush1.bf16.msra.mxu0 %v5275
    %5299 = vmatprep.subr.bf16.mxu0 0
    %5300 = vmatpush1.bf16.msra.mxu0 %v5276
    %5301 = vmatprep.subr.bf16.mxu0 0
    %5302 = vmatpush1.bf16.msra.mxu0 0
    %5303 = vmatprep.subr.bf16.mxu0 0
    %5304 = vmatpush1.bf16.msra.mxu0 0
    %5305 = vmatprep.subr.bf16.mxu0 0
    %5306 = vmatpush1.bf16.msra.mxu0 0
    %5307 = vmatprep.subr.bf16.mxu0 0
    %5308 = vmatpush1.bf16.msra.mxu0 0
    %5309 = vmatprep.subr.bf16.mxu0 0
    %5310 = vmatpush1.bf16.msra.mxu0 0
    %5311 = vmatprep.subr.bf16.mxu0 0
    %5312 = vmatpush1.bf16.msra.mxu0 0
    %5313 = vmatprep.subr.bf16.mxu0 0
    %5314 = vmatpush1.bf16.msra.mxu0 0
    %5315 = vmatprep.subr.bf16.mxu0 0
    %5316 = vmatpush1.bf16.msra.mxu0 0
    %5317 = vmatprep.mubr.bf16.mxu0 0
    %5318 = vmatmul.mubr.bf16.gmra.mrb[0].mxu0 %v5233
    %v5319 = vpop.f32.mrb[0].mxu0
    %v5320 = vadd.f32 %v5144, %v5319
    %v5321 = vpop.f32.mrb[0].mxu0
    %v5322 = vpop.f32.mrb[0].mxu0
    %v5323 = vadd.f32 %v5147, %v5322
    %v5324 = vpop.f32.mrb[0].mxu0
    %5325 = vmatprep.mubr.bf16.mxu0 0
    %5326 = vmatmul.mubr.bf16.gmra.mrb[0].mxu0 %v5234
    %v5327 = vpop.f32.mrb[0].mxu0
    %v5328 = vadd.f32 %v5152, %v5327
    %v5329 = vpop.f32.mrb[0].mxu0
    %v5330 = vpop.f32.mrb[0].mxu0
    %v5331 = vpop.f32.mrb[0].mxu0
    %5332 = vdwg.mxu0
    %v5333 = vld [vmem:[%s12] sm:$0x1]
    %v5335 = vlaneseq
    %v5336 = vshrl.u32 %v5335, 7
    %v5337 = vsub.s32 0, %v5336
    %v5338 = vrot.slane %v5333, %v5337
    %v5340 = vadd.f32 %v5320, %v5338
    %v5341 = vadd.f32 %v5323, %v5338
    %v5342 = vadd.f32 %v5328, %v5338
    %5343 = vst [vmem:[#allocation2] sm:$0xff] %v5340
    %5344 = vst [vmem:[#allocation2 + $0x8] sm:$0xff] %v5341
    %5345 = vst [vmem:[#allocation2 + $0x10] sm:$0xff] %v5342
    // Predicated region
    $region54: #{tpu_custom_call.1} parent=1 // pred_check
      _
    $region55: #{tpu_custom_call.1} parent=1 // pred_check_branch
      %5347 = sbr.rel (0) target = $region57
    $region56: #{tpu_custom_call.1} parent=1 // pred_region
      %s5349 = ssub.s32 384, 384
      %5350 = vsyncadd [#allocation3], %s5349
      %s5351 = sshll.u32 [#allocation2], 4
      %s5352 = int_to_ptr.vmem [resolvable:$true] %s5351
      %5357 = dma.vmem_to_hbm [thread:$0]  %s5352, 384, %s13, [#allocation3], 128, 128, 8
    $region57: #{tpu_custom_call.1} parent=1 // pred_fallthru
      _
    // Predicated region
    $region58: #{tpu_custom_call.1} parent=1 // pred_check
      _
    $region59: #{tpu_custom_call.1} parent=1 // pred_check_branch
      %5359 = sbr.rel (0) target = $region61
    $region60: #{tpu_custom_call.1} parent=1 // pred_region
      %5360 = dma.done [#allocation3], 384
    $region61: #{tpu_custom_call.1} parent=1 // pred_fallthru
      _
    %5361 = vsyncpa [#allocation3], 1

</llo_original>
